<compile_context>
chip_gen: v5e
topology: v5e:2x2
jax: 0.10.0
libtpu: 0.0.40
codegen_flags: <defaults>
</compile_context>

<pallas_src>
import functools

import jax
import jax.numpy as jnp
from jax import lax
from jax.experimental import pallas as pl
from jax.experimental.pallas import tpu as pltpu

# True -> exact erf GELU (bit-matches torch GELU(approximate='none')), but
# pays a long VPU polynomial per element in a VALU-bound kernel.
EXACT_GELU = False
_VMEM_LIMIT = 32 * 1024 * 1024      # safe on v5e/v6e (128 MiB) and v7x (64 MiB)
_CHUNK = 128                        # lane chunk of the in-kernel recurrence loop
                                    # (bounds the live vreg set per chunk)

_SQRT2_INV = 0.7071067811865476
_GELU_K = 0.7978845608028654        # sqrt(2/pi)


def _gelu(x):
    if EXACT_GELU:
        return 0.5 * x * (1.0 + lax.erf(x * _SQRT2_INV))
    # tanh approximation: routes the transcendental to the EUP slot.
    return 0.5 * x * (1.0 + jnp.tanh(_GELU_K * (x + 0.044715 * (x * x * x))))


def _sigmoid(x):
    return jax.nn.sigmoid(x)


def _relu(x):
    return jnp.maximum(x, 0.0)


def _round_up(x, m):
    return ((x + m - 1) // m) * m


# ----------------------------------------------------------------------------
# Kernel 1: all 1x1-conv + GELU projections and the 3-iteration recurrence of
# qEncoder.forward, for every encoder at once, in the transposed lane-dense
# [features, tokens] layout.
#   y_ref  : [C, TN]                 token tile (TN lanes)
#   wy_ref : [6*ED, C], by_ref: [6*ED, 1]
#            rows ordered (proj-major, then encoder, then dict row); proj order
#            (We1, We2, Wfy1, Wiy1, Wfy2, Wiy2); ED = num_encoders * Dict_size
#   wxa_ref: [3*ED, ED] block-diagonal over encoders, proj order (Wfx2, Wix2, Wd2)
#   wxb_ref: [3*ED, ED] block-diagonal over encoders, proj order (Wfx1, Wix1, Wd1)
#   out_ref: [ED, TN]                final xt1 for every encoder
# The TN-lane tile is processed in `chunk`-lane pieces by a rolled pl.loop so
# the ~15 [ED, chunk] slabs live across the unrolled recurrence stay inside the
# 64-vreg register file (no spill).
# ----------------------------------------------------------------------------
def _qenc_recurrent_kernel(y_ref, wy_ref, by_ref, wxa_ref, bxa_ref,
                           wxb_ref, bxb_ref, out_ref, *, ED, chunk):
    # Bias broadcasts hoisted once per grid step (used 4x / 3x per chunk;
    # JAX does not CSE broadcast_in_dim).
    bxa = jnp.broadcast_to(bxa_ref[...], (3 * ED, chunk))
    bxb = jnp.broadcast_to(bxb_ref[...], (3 * ED, chunk))
    n_chunks = y_ref.shape[1] // chunk

    @pl.loop(0, n_chunks)
    def _(ci):
        off = pl.multiple_of(ci * chunk, chunk)
        y = y_ref[:, pl.ds(off, chunk)]                               # [C, chunk]
        yp = _gelu(jnp.dot(wy_ref[...], y, preferred_element_type=jnp.float32)
                   + by_ref[...])                                     # [6ED, chunk]
        ywe1, ywe2 = yp[0 * ED:1 * ED], yp[1 * ED:2 * ED]
        ywfy1, ywiy1 = yp[2 * ED:3 * ED], yp[3 * ED:4 * ED]
        ywfy2, ywiy2 = yp[4 * ED:5 * ED], yp[5 * ED:6 * ED]

        xt1 = jnp.zeros_like(ywe1)                                    # torch: xt1 = 0
        c12 = _sigmoid(ywiy1) * (-ywe1)                               # I * c12tlide
        x12 = _relu(c12)

        def half_step(x12, xt1, c12):
            xa = _gelu(jnp.dot(wxa_ref[...], x12,
                               preferred_element_type=jnp.float32) + bxa)
            xwfx2, xwix2, wd2x = (xa[0 * ED:1 * ED], xa[1 * ED:2 * ED],
                                  xa[2 * ED:3 * ED])
            ctlide1 = ywe2 + (xt1 - wd2x)
            ft1 = _sigmoid(xwfx2 + ywfy2)
            it1 = _sigmoid(xwix2 + ywiy2)
            ct1 = c12 * ft1 + ctlide1 * it1
            return ct1, _relu(ct1)

        for _ in range(3):                                            # static unrolled
            ct1, xt1 = half_step(x12, xt1, c12)
            xb = _gelu(jnp.dot(wxb_ref[...], xt1,
                               preferred_element_type=jnp.float32) + bxb)
            xwfx21, xwix21, xwd1 = (xb[0 * ED:1 * ED], xb[1 * ED:2 * ED],
                                    xb[2 * ED:3 * ED])
            c1tlide = ywe1 + xt1 - xwd1
            ft21 = _sigmoid(xwfx21 + ywfy1)
            it21 = _sigmoid(xwix21 + ywiy1)
            ct2 = ct1 * ft21 + c1tlide * it21
            x12 = _relu(ct2)
            c12 = ct2

        _, xt1_final = half_step(x12, xt1, c12)
        out_ref[:, pl.ds(off, chunk)] = xt1_final                     # lane-dense store


# ----------------------------------------------------------------------------
# Kernel 2: Line1 head (3x3 VALID conv + GELU, 1x1 conv + GELU, 1x1 conv),
# whole batch per grid step, one step per encoder.
#   x_ref : [D, B, HWp]  per-encoder activations, per-image flat (h, w) tokens
#           (HWp >= H*W + 2 so every conv-tap slice stays in range)
#   w1_ref: [2H, 9D]  column block k = kh*3+kw holds conv3x3 weight[:, :, kh, kw]
#   out_ref: [1, B*Ho*W]  (columns c in [W-2, W) of each image row are garbage
#           and dropped by the wrapper)
# ----------------------------------------------------------------------------
def _line1_kernel(x_ref, w1_ref, b1_ref, w2_ref, b2_ref, w3_ref, b3_ref,
                  out_ref, *, H, W, B):
    Ho = H - 2
    T = Ho * W
    x = x_ref[...]                                                    # [D, B, HWp]
    # 9 conv taps per image via static lane slices of the flat token axis,
    # concatenated over batch into one MXU operand.  (On v6e/v7x these
    # lane-unaligned slices share extended slots with vmatmul pushes; stage
    # them into a VMEM scratch if profiling ever shows MXU issue stalls.)
    cols = []
    for b in range(B):
        xb = x[:, b, :]                                               # [D, HWp]
        cols.append(jnp.concatenate(
            [xb[:, kh * W + kw: kh * W + kw + T]
             for kh in range(3) for kw in range(3)], axis=0))         # [9D, T]
    x9 = cols[0] if B == 1 else jnp.concatenate(cols, axis=1)         # [9D, B*T]
    h = _gelu(jnp.dot(w1_ref[...], x9, preferred_element_type=jnp.float32)
              + b1_ref[...])
    h = _gelu(jnp.dot(w2_ref[...], h, preferred_element_type=jnp.float32)
              + b2_ref[...])
    out_ref[...] = (jnp.dot(w3_ref[...], h, preferred_element_type=jnp.float32)
                    + b3_ref[...])


def qencoders_forward(y_nchw, params):
    """qEncoders.forward: y [B, cell_size, H, W] -> squeeze([B, E, H-2, W-2])."""
    B, C, H, W = y_nchw.shape
    E, H2, nineD = params["w1"].shape
    D = nineD // 9
    ED = E * D
    HW = H * W
    Ho, Wo = H - 2, W - 2
    # Per-image flat token axis, padded so conv-tap slices (largest offset is
    # 2*W + 2 + Ho*W = HW + 2) stay in range and the axis is lane-aligned.
    HWp = _round_up(HW + 2, 128)
    Np = B * HWp

    # ---- kernel 1: projections + recurrence, all encoders fused ------------
    # token order (b, h, w); channels on sublanes, tokens on lanes
    y_t = jnp.transpose(y_nchw, (1, 0, 2, 3)).reshape(C, B, HW)
    y_t = jnp.pad(y_t, ((0, 0), (0, 0), (0, HWp - HW))).reshape(C, Np)

    # biggest lane tile (multiple of _CHUNK) dividing Np, capped at 2048
    TN = _CHUNK
    for cand in range(min(2048, Np), _CHUNK - 1, -_CHUNK):
        if Np % cand == 0:
            TN = cand
            break

    xt1_flat = pl.pallas_call(
        functools.partial(_qenc_recurrent_kernel, ED=ED, chunk=_CHUNK),
        out_shape=jax.ShapeDtypeStruct((ED, Np), jnp.float32),
        grid=(Np // TN,),
        in_specs=[
            pl.BlockSpec((C, TN), lambda i: (0, i)),
            pl.BlockSpec((6 * ED, C), lambda i: (0, 0)),      # weights: constant
            pl.BlockSpec((6 * ED, 1), lambda i: (0, 0)),      # block index -> DMA'd
            pl.BlockSpec((3 * ED, ED), lambda i: (0, 0)),     # once, stay resident
            pl.BlockSpec((3 * ED, 1), lambda i: (0, 0)),
            pl.BlockSpec((3 * ED, ED), lambda i: (0, 0)),
            pl.BlockSpec((3 * ED, 1), lambda i: (0, 0)),
        ],
        out_specs=pl.BlockSpec((ED, TN), lambda i: (0, i)),
        compiler_params=pltpu.CompilerParams(
            dimension_semantics=("parallel",),
            vmem_limit_bytes=_VMEM_LIMIT),
    )(y_t, params["wy"], params["by"], params["wxa"], params["bxa"],
      params["wxb"], params["bxb"])

    # ---- kernel 2: Line1 head, one grid step per encoder -------------------
    # Free reshape (dim splits only, row-major): [E*D, B*HWp] -> [E, D, B, HWp]
    # so there is no extra HBM round trip between the two pallas_calls.
    x4 = xt1_flat.reshape(E, D, B, HWp)
    # NOTE: the whole-batch block is D*B*HWp*4 bytes; re-tile over B / row
    # blocks if that ever approaches the VMEM limit (irrelevant at these sizes).
    line1 = functools.partial(_line1_kernel, H=H, W=W, B=B)
    out = pl.pallas_call(
        line1,
        out_shape=jax.ShapeDtypeStruct((E, 1, B * Ho * W), jnp.float32),
        grid=(E,),
        in_specs=[
            pl.BlockSpec((None, D, B, HWp), lambda e: (e, 0, 0, 0)),
            pl.BlockSpec((None, H2, 9 * D), lambda e: (e, 0, 0)),
            pl.BlockSpec((None, H2, 1), lambda e: (e, 0, 0)),
            pl.BlockSpec((None, H2, H2), lambda e: (e, 0, 0)),
            pl.BlockSpec((None, H2, 1), lambda e: (e, 0, 0)),
            pl.BlockSpec((None, 1, H2), lambda e: (e, 0, 0)),
            pl.BlockSpec((None, 1, 1), lambda e: (e, 0, 0)),
        ],
        out_specs=pl.BlockSpec((None, 1, B * Ho * W), lambda e: (e, 0, 0)),
        compiler_params=pltpu.CompilerParams(
            dimension_semantics=("parallel",),
            vmem_limit_bytes=_VMEM_LIMIT),
    )(x4, params["w1"], params["b1"], params["w2"], params["b2"],
      params["w3"], params["b3"])

    # drop the 2 garbage boundary columns per row; NCHW; cat(dim=1).squeeze()
    out = out.reshape(E, B, Ho, W)[..., :Wo]                     # [E, B, Ho, Wo]
    # NOTE: like torch .squeeze(), this also drops B or E when they equal 1.
    return jnp.squeeze(jnp.transpose(out, (1, 0, 2, 3)))


def init_qencoders_params(key, Dict_size, hidden_size, cell_size, num_qEncoder):
    """Random params in the packed layout the kernels consume.

    Packing convention (how real torch weights would be placed):
      wy [j*E*D + e*D + d, c]        = conv1x1 weight[d, c, 0, 0] of encoder e,
                                       proj j in (We1, We2, Wfy1, Wiy1, Wfy2, Wiy2)
      wxa[j*E*D + e*D + d, e*D + k]  = (Wfx2, Wix2, Wd2) weight[d, k, 0, 0]
                                       (block-diagonal over encoders)
      wxb: same layout, proj order (Wfx1, Wix1, Wd1)
      w1 [e, o, (kh*3 + kw)*D + d]   = Line1 conv3x3 weight[o, d, kh, kw]
    """
    D, C, Hh, E = Dict_size, cell_size, hidden_size, num_qEncoder
    ED = E * D
    ks = jax.random.split(key, 12)
    s = 0.1

    def w(k, shape):
        return jax.random.normal(k, shape, jnp.float32) * s

    def block_diag(k):
        blocks = w(k, (3, E, D, D))
        m = jnp.zeros((3 * ED, ED), jnp.float32)
        for j in range(3):
            for e in range(E):
                m = m.at[j * ED + e * D: j * ED + (e + 1) * D,
                         e * D: (e + 1) * D].set(blocks[j, e])
        return m

    return dict(
        wy=w(ks[0], (6 * ED, C)), by=w(ks[1], (6 * ED, 1)),
        wxa=block_diag(ks[2]), bxa=w(ks[3], (3 * ED, 1)),
        wxb=block_diag(ks[4]), bxb=w(ks[5], (3 * ED, 1)),
        w1=w(ks[6], (E, 2 * Hh, 9 * D)), b1=w(ks[7], (E, 2 * Hh, 1)),
        w2=w(ks[8], (E, 2 * Hh, 2 * Hh)), b2=w(ks[9], (E, 2 * Hh, 1)),
        w3=w(ks[10], (E, 1, 2 * Hh)), b3=w(ks[11], (E, 1, 1)),
    )


if __name__ == "__main__":
    key = jax.random.PRNGKey(0)
    Dict_size, hidden_size, cell_size, num_qEncoder = 8, 8, 4, 2
    B, H, W = 2, 16, 16

    k_in, k_p = jax.random.split(key)
    y = jax.random.normal(k_in, (B, cell_size, H, W), jnp.float32)  # NCHW like torch
    params = init_qencoders_params(k_p, Dict_size, hidden_size, cell_size,
                                   num_qEncoder)

    out = jax.jit(qencoders_forward)(y, params)
    jax.block_until_ready(out)
    assert out.shape == (B, num_qEncoder, H - 2, W - 2), out.shape
    print("KERNEL_OK")
</pallas_src>

<mosaic_0001>
module attributes {stable_mosaic.version = 11 : i64} {
  func.func @_qenc_recurrent_kernel(%arg0: i32, %arg1: memref<4x768xf32, #tpu.memory_space<vmem>>, %arg2: memref<96x4xf32, #tpu.memory_space<vmem>>, %arg3: memref<96x1xf32, #tpu.memory_space<vmem>>, %arg4: memref<48x16xf32, #tpu.memory_space<vmem>>, %arg5: memref<48x1xf32, #tpu.memory_space<vmem>>, %arg6: memref<48x16xf32, #tpu.memory_space<vmem>>, %arg7: memref<48x1xf32, #tpu.memory_space<vmem>>, %arg8: memref<16x768xf32, #tpu.memory_space<vmem>>) attributes {dimension_semantics = [#tpu.dimension_semantics<parallel>], iteration_bounds = array<i64: 1>, scalar_prefetch = 0 : i64, scratch_operands = 0 : i64, tpu.core_type = #tpu.core_type<tc>, window_params = [{transform_indices = @transform_0, window_bounds = array<i64: 4, 768>}, {pipeline_mode = #tpu.pipeline_mode<synchronous>, transform_indices = @transform_1, window_bounds = array<i64: 96, 4>}, {pipeline_mode = #tpu.pipeline_mode<synchronous>, transform_indices = @transform_2, window_bounds = array<i64: 96, 1>}, {pipeline_mode = #tpu.pipeline_mode<synchronous>, transform_indices = @transform_3, window_bounds = array<i64: 48, 16>}, {pipeline_mode = #tpu.pipeline_mode<synchronous>, transform_indices = @transform_4, window_bounds = array<i64: 48, 1>}, {pipeline_mode = #tpu.pipeline_mode<synchronous>, transform_indices = @transform_5, window_bounds = array<i64: 48, 16>}, {pipeline_mode = #tpu.pipeline_mode<synchronous>, transform_indices = @transform_6, window_bounds = array<i64: 48, 1>}, {transform_indices = @transform_7, window_bounds = array<i64: 16, 768>}]} {
    %c0 = arith.constant 0 : index
    %c0_0 = arith.constant 0 : index
    %0 = vector.load %arg5[%c0, %c0_0] : memref<48x1xf32, #tpu.memory_space<vmem>>, vector<48x1xf32>
    %1 = vector.shape_cast %0 : vector<48x1xf32> to vector<48x1xf32>
    %2 = vector.broadcast %1 : vector<48x1xf32> to vector<48x128xf32>
    %c0_1 = arith.constant 0 : index
    %c0_2 = arith.constant 0 : index
    %3 = vector.load %arg7[%c0_1, %c0_2] : memref<48x1xf32, #tpu.memory_space<vmem>>, vector<48x1xf32>
    %4 = vector.shape_cast %3 : vector<48x1xf32> to vector<48x1xf32>
    %5 = vector.broadcast %4 : vector<48x1xf32> to vector<48x128xf32>
    %c0_i32 = arith.constant 0 : i32
    %c6_i32 = arith.constant 6 : i32
    %6 = arith.addi %c0_i32, %c6_i32 : i32
    %c1_i32 = arith.constant 1 : i32
    scf.for %arg9 = %c0_i32 to %6 step %c1_i32  : i32 {
      %c1_i32_4 = arith.constant 1 : i32
      %7 = arith.muli %arg9, %c1_i32_4 : i32
      %c0_i32_5 = arith.constant 0 : i32
      %8 = arith.addi %c0_i32_5, %7 : i32
      %c128_i32 = arith.constant 128 : i32
      %9 = arith.muli %8, %c128_i32 : i32
      %10 = tpu.assume_multiple %9, 128 : i32
      %c0_6 = arith.constant 0 : index
      %11 = arith.index_cast %10 : i32 to index
      %12 = vector.load %arg1[%c0_6, %11] : memref<4x768xf32, #tpu.memory_space<vmem>>, vector<4x128xf32>
      %c0_7 = arith.constant 0 : index
      %c0_8 = arith.constant 0 : index
      %13 = vector.load %arg2[%c0_7, %c0_8] : memref<96x4xf32, #tpu.memory_space<vmem>>, vector<96x4xf32>
      %cst = arith.constant dense<0.000000e+00> : vector<96x128xf32>
      %14 = tpu.matmul %13, %12, %cst {dimension_numbers = #tpu.dot_dimension_numbers<[1], [0], [0], [1], [0, 0, 1, 1], [], []>} : vector<96x4xf32>, vector<4x128xf32>, vector<96x128xf32> -> vector<96x128xf32>
      %c0_9 = arith.constant 0 : index
      %c0_10 = arith.constant 0 : index
      %15 = vector.load %arg3[%c0_9, %c0_10] : memref<96x1xf32, #tpu.memory_space<vmem>>, vector<96x1xf32>
      %16 = vector.broadcast %15 : vector<96x1xf32> to vector<96x128xf32>
      %17 = arith.addf %14, %16 : vector<96x128xf32>
      %cst_11 = arith.constant 5.000000e-01 : f32
      %18 = vector.broadcast %cst_11 : f32 to vector<96x128xf32>
      %19 = arith.mulf %18, %17 : vector<96x128xf32>
      %20 = arith.mulf %17, %17 : vector<96x128xf32>
      %21 = arith.mulf %20, %17 : vector<96x128xf32>
      %cst_12 = arith.constant 4.471500e-02 : f32
      %22 = vector.broadcast %cst_12 : f32 to vector<96x128xf32>
      %23 = arith.mulf %22, %21 : vector<96x128xf32>
      %24 = arith.addf %17, %23 : vector<96x128xf32>
      %cst_13 = arith.constant 0.797884583 : f32
      %25 = vector.broadcast %cst_13 : f32 to vector<96x128xf32>
      %26 = arith.mulf %25, %24 : vector<96x128xf32>
      %27 = math.tanh %26 : vector<96x128xf32>
      %cst_14 = arith.constant 1.000000e+00 : f32
      %28 = vector.broadcast %cst_14 : f32 to vector<96x128xf32>
      %29 = arith.addf %28, %27 : vector<96x128xf32>
      %30 = arith.mulf %19, %29 : vector<96x128xf32>
      %31 = vector.extract_strided_slice %30 {offsets = [0, 0], sizes = [16, 128], strides = [1, 1]} : vector<96x128xf32> to vector<16x128xf32>
      %32 = vector.extract_strided_slice %30 {offsets = [16, 0], sizes = [16, 128], strides = [1, 1]} : vector<96x128xf32> to vector<16x128xf32>
      %33 = vector.extract_strided_slice %30 {offsets = [32, 0], sizes = [16, 128], strides = [1, 1]} : vector<96x128xf32> to vector<16x128xf32>
      %34 = vector.extract_strided_slice %30 {offsets = [48, 0], sizes = [16, 128], strides = [1, 1]} : vector<96x128xf32> to vector<16x128xf32>
      %35 = vector.extract_strided_slice %30 {offsets = [64, 0], sizes = [16, 128], strides = [1, 1]} : vector<96x128xf32> to vector<16x128xf32>
      %36 = vector.extract_strided_slice %30 {offsets = [80, 0], sizes = [16, 128], strides = [1, 1]} : vector<96x128xf32> to vector<16x128xf32>
      %cst_15 = arith.constant 0.000000e+00 : f32
      %37 = vector.broadcast %cst_15 : f32 to vector<16x128xf32>
      %38 = arith.negf %34 : vector<16x128xf32>
      %39 = math.exp %38 : vector<16x128xf32>
      %cst_16 = arith.constant 1.000000e+00 : f32
      %40 = vector.broadcast %cst_16 : f32 to vector<16x128xf32>
      %41 = arith.addf %40, %39 : vector<16x128xf32>
      %42 = arith.divf %40, %41 : vector<16x128xf32>
      %cst_17 = arith.constant 0.000000e+00 : f32
      %43 = vector.broadcast %cst_17 : f32 to vector<16x128xf32>
      %44 = arith.subf %43, %31 : vector<16x128xf32>
      %45 = arith.mulf %42, %44 : vector<16x128xf32>
      %cst_18 = arith.constant 0.000000e+00 : f32
      %46 = vector.broadcast %cst_18 : f32 to vector<16x128xf32>
      %47 = arith.maximumf %45, %46 : vector<16x128xf32>
      %c0_19 = arith.constant 0 : index
      %c0_20 = arith.constant 0 : index
      %48 = vector.load %arg4[%c0_19, %c0_20] : memref<48x16xf32, #tpu.memory_space<vmem>>, vector<48x16xf32>
      %cst_21 = arith.constant dense<0.000000e+00> : vector<48x128xf32>
      %49 = tpu.matmul %48, %47, %cst_21 {dimension_numbers = #tpu.dot_dimension_numbers<[1], [0], [0], [1], [0, 0, 1, 1], [], []>} : vector<48x16xf32>, vector<16x128xf32>, vector<48x128xf32> -> vector<48x128xf32>
      %50 = arith.addf %49, %2 : vector<48x128xf32>
      %cst_22 = arith.constant 5.000000e-01 : f32
      %51 = vector.broadcast %cst_22 : f32 to vector<48x128xf32>
      %52 = arith.mulf %51, %50 : vector<48x128xf32>
      %53 = arith.mulf %50, %50 : vector<48x128xf32>
      %54 = arith.mulf %53, %50 : vector<48x128xf32>
      %cst_23 = arith.constant 4.471500e-02 : f32
      %55 = vector.broadcast %cst_23 : f32 to vector<48x128xf32>
      %56 = arith.mulf %55, %54 : vector<48x128xf32>
      %57 = arith.addf %50, %56 : vector<48x128xf32>
      %cst_24 = arith.constant 0.797884583 : f32
      %58 = vector.broadcast %cst_24 : f32 to vector<48x128xf32>
      %59 = arith.mulf %58, %57 : vector<48x128xf32>
      %60 = math.tanh %59 : vector<48x128xf32>
      %cst_25 = arith.constant 1.000000e+00 : f32
      %61 = vector.broadcast %cst_25 : f32 to vector<48x128xf32>
      %62 = arith.addf %61, %60 : vector<48x128xf32>
      %63 = arith.mulf %52, %62 : vector<48x128xf32>
      %64 = vector.extract_strided_slice %63 {offsets = [0, 0], sizes = [16, 128], strides = [1, 1]} : vector<48x128xf32> to vector<16x128xf32>
      %65 = vector.extract_strided_slice %63 {offsets = [16, 0], sizes = [16, 128], strides = [1, 1]} : vector<48x128xf32> to vector<16x128xf32>
      %66 = vector.extract_strided_slice %63 {offsets = [32, 0], sizes = [16, 128], strides = [1, 1]} : vector<48x128xf32> to vector<16x128xf32>
      %67 = arith.subf %37, %66 : vector<16x128xf32>
      %68 = arith.addf %32, %67 : vector<16x128xf32>
      %69 = arith.addf %64, %35 : vector<16x128xf32>
      %70 = arith.negf %69 : vector<16x128xf32>
      %71 = math.exp %70 : vector<16x128xf32>
      %cst_26 = arith.constant 1.000000e+00 : f32
      %72 = vector.broadcast %cst_26 : f32 to vector<16x128xf32>
      %73 = arith.addf %72, %71 : vector<16x128xf32>
      %74 = arith.divf %72, %73 : vector<16x128xf32>
      %75 = arith.addf %65, %36 : vector<16x128xf32>
      %76 = arith.negf %75 : vector<16x128xf32>
      %77 = math.exp %76 : vector<16x128xf32>
      %cst_27 = arith.constant 1.000000e+00 : f32
      %78 = vector.broadcast %cst_27 : f32 to vector<16x128xf32>
      %79 = arith.addf %78, %77 : vector<16x128xf32>
      %80 = arith.divf %78, %79 : vector<16x128xf32>
      %81 = arith.mulf %45, %74 : vector<16x128xf32>
      %82 = arith.mulf %68, %80 : vector<16x128xf32>
      %83 = arith.addf %81, %82 : vector<16x128xf32>
      %cst_28 = arith.constant 0.000000e+00 : f32
      %84 = vector.broadcast %cst_28 : f32 to vector<16x128xf32>
      %85 = arith.maximumf %83, %84 : vector<16x128xf32>
      %c0_29 = arith.constant 0 : index
      %c0_30 = arith.constant 0 : index
      %86 = vector.load %arg6[%c0_29, %c0_30] : memref<48x16xf32, #tpu.memory_space<vmem>>, vector<48x16xf32>
      %cst_31 = arith.constant dense<0.000000e+00> : vector<48x128xf32>
      %87 = tpu.matmul %86, %85, %cst_31 {dimension_numbers = #tpu.dot_dimension_numbers<[1], [0], [0], [1], [0, 0, 1, 1], [], []>} : vector<48x16xf32>, vector<16x128xf32>, vector<48x128xf32> -> vector<48x128xf32>
      %88 = arith.addf %87, %5 : vector<48x128xf32>
      %cst_32 = arith.constant 5.000000e-01 : f32
      %89 = vector.broadcast %cst_32 : f32 to vector<48x128xf32>
      %90 = arith.mulf %89, %88 : vector<48x128xf32>
      %91 = arith.mulf %88, %88 : vector<48x128xf32>
      %92 = arith.mulf %91, %88 : vector<48x128xf32>
      %cst_33 = arith.constant 4.471500e-02 : f32
      %93 = vector.broadcast %cst_33 : f32 to vector<48x128xf32>
      %94 = arith.mulf %93, %92 : vector<48x128xf32>
      %95 = arith.addf %88, %94 : vector<48x128xf32>
      %cst_34 = arith.constant 0.797884583 : f32
      %96 = vector.broadcast %cst_34 : f32 to vector<48x128xf32>
      %97 = arith.mulf %96, %95 : vector<48x128xf32>
      %98 = math.tanh %97 : vector<48x128xf32>
      %cst_35 = arith.constant 1.000000e+00 : f32
      %99 = vector.broadcast %cst_35 : f32 to vector<48x128xf32>
      %100 = arith.addf %99, %98 : vector<48x128xf32>
      %101 = arith.mulf %90, %100 : vector<48x128xf32>
      %102 = vector.extract_strided_slice %101 {offsets = [0, 0], sizes = [16, 128], strides = [1, 1]} : vector<48x128xf32> to vector<16x128xf32>
      %103 = vector.extract_strided_slice %101 {offsets = [16, 0], sizes = [16, 128], strides = [1, 1]} : vector<48x128xf32> to vector<16x128xf32>
      %104 = vector.extract_strided_slice %101 {offsets = [32, 0], sizes = [16, 128], strides = [1, 1]} : vector<48x128xf32> to vector<16x128xf32>
      %105 = arith.addf %31, %85 : vector<16x128xf32>
      %106 = arith.subf %105, %104 : vector<16x128xf32>
      %107 = arith.addf %102, %33 : vector<16x128xf32>
      %108 = arith.negf %107 : vector<16x128xf32>
      %109 = math.exp %108 : vector<16x128xf32>
      %cst_36 = arith.constant 1.000000e+00 : f32
      %110 = vector.broadcast %cst_36 : f32 to vector<16x128xf32>
      %111 = arith.addf %110, %109 : vector<16x128xf32>
      %112 = arith.divf %110, %111 : vector<16x128xf32>
      %113 = arith.addf %103, %34 : vector<16x128xf32>
      %114 = arith.negf %113 : vector<16x128xf32>
      %115 = math.exp %114 : vector<16x128xf32>
      %cst_37 = arith.constant 1.000000e+00 : f32
      %116 = vector.broadcast %cst_37 : f32 to vector<16x128xf32>
      %117 = arith.addf %116, %115 : vector<16x128xf32>
      %118 = arith.divf %116, %117 : vector<16x128xf32>
      %119 = arith.mulf %83, %112 : vector<16x128xf32>
      %120 = arith.mulf %106, %118 : vector<16x128xf32>
      %121 = arith.addf %119, %120 : vector<16x128xf32>
      %cst_38 = arith.constant 0.000000e+00 : f32
      %122 = vector.broadcast %cst_38 : f32 to vector<16x128xf32>
      %123 = arith.maximumf %121, %122 : vector<16x128xf32>
      %c0_39 = arith.constant 0 : index
      %c0_40 = arith.constant 0 : index
      %124 = vector.load %arg4[%c0_39, %c0_40] : memref<48x16xf32, #tpu.memory_space<vmem>>, vector<48x16xf32>
      %cst_41 = arith.constant dense<0.000000e+00> : vector<48x128xf32>
      %125 = tpu.matmul %124, %123, %cst_41 {dimension_numbers = #tpu.dot_dimension_numbers<[1], [0], [0], [1], [0, 0, 1, 1], [], []>} : vector<48x16xf32>, vector<16x128xf32>, vector<48x128xf32> -> vector<48x128xf32>
      %126 = arith.addf %125, %2 : vector<48x128xf32>
      %cst_42 = arith.constant 5.000000e-01 : f32
      %127 = vector.broadcast %cst_42 : f32 to vector<48x128xf32>
      %128 = arith.mulf %127, %126 : vector<48x128xf32>
      %129 = arith.mulf %126, %126 : vector<48x128xf32>
      %130 = arith.mulf %129, %126 : vector<48x128xf32>
      %cst_43 = arith.constant 4.471500e-02 : f32
      %131 = vector.broadcast %cst_43 : f32 to vector<48x128xf32>
      %132 = arith.mulf %131, %130 : vector<48x128xf32>
      %133 = arith.addf %126, %132 : vector<48x128xf32>
      %cst_44 = arith.constant 0.797884583 : f32
      %134 = vector.broadcast %cst_44 : f32 to vector<48x128xf32>
      %135 = arith.mulf %134, %133 : vector<48x128xf32>
      %136 = math.tanh %135 : vector<48x128xf32>
      %cst_45 = arith.constant 1.000000e+00 : f32
      %137 = vector.broadcast %cst_45 : f32 to vector<48x128xf32>
      %138 = arith.addf %137, %136 : vector<48x128xf32>
      %139 = arith.mulf %128, %138 : vector<48x128xf32>
      %140 = vector.extract_strided_slice %139 {offsets = [0, 0], sizes = [16, 128], strides = [1, 1]} : vector<48x128xf32> to vector<16x128xf32>
      %141 = vector.extract_strided_slice %139 {offsets = [16, 0], sizes = [16, 128], strides = [1, 1]} : vector<48x128xf32> to vector<16x128xf32>
      %142 = vector.extract_strided_slice %139 {offsets = [32, 0], sizes = [16, 128], strides = [1, 1]} : vector<48x128xf32> to vector<16x128xf32>
      %143 = arith.subf %85, %142 : vector<16x128xf32>
      %144 = arith.addf %32, %143 : vector<16x128xf32>
      %145 = arith.addf %140, %35 : vector<16x128xf32>
      %146 = arith.negf %145 : vector<16x128xf32>
      %147 = math.exp %146 : vector<16x128xf32>
      %cst_46 = arith.constant 1.000000e+00 : f32
      %148 = vector.broadcast %cst_46 : f32 to vector<16x128xf32>
      %149 = arith.addf %148, %147 : vector<16x128xf32>
      %150 = arith.divf %148, %149 : vector<16x128xf32>
      %151 = arith.addf %141, %36 : vector<16x128xf32>
      %152 = arith.negf %151 : vector<16x128xf32>
      %153 = math.exp %152 : vector<16x128xf32>
      %cst_47 = arith.constant 1.000000e+00 : f32
      %154 = vector.broadcast %cst_47 : f32 to vector<16x128xf32>
      %155 = arith.addf %154, %153 : vector<16x128xf32>
      %156 = arith.divf %154, %155 : vector<16x128xf32>
      %157 = arith.mulf %121, %150 : vector<16x128xf32>
      %158 = arith.mulf %144, %156 : vector<16x128xf32>
      %159 = arith.addf %157, %158 : vector<16x128xf32>
      %cst_48 = arith.constant 0.000000e+00 : f32
      %160 = vector.broadcast %cst_48 : f32 to vector<16x128xf32>
      %161 = arith.maximumf %159, %160 : vector<16x128xf32>
      %c0_49 = arith.constant 0 : index
      %c0_50 = arith.constant 0 : index
      %162 = vector.load %arg6[%c0_49, %c0_50] : memref<48x16xf32, #tpu.memory_space<vmem>>, vector<48x16xf32>
      %cst_51 = arith.constant dense<0.000000e+00> : vector<48x128xf32>
      %163 = tpu.matmul %162, %161, %cst_51 {dimension_numbers = #tpu.dot_dimension_numbers<[1], [0], [0], [1], [0, 0, 1, 1], [], []>} : vector<48x16xf32>, vector<16x128xf32>, vector<48x128xf32> -> vector<48x128xf32>
      %164 = arith.addf %163, %5 : vector<48x128xf32>
      %cst_52 = arith.constant 5.000000e-01 : f32
      %165 = vector.broadcast %cst_52 : f32 to vector<48x128xf32>
      %166 = arith.mulf %165, %164 : vector<48x128xf32>
      %167 = arith.mulf %164, %164 : vector<48x128xf32>
      %168 = arith.mulf %167, %164 : vector<48x128xf32>
      %cst_53 = arith.constant 4.471500e-02 : f32
      %169 = vector.broadcast %cst_53 : f32 to vector<48x128xf32>
      %170 = arith.mulf %169, %168 : vector<48x128xf32>
      %171 = arith.addf %164, %170 : vector<48x128xf32>
      %cst_54 = arith.constant 0.797884583 : f32
      %172 = vector.broadcast %cst_54 : f32 to vector<48x128xf32>
      %173 = arith.mulf %172, %171 : vector<48x128xf32>
      %174 = math.tanh %173 : vector<48x128xf32>
      %cst_55 = arith.constant 1.000000e+00 : f32
      %175 = vector.broadcast %cst_55 : f32 to vector<48x128xf32>
      %176 = arith.addf %175, %174 : vector<48x128xf32>
      %177 = arith.mulf %166, %176 : vector<48x128xf32>
      %178 = vector.extract_strided_slice %177 {offsets = [0, 0], sizes = [16, 128], strides = [1, 1]} : vector<48x128xf32> to vector<16x128xf32>
      %179 = vector.extract_strided_slice %177 {offsets = [16, 0], sizes = [16, 128], strides = [1, 1]} : vector<48x128xf32> to vector<16x128xf32>
      %180 = vector.extract_strided_slice %177 {offsets = [32, 0], sizes = [16, 128], strides = [1, 1]} : vector<48x128xf32> to vector<16x128xf32>
      %181 = arith.addf %31, %161 : vector<16x128xf32>
      %182 = arith.subf %181, %180 : vector<16x128xf32>
      %183 = arith.addf %178, %33 : vector<16x128xf32>
      %184 = arith.negf %183 : vector<16x128xf32>
      %185 = math.exp %184 : vector<16x128xf32>
      %cst_56 = arith.constant 1.000000e+00 : f32
      %186 = vector.broadcast %cst_56 : f32 to vector<16x128xf32>
      %187 = arith.addf %186, %185 : vector<16x128xf32>
      %188 = arith.divf %186, %187 : vector<16x128xf32>
      %189 = arith.addf %179, %34 : vector<16x128xf32>
      %190 = arith.negf %189 : vector<16x128xf32>
      %191 = math.exp %190 : vector<16x128xf32>
      %cst_57 = arith.constant 1.000000e+00 : f32
      %192 = vector.broadcast %cst_57 : f32 to vector<16x128xf32>
      %193 = arith.addf %192, %191 : vector<16x128xf32>
      %194 = arith.divf %192, %193 : vector<16x128xf32>
      %195 = arith.mulf %159, %188 : vector<16x128xf32>
      %196 = arith.mulf %182, %194 : vector<16x128xf32>
      %197 = arith.addf %195, %196 : vector<16x128xf32>
      %cst_58 = arith.constant 0.000000e+00 : f32
      %198 = vector.broadcast %cst_58 : f32 to vector<16x128xf32>
      %199 = arith.maximumf %197, %198 : vector<16x128xf32>
      %c0_59 = arith.constant 0 : index
      %c0_60 = arith.constant 0 : index
      %200 = vector.load %arg4[%c0_59, %c0_60] : memref<48x16xf32, #tpu.memory_space<vmem>>, vector<48x16xf32>
      %cst_61 = arith.constant dense<0.000000e+00> : vector<48x128xf32>
      %201 = tpu.matmul %200, %199, %cst_61 {dimension_numbers = #tpu.dot_dimension_numbers<[1], [0], [0], [1], [0, 0, 1, 1], [], []>} : vector<48x16xf32>, vector<16x128xf32>, vector<48x128xf32> -> vector<48x128xf32>
      %202 = arith.addf %201, %2 : vector<48x128xf32>
      %cst_62 = arith.constant 5.000000e-01 : f32
      %203 = vector.broadcast %cst_62 : f32 to vector<48x128xf32>
      %204 = arith.mulf %203, %202 : vector<48x128xf32>
      %205 = arith.mulf %202, %202 : vector<48x128xf32>
      %206 = arith.mulf %205, %202 : vector<48x128xf32>
      %cst_63 = arith.constant 4.471500e-02 : f32
      %207 = vector.broadcast %cst_63 : f32 to vector<48x128xf32>
      %208 = arith.mulf %207, %206 : vector<48x128xf32>
      %209 = arith.addf %202, %208 : vector<48x128xf32>
      %cst_64 = arith.constant 0.797884583 : f32
      %210 = vector.broadcast %cst_64 : f32 to vector<48x128xf32>
      %211 = arith.mulf %210, %209 : vector<48x128xf32>
      %212 = math.tanh %211 : vector<48x128xf32>
      %cst_65 = arith.constant 1.000000e+00 : f32
      %213 = vector.broadcast %cst_65 : f32 to vector<48x128xf32>
      %214 = arith.addf %213, %212 : vector<48x128xf32>
      %215 = arith.mulf %204, %214 : vector<48x128xf32>
      %216 = vector.extract_strided_slice %215 {offsets = [0, 0], sizes = [16, 128], strides = [1, 1]} : vector<48x128xf32> to vector<16x128xf32>
      %217 = vector.extract_strided_slice %215 {offsets = [16, 0], sizes = [16, 128], strides = [1, 1]} : vector<48x128xf32> to vector<16x128xf32>
      %218 = vector.extract_strided_slice %215 {offsets = [32, 0], sizes = [16, 128], strides = [1, 1]} : vector<48x128xf32> to vector<16x128xf32>
      %219 = arith.subf %161, %218 : vector<16x128xf32>
      %220 = arith.addf %32, %219 : vector<16x128xf32>
      %221 = arith.addf %216, %35 : vector<16x128xf32>
      %222 = arith.negf %221 : vector<16x128xf32>
      %223 = math.exp %222 : vector<16x128xf32>
      %cst_66 = arith.constant 1.000000e+00 : f32
      %224 = vector.broadcast %cst_66 : f32 to vector<16x128xf32>
      %225 = arith.addf %224, %223 : vector<16x128xf32>
      %226 = arith.divf %224, %225 : vector<16x128xf32>
      %227 = arith.addf %217, %36 : vector<16x128xf32>
      %228 = arith.negf %227 : vector<16x128xf32>
      %229 = math.exp %228 : vector<16x128xf32>
      %cst_67 = arith.constant 1.000000e+00 : f32
      %230 = vector.broadcast %cst_67 : f32 to vector<16x128xf32>
      %231 = arith.addf %230, %229 : vector<16x128xf32>
      %232 = arith.divf %230, %231 : vector<16x128xf32>
      %233 = arith.mulf %197, %226 : vector<16x128xf32>
      %234 = arith.mulf %220, %232 : vector<16x128xf32>
      %235 = arith.addf %233, %234 : vector<16x128xf32>
      %cst_68 = arith.constant 0.000000e+00 : f32
      %236 = vector.broadcast %cst_68 : f32 to vector<16x128xf32>
      %237 = arith.maximumf %235, %236 : vector<16x128xf32>
      %c0_69 = arith.constant 0 : index
      %c0_70 = arith.constant 0 : index
      %238 = vector.load %arg6[%c0_69, %c0_70] : memref<48x16xf32, #tpu.memory_space<vmem>>, vector<48x16xf32>
      %cst_71 = arith.constant dense<0.000000e+00> : vector<48x128xf32>
      %239 = tpu.matmul %238, %237, %cst_71 {dimension_numbers = #tpu.dot_dimension_numbers<[1], [0], [0], [1], [0, 0, 1, 1], [], []>} : vector<48x16xf32>, vector<16x128xf32>, vector<48x128xf32> -> vector<48x128xf32>
      %240 = arith.addf %239, %5 : vector<48x128xf32>
      %cst_72 = arith.constant 5.000000e-01 : f32
      %241 = vector.broadcast %cst_72 : f32 to vector<48x128xf32>
      %242 = arith.mulf %241, %240 : vector<48x128xf32>
      %243 = arith.mulf %240, %240 : vector<48x128xf32>
      %244 = arith.mulf %243, %240 : vector<48x128xf32>
      %cst_73 = arith.constant 4.471500e-02 : f32
      %245 = vector.broadcast %cst_73 : f32 to vector<48x128xf32>
      %246 = arith.mulf %245, %244 : vector<48x128xf32>
      %247 = arith.addf %240, %246 : vector<48x128xf32>
      %cst_74 = arith.constant 0.797884583 : f32
      %248 = vector.broadcast %cst_74 : f32 to vector<48x128xf32>
      %249 = arith.mulf %248, %247 : vector<48x128xf32>
      %250 = math.tanh %249 : vector<48x128xf32>
      %cst_75 = arith.constant 1.000000e+00 : f32
      %251 = vector.broadcast %cst_75 : f32 to vector<48x128xf32>
      %252 = arith.addf %251, %250 : vector<48x128xf32>
      %253 = arith.mulf %242, %252 : vector<48x128xf32>
      %254 = vector.extract_strided_slice %253 {offsets = [0, 0], sizes = [16, 128], strides = [1, 1]} : vector<48x128xf32> to vector<16x128xf32>
      %255 = vector.extract_strided_slice %253 {offsets = [16, 0], sizes = [16, 128], strides = [1, 1]} : vector<48x128xf32> to vector<16x128xf32>
      %256 = vector.extract_strided_slice %253 {offsets = [32, 0], sizes = [16, 128], strides = [1, 1]} : vector<48x128xf32> to vector<16x128xf32>
      %257 = arith.addf %31, %237 : vector<16x128xf32>
      %258 = arith.subf %257, %256 : vector<16x128xf32>
      %259 = arith.addf %254, %33 : vector<16x128xf32>
      %260 = arith.negf %259 : vector<16x128xf32>
      %261 = math.exp %260 : vector<16x128xf32>
      %cst_76 = arith.constant 1.000000e+00 : f32
      %262 = vector.broadcast %cst_76 : f32 to vector<16x128xf32>
      %263 = arith.addf %262, %261 : vector<16x128xf32>
      %264 = arith.divf %262, %263 : vector<16x128xf32>
      %265 = arith.addf %255, %34 : vector<16x128xf32>
      %266 = arith.negf %265 : vector<16x128xf32>
      %267 = math.exp %266 : vector<16x128xf32>
      %cst_77 = arith.constant 1.000000e+00 : f32
      %268 = vector.broadcast %cst_77 : f32 to vector<16x128xf32>
      %269 = arith.addf %268, %267 : vector<16x128xf32>
      %270 = arith.divf %268, %269 : vector<16x128xf32>
      %271 = arith.mulf %235, %264 : vector<16x128xf32>
      %272 = arith.mulf %258, %270 : vector<16x128xf32>
      %273 = arith.addf %271, %272 : vector<16x128xf32>
      %cst_78 = arith.constant 0.000000e+00 : f32
      %274 = vector.broadcast %cst_78 : f32 to vector<16x128xf32>
      %275 = arith.maximumf %273, %274 : vector<16x128xf32>
      %c0_79 = arith.constant 0 : index
      %c0_80 = arith.constant 0 : index
      %276 = vector.load %arg4[%c0_79, %c0_80] : memref<48x16xf32, #tpu.memory_space<vmem>>, vector<48x16xf32>
      %cst_81 = arith.constant dense<0.000000e+00> : vector<48x128xf32>
      %277 = tpu.matmul %276, %275, %cst_81 {dimension_numbers = #tpu.dot_dimension_numbers<[1], [0], [0], [1], [0, 0, 1, 1], [], []>} : vector<48x16xf32>, vector<16x128xf32>, vector<48x128xf32> -> vector<48x128xf32>
      %278 = arith.addf %277, %2 : vector<48x128xf32>
      %cst_82 = arith.constant 5.000000e-01 : f32
      %279 = vector.broadcast %cst_82 : f32 to vector<48x128xf32>
      %280 = arith.mulf %279, %278 : vector<48x128xf32>
      %281 = arith.mulf %278, %278 : vector<48x128xf32>
      %282 = arith.mulf %281, %278 : vector<48x128xf32>
      %cst_83 = arith.constant 4.471500e-02 : f32
      %283 = vector.broadcast %cst_83 : f32 to vector<48x128xf32>
      %284 = arith.mulf %283, %282 : vector<48x128xf32>
      %285 = arith.addf %278, %284 : vector<48x128xf32>
      %cst_84 = arith.constant 0.797884583 : f32
      %286 = vector.broadcast %cst_84 : f32 to vector<48x128xf32>
      %287 = arith.mulf %286, %285 : vector<48x128xf32>
      %288 = math.tanh %287 : vector<48x128xf32>
      %cst_85 = arith.constant 1.000000e+00 : f32
      %289 = vector.broadcast %cst_85 : f32 to vector<48x128xf32>
      %290 = arith.addf %289, %288 : vector<48x128xf32>
      %291 = arith.mulf %280, %290 : vector<48x128xf32>
      %292 = vector.extract_strided_slice %291 {offsets = [0, 0], sizes = [16, 128], strides = [1, 1]} : vector<48x128xf32> to vector<16x128xf32>
      %293 = vector.extract_strided_slice %291 {offsets = [16, 0], sizes = [16, 128], strides = [1, 1]} : vector<48x128xf32> to vector<16x128xf32>
      %294 = vector.extract_strided_slice %291 {offsets = [32, 0], sizes = [16, 128], strides = [1, 1]} : vector<48x128xf32> to vector<16x128xf32>
      %295 = arith.subf %237, %294 : vector<16x128xf32>
      %296 = arith.addf %32, %295 : vector<16x128xf32>
      %297 = arith.addf %292, %35 : vector<16x128xf32>
      %298 = arith.negf %297 : vector<16x128xf32>
      %299 = math.exp %298 : vector<16x128xf32>
      %cst_86 = arith.constant 1.000000e+00 : f32
      %300 = vector.broadcast %cst_86 : f32 to vector<16x128xf32>
      %301 = arith.addf %300, %299 : vector<16x128xf32>
      %302 = arith.divf %300, %301 : vector<16x128xf32>
      %303 = arith.addf %293, %36 : vector<16x128xf32>
      %304 = arith.negf %303 : vector<16x128xf32>
      %305 = math.exp %304 : vector<16x128xf32>
      %cst_87 = arith.constant 1.000000e+00 : f32
      %306 = vector.broadcast %cst_87 : f32 to vector<16x128xf32>
      %307 = arith.addf %306, %305 : vector<16x128xf32>
      %308 = arith.divf %306, %307 : vector<16x128xf32>
      %309 = arith.mulf %273, %302 : vector<16x128xf32>
      %310 = arith.mulf %296, %308 : vector<16x128xf32>
      %311 = arith.addf %309, %310 : vector<16x128xf32>
      %cst_88 = arith.constant 0.000000e+00 : f32
      %312 = vector.broadcast %cst_88 : f32 to vector<16x128xf32>
      %313 = arith.maximumf %311, %312 : vector<16x128xf32>
      %c0_89 = arith.constant 0 : index
      %314 = arith.index_cast %10 : i32 to index
      %315 = vector.load %arg8[%c0_89, %314] : memref<16x768xf32, #tpu.memory_space<vmem>>, vector<16x128xf32>
      tpu.vector_store %arg8[%c0_89, %314], %313 {strides = array<i32>} : memref<16x768xf32, #tpu.memory_space<vmem>>, vector<16x128xf32>,
    }
    %c6_i32_3 = arith.constant 6 : i32
    return
  }
  func.func @transform_0(%arg0: i32) -> (i32, i32) {
    %c0_i32 = arith.constant 0 : i32
    %c0_i32_0 = arith.constant 0 : i32
    return %c0_i32, %arg0 : i32, i32
  }
  func.func @transform_1(%arg0: i32) -> (i32, i32) {
    %c0_i32 = arith.constant 0 : i32
    %c0_i32_0 = arith.constant 0 : i32
    %c0_i32_1 = arith.constant 0 : i32
    return %c0_i32, %c0_i32_0 : i32, i32
  }
  func.func @transform_2(%arg0: i32) -> (i32, i32) {
    %c0_i32 = arith.constant 0 : i32
    %c0_i32_0 = arith.constant 0 : i32
    %c0_i32_1 = arith.constant 0 : i32
    return %c0_i32, %c0_i32_0 : i32, i32
  }
  func.func @transform_3(%arg0: i32) -> (i32, i32) {
    %c0_i32 = arith.constant 0 : i32
    %c0_i32_0 = arith.constant 0 : i32
    %c0_i32_1 = arith.constant 0 : i32
    return %c0_i32, %c0_i32_0 : i32, i32
  }
  func.func @transform_4(%arg0: i32) -> (i32, i32) {
    %c0_i32 = arith.constant 0 : i32
    %c0_i32_0 = arith.constant 0 : i32
    %c0_i32_1 = arith.constant 0 : i32
    return %c0_i32, %c0_i32_0 : i32, i32
  }
  func.func @transform_5(%arg0: i32) -> (i32, i32) {
    %c0_i32 = arith.constant 0 : i32
    %c0_i32_0 = arith.constant 0 : i32
    %c0_i32_1 = arith.constant 0 : i32
    return %c0_i32, %c0_i32_0 : i32, i32
  }
  func.func @transform_6(%arg0: i32) -> (i32, i32) {
    %c0_i32 = arith.constant 0 : i32
    %c0_i32_0 = arith.constant 0 : i32
    %c0_i32_1 = arith.constant 0 : i32
    return %c0_i32, %c0_i32_0 : i32, i32
  }
  func.func @transform_7(%arg0: i32) -> (i32, i32) {
    %c0_i32 = arith.constant 0 : i32
    %c0_i32_0 = arith.constant 0 : i32
    return %c0_i32, %arg0 : i32, i32
  }
}

module attributes {stable_mosaic.version = 11 : i64} {
  func.func @_line1_kernel(%arg0: i32, %arg1: memref<1x8x2x384xf32, #tpu.memory_space<vmem>>, %arg2: memref<1x16x72xf32, #tpu.memory_space<vmem>>, %arg3: memref<1x16x1xf32, #tpu.memory_space<vmem>>, %arg4: memref<1x16x16xf32, #tpu.memory_space<vmem>>, %arg5: memref<1x16x1xf32, #tpu.memory_space<vmem>>, %arg6: memref<1x1x16xf32, #tpu.memory_space<vmem>>, %arg7: memref<1x1x1xf32, #tpu.memory_space<vmem>>, %arg8: memref<1x1x448xf32, #tpu.memory_space<vmem>>) attributes {dimension_semantics = [#tpu.dimension_semantics<parallel>], iteration_bounds = array<i64: 2>, scalar_prefetch = 0 : i64, scratch_operands = 0 : i64, tpu.core_type = #tpu.core_type<tc>, window_params = [{transform_indices = @transform_0, window_bounds = array<i64: 1, 8, 2, 384>}, {transform_indices = @transform_1, window_bounds = array<i64: 1, 16, 72>}, {transform_indices = @transform_2, window_bounds = array<i64: 1, 16, 1>}, {transform_indices = @transform_3, window_bounds = array<i64: 1, 16, 16>}, {transform_indices = @transform_4, window_bounds = array<i64: 1, 16, 1>}, {transform_indices = @transform_5, window_bounds = array<i64: 1, 1, 16>}, {transform_indices = @transform_6, window_bounds = array<i64: 1, 1, 1>}, {transform_indices = @transform_7, window_bounds = array<i64: 1, 1, 448>}]} {
    %c0 = arith.constant 0 : index
    %c0_0 = arith.constant 0 : index
    %c0_1 = arith.constant 0 : index
    %c0_2 = arith.constant 0 : index
    %0 = vector.load %arg1[%c0, %c0_0, %c0_1, %c0_2] : memref<1x8x2x384xf32, #tpu.memory_space<vmem>>, vector<1x8x2x384xf32>
    %1 = vector.shape_cast %0 : vector<1x8x2x384xf32> to vector<8x2x384xf32>
    %2 = vector.extract_strided_slice %1 {offsets = [0, 0, 0], sizes = [8, 1, 384], strides = [1, 1, 1]} : vector<8x2x384xf32> to vector<8x1x384xf32>
    %3 = vector.shape_cast %2 : vector<8x1x384xf32> to vector<8x384xf32>
    %4 = vector.extract_strided_slice %3 {offsets = [0, 0], sizes = [8, 224], strides = [1, 1]} : vector<8x384xf32> to vector<8x224xf32>
    %5 = vector.extract_strided_slice %3 {offsets = [0, 1], sizes = [8, 224], strides = [1, 1]} : vector<8x384xf32> to vector<8x224xf32>
    %6 = vector.extract_strided_slice %3 {offsets = [0, 2], sizes = [8, 224], strides = [1, 1]} : vector<8x384xf32> to vector<8x224xf32>
    %7 = vector.extract_strided_slice %3 {offsets = [0, 16], sizes = [8, 224], strides = [1, 1]} : vector<8x384xf32> to vector<8x224xf32>
    %8 = vector.extract_strided_slice %3 {offsets = [0, 17], sizes = [8, 224], strides = [1, 1]} : vector<8x384xf32> to vector<8x224xf32>
    %9 = vector.extract_strided_slice %3 {offsets = [0, 18], sizes = [8, 224], strides = [1, 1]} : vector<8x384xf32> to vector<8x224xf32>
    %10 = vector.extract_strided_slice %3 {offsets = [0, 32], sizes = [8, 224], strides = [1, 1]} : vector<8x384xf32> to vector<8x224xf32>
    %11 = vector.extract_strided_slice %3 {offsets = [0, 33], sizes = [8, 224], strides = [1, 1]} : vector<8x384xf32> to vector<8x224xf32>
    %12 = vector.extract_strided_slice %3 {offsets = [0, 34], sizes = [8, 224], strides = [1, 1]} : vector<8x384xf32> to vector<8x224xf32>
    %13 = tpu.concatenate %4, %5, %6, %7, %8, %9, %10, %11, %12 in 0 : vector<8x224xf32>, vector<8x224xf32>, vector<8x224xf32>, vector<8x224xf32>, vector<8x224xf32>, vector<8x224xf32>, vector<8x224xf32>, vector<8x224xf32>, vector<8x224xf32> -> vector<72x224xf32>
    %14 = vector.extract_strided_slice %1 {offsets = [0, 1, 0], sizes = [8, 1, 384], strides = [1, 1, 1]} : vector<8x2x384xf32> to vector<8x1x384xf32>
    %15 = vector.shape_cast %14 : vector<8x1x384xf32> to vector<8x384xf32>
    %16 = vector.extract_strided_slice %15 {offsets = [0, 0], sizes = [8, 224], strides = [1, 1]} : vector<8x384xf32> to vector<8x224xf32>
    %17 = vector.extract_strided_slice %15 {offsets = [0, 1], sizes = [8, 224], strides = [1, 1]} : vector<8x384xf32> to vector<8x224xf32>
    %18 = vector.extract_strided_slice %15 {offsets = [0, 2], sizes = [8, 224], strides = [1, 1]} : vector<8x384xf32> to vector<8x224xf32>
    %19 = vector.extract_strided_slice %15 {offsets = [0, 16], sizes = [8, 224], strides = [1, 1]} : vector<8x384xf32> to vector<8x224xf32>
    %20 = vector.extract_strided_slice %15 {offsets = [0, 17], sizes = [8, 224], strides = [1, 1]} : vector<8x384xf32> to vector<8x224xf32>
    %21 = vector.extract_strided_slice %15 {offsets = [0, 18], sizes = [8, 224], strides = [1, 1]} : vector<8x384xf32> to vector<8x224xf32>
    %22 = vector.extract_strided_slice %15 {offsets = [0, 32], sizes = [8, 224], strides = [1, 1]} : vector<8x384xf32> to vector<8x224xf32>
    %23 = vector.extract_strided_slice %15 {offsets = [0, 33], sizes = [8, 224], strides = [1, 1]} : vector<8x384xf32> to vector<8x224xf32>
    %24 = vector.extract_strided_slice %15 {offsets = [0, 34], sizes = [8, 224], strides = [1, 1]} : vector<8x384xf32> to vector<8x224xf32>
    %25 = tpu.concatenate %16, %17, %18, %19, %20, %21, %22, %23, %24 in 0 : vector<8x224xf32>, vector<8x224xf32>, vector<8x224xf32>, vector<8x224xf32>, vector<8x224xf32>, vector<8x224xf32>, vector<8x224xf32>, vector<8x224xf32>, vector<8x224xf32> -> vector<72x224xf32>
    %26 = tpu.concatenate %13, %25 in 1 : vector<72x224xf32>, vector<72x224xf32> -> vector<72x448xf32>
    %c0_3 = arith.constant 0 : index
    %c0_4 = arith.constant 0 : index
    %c0_5 = arith.constant 0 : index
    %27 = vector.load %arg2[%c0_3, %c0_4, %c0_5] : memref<1x16x72xf32, #tpu.memory_space<vmem>>, vector<1x16x72xf32>
    %28 = vector.shape_cast %27 : vector<1x16x72xf32> to vector<16x72xf32>
    %cst = arith.constant dense<0.000000e+00> : vector<16x448xf32>
    %29 = tpu.matmul %28, %26, %cst {dimension_numbers = #tpu.dot_dimension_numbers<[1], [0], [0], [1], [0, 0, 1, 1], [], []>} : vector<16x72xf32>, vector<72x448xf32>, vector<16x448xf32> -> vector<16x448xf32>
    %c0_6 = arith.constant 0 : index
    %c0_7 = arith.constant 0 : index
    %c0_8 = arith.constant 0 : index
    %30 = vector.load %arg3[%c0_6, %c0_7, %c0_8] : memref<1x16x1xf32, #tpu.memory_space<vmem>>, vector<1x16x1xf32>
    %31 = vector.shape_cast %30 : vector<1x16x1xf32> to vector<16x1xf32>
    %32 = vector.broadcast %31 : vector<16x1xf32> to vector<16x448xf32>
    %33 = arith.addf %29, %32 : vector<16x448xf32>
    %cst_9 = arith.constant 5.000000e-01 : f32
    %34 = vector.broadcast %cst_9 : f32 to vector<16x448xf32>
    %35 = arith.mulf %34, %33 : vector<16x448xf32>
    %36 = arith.mulf %33, %33 : vector<16x448xf32>
    %37 = arith.mulf %36, %33 : vector<16x448xf32>
    %cst_10 = arith.constant 4.471500e-02 : f32
    %38 = vector.broadcast %cst_10 : f32 to vector<16x448xf32>
    %39 = arith.mulf %38, %37 : vector<16x448xf32>
    %40 = arith.addf %33, %39 : vector<16x448xf32>
    %cst_11 = arith.constant 0.797884583 : f32
    %41 = vector.broadcast %cst_11 : f32 to vector<16x448xf32>
    %42 = arith.mulf %41, %40 : vector<16x448xf32>
    %43 = math.tanh %42 : vector<16x448xf32>
    %cst_12 = arith.constant 1.000000e+00 : f32
    %44 = vector.broadcast %cst_12 : f32 to vector<16x448xf32>
    %45 = arith.addf %44, %43 : vector<16x448xf32>
    %46 = arith.mulf %35, %45 : vector<16x448xf32>
    %c0_13 = arith.constant 0 : index
    %c0_14 = arith.constant 0 : index
    %c0_15 = arith.constant 0 : index
    %47 = vector.load %arg4[%c0_13, %c0_14, %c0_15] : memref<1x16x16xf32, #tpu.memory_space<vmem>>, vector<1x16x16xf32>
    %48 = vector.shape_cast %47 : vector<1x16x16xf32> to vector<16x16xf32>
    %cst_16 = arith.constant dense<0.000000e+00> : vector<16x448xf32>
    %49 = tpu.matmul %48, %46, %cst_16 {dimension_numbers = #tpu.dot_dimension_numbers<[1], [0], [0], [1], [0, 0, 1, 1], [], []>} : vector<16x16xf32>, vector<16x448xf32>, vector<16x448xf32> -> vector<16x448xf32>
    %c0_17 = arith.constant 0 : index
    %c0_18 = arith.constant 0 : index
    %c0_19 = arith.constant 0 : index
    %50 = vector.load %arg5[%c0_17, %c0_18, %c0_19] : memref<1x16x1xf32, #tpu.memory_space<vmem>>, vector<1x16x1xf32>
    %51 = vector.shape_cast %50 : vector<1x16x1xf32> to vector<16x1xf32>
    %52 = vector.broadcast %51 : vector<16x1xf32> to vector<16x448xf32>
    %53 = arith.addf %49, %52 : vector<16x448xf32>
    %cst_20 = arith.constant 5.000000e-01 : f32
    %54 = vector.broadcast %cst_20 : f32 to vector<16x448xf32>
    %55 = arith.mulf %54, %53 : vector<16x448xf32>
    %56 = arith.mulf %53, %53 : vector<16x448xf32>
    %57 = arith.mulf %56, %53 : vector<16x448xf32>
    %cst_21 = arith.constant 4.471500e-02 : f32
    %58 = vector.broadcast %cst_21 : f32 to vector<16x448xf32>
    %59 = arith.mulf %58, %57 : vector<16x448xf32>
    %60 = arith.addf %53, %59 : vector<16x448xf32>
    %cst_22 = arith.constant 0.797884583 : f32
    %61 = vector.broadcast %cst_22 : f32 to vector<16x448xf32>
    %62 = arith.mulf %61, %60 : vector<16x448xf32>
    %63 = math.tanh %62 : vector<16x448xf32>
    %cst_23 = arith.constant 1.000000e+00 : f32
    %64 = vector.broadcast %cst_23 : f32 to vector<16x448xf32>
    %65 = arith.addf %64, %63 : vector<16x448xf32>
    %66 = arith.mulf %55, %65 : vector<16x448xf32>
    %c0_24 = arith.constant 0 : index
    %c0_25 = arith.constant 0 : index
    %c0_26 = arith.constant 0 : index
    %67 = vector.load %arg6[%c0_24, %c0_25, %c0_26] : memref<1x1x16xf32, #tpu.memory_space<vmem>>, vector<1x1x16xf32>
    %68 = vector.shape_cast %67 : vector<1x1x16xf32> to vector<1x16xf32>
    %cst_27 = arith.constant dense<0.000000e+00> : vector<1x448xf32>
    %69 = tpu.matmul %68, %66, %cst_27 {dimension_numbers = #tpu.dot_dimension_numbers<[1], [0], [0], [1], [0, 0, 1, 1], [], []>} : vector<1x16xf32>, vector<16x448xf32>, vector<1x448xf32> -> vector<1x448xf32>
    %c0_28 = arith.constant 0 : index
    %c0_29 = arith.constant 0 : index
    %c0_30 = arith.constant 0 : index
    %70 = vector.load %arg7[%c0_28, %c0_29, %c0_30] : memref<1x1x1xf32, #tpu.memory_space<vmem>>, vector<1x1x1xf32>
    %71 = vector.shape_cast %70 : vector<1x1x1xf32> to vector<1x1xf32>
    %72 = vector.broadcast %71 : vector<1x1xf32> to vector<1x448xf32>
    %73 = arith.addf %69, %72 : vector<1x448xf32>
    %c0_31 = arith.constant 0 : index
    %c0_32 = arith.constant 0 : index
    %c0_33 = arith.constant 0 : index
    %74 = vector.load %arg8[%c0_31, %c0_32, %c0_33] : memref<1x1x448xf32, #tpu.memory_space<vmem>>, vector<1x1x448xf32>
    %75 = vector.shape_cast %74 : vector<1x1x448xf32> to vector<1x448xf32>
    %76 = vector.shape_cast %73 : vector<1x448xf32> to vector<1x1x448xf32>
    tpu.vector_store %arg8[%c0_31, %c0_32, %c0_33], %76 {strides = array<i32>} : memref<1x1x448xf32, #tpu.memory_space<vmem>>, vector<1x1x448xf32>,
    return
  }
  func.func @transform_0(%arg0: i32) -> (i32, i32, i32, i32) {
    %c0_i32 = arith.constant 0 : i32
    %c0_i32_0 = arith.constant 0 : i32
    %c0_i32_1 = arith.constant 0 : i32
    %c0_i32_2 = arith.constant 0 : i32
    return %arg0, %c0_i32, %c0_i32_0, %c0_i32_1 : i32, i32, i32, i32
  }
  func.func @transform_1(%arg0: i32) -> (i32, i32, i32) {
    %c0_i32 = arith.constant 0 : i32
    %c0_i32_0 = arith.constant 0 : i32
    %c0_i32_1 = arith.constant 0 : i32
    return %arg0, %c0_i32, %c0_i32_0 : i32, i32, i32
  }
  func.func @transform_2(%arg0: i32) -> (i32, i32, i32) {
    %c0_i32 = arith.constant 0 : i32
    %c0_i32_0 = arith.constant 0 : i32
    %c0_i32_1 = arith.constant 0 : i32
    return %arg0, %c0_i32, %c0_i32_0 : i32, i32, i32
  }
  func.func @transform_3(%arg0: i32) -> (i32, i32, i32) {
    %c0_i32 = arith.constant 0 : i32
    %c0_i32_0 = arith.constant 0 : i32
    %c0_i32_1 = arith.constant 0 : i32
    return %arg0, %c0_i32, %c0_i32_0 : i32, i32, i32
  }
  func.func @transform_4(%arg0: i32) -> (i32, i32, i32) {
    %c0_i32 = arith.constant 0 : i32
    %c0_i32_0 = arith.constant 0 : i32
    %c0_i32_1 = arith.constant 0 : i32
    return %arg0, %c0_i32, %c0_i32_0 : i32, i32, i32
  }
  func.func @transform_5(%arg0: i32) -> (i32, i32, i32) {
    %c0_i32 = arith.constant 0 : i32
    %c0_i32_0 = arith.constant 0 : i32
    %c0_i32_1 = arith.constant 0 : i32
    return %arg0, %c0_i32, %c0_i32_0 : i32, i32, i32
  }
  func.func @transform_6(%arg0: i32) -> (i32, i32, i32) {
    %c0_i32 = arith.constant 0 : i32
    %c0_i32_0 = arith.constant 0 : i32
    %c0_i32_1 = arith.constant 0 : i32
    return %arg0, %c0_i32, %c0_i32_0 : i32, i32, i32
  }
  func.func @transform_7(%arg0: i32) -> (i32, i32, i32) {
    %c0_i32 = arith.constant 0 : i32
    %c0_i32_0 = arith.constant 0 : i32
    %c0_i32_1 = arith.constant 0 : i32
    return %arg0, %c0_i32, %c0_i32_0 : i32, i32, i32
  }
}

</mosaic_0001>

<llo_original>
// kernel: qencoders_forward.2
$region0: #{qencoders_forward.2}
  #allocation0 [shape = 'u32[]', space=smem, size = 0x4, offset = 0x4, fixed_abs, tag = 'smem constant byte address 0x4 - core index']
  #allocation1 [shape = 'u32[72,128]{1,0:T(1,128)}', space=vmem, size = 0x9000, scoped, tag = 'internal scratch']
  %s0 = inlined_call_operand.vmem [shape: f32[4,768], index: 0, kind: input, shape index: {}]
  %s1 = inlined_call_operand.vmem [shape: f32[96,4], index: 1, kind: input, shape index: {}]
  %s2 = inlined_call_operand.vmem [shape: f32[96,1], index: 2, kind: input, shape index: {}]
  %s3 = inlined_call_operand.vmem [shape: f32[48,16], index: 3, kind: input, shape index: {}]
  %s4 = inlined_call_operand.vmem [shape: f32[48,1], index: 4, kind: input, shape index: {}]
  %s5 = inlined_call_operand.vmem [shape: f32[48,16], index: 5, kind: input, shape index: {}]
  %s6 = inlined_call_operand.vmem [shape: f32[48,1], index: 6, kind: input, shape index: {}]
  %s7 = inlined_call_operand.vmem [shape: f32[16,768], index: 7, kind: output, shape index: {}]
  %s8 = sld [smem:[#allocation0]]
  $region45: #{qencoders_forward.2} parent=0
    _
  %s10 = ssub.s32 1, %s8
  %s11 = scalar_select 0, %s10, %s8
  // Predicated region
  $region2: #{qencoders_forward.2} parent=0 // pred_check
    _
  $region3: #{qencoders_forward.2} parent=0 // pred_check_branch
    %13 = sbr.rel (0) target = $region5
  $region4: #{qencoders_forward.2} parent=0 // pred_region
    _
  $region5: #{qencoders_forward.2} parent=0 // pred_fallthru
    _
  // Predicated region
  $region6: #{qencoders_forward.2} parent=0 // pred_check
    _
  $region7: #{qencoders_forward.2} parent=0 // pred_check_branch
    %15 = sbr.rel (0) target = $region9
  $region8: #{qencoders_forward.2} parent=0 // pred_region
    _
  $region9: #{qencoders_forward.2} parent=0 // pred_fallthru
    _
  // Predicated region
  $region10: #{qencoders_forward.2} parent=0 // pred_check
    _
  $region11: #{qencoders_forward.2} parent=0 // pred_check_branch
    %17 = sbr.rel (0) target = $region13
  $region12: #{qencoders_forward.2} parent=0 // pred_region
    _
  $region13: #{qencoders_forward.2} parent=0 // pred_fallthru
    _
  // Predicated region
  $region14: #{qencoders_forward.2} parent=0 // pred_check
    _
  $region15: #{qencoders_forward.2} parent=0 // pred_check_branch
    %19 = sbr.rel (0) target = $region17
  $region16: #{qencoders_forward.2} parent=0 // pred_region
    _
  $region17: #{qencoders_forward.2} parent=0 // pred_fallthru
    _
  // Predicated region
  $region18: #{qencoders_forward.2} parent=0 // pred_check
    _
  $region19: #{qencoders_forward.2} parent=0 // pred_check_branch
    %21 = sbr.rel (0) target = $region21
  $region20: #{qencoders_forward.2} parent=0 // pred_region
    _
  $region21: #{qencoders_forward.2} parent=0 // pred_fallthru
    _
  // Predicated region
  $region22: #{qencoders_forward.2} parent=0 // pred_check
    _
  $region23: #{qencoders_forward.2} parent=0 // pred_check_branch
    %23 = sbr.rel (0) target = $region25
  $region24: #{qencoders_forward.2} parent=0 // pred_region
    _
  $region25: #{qencoders_forward.2} parent=0 // pred_fallthru
    _
  // Predicated region
  $region26: #{qencoders_forward.2} parent=0 // pred_check
    _
  $region27: #{qencoders_forward.2} parent=0 // pred_check_branch
    %25 = sbr.rel (0) target = $region29
  $region28: #{qencoders_forward.2} parent=0 // pred_region
    _
  $region29: #{qencoders_forward.2} parent=0 // pred_fallthru
    _
  %v26 = vld [vmem:[%s4] sm:$0xff]
  %v27 = vld [vmem:[%s4 + $0x8] sm:$0xff]
  %v28 = vld [vmem:[%s4 + $0x10] sm:$0xff]
  %v29 = vld [vmem:[%s4 + $0x18] sm:$0xff]
  %v30 = vld [vmem:[%s4 + $0x20] sm:$0xff]
  %v31 = vld [vmem:[%s4 + $0x28] sm:$0xff]
  %33 = vset.pattern.permute.xlu0 0
  %34 = vperm.xlu0 %33, %v26
  %v35 = vpop.permute.xlu0 %34
  %38 = vset.pattern.permute.xlu0 0
  %39 = vperm.xlu0 %38, %v27
  %v40 = vpop.permute.xlu0 %39
  %43 = vset.pattern.permute.xlu0 0
  %44 = vperm.xlu0 %43, %v28
  %v45 = vpop.permute.xlu0 %44
  %48 = vset.pattern.permute.xlu0 0
  %49 = vperm.xlu0 %48, %v29
  %v50 = vpop.permute.xlu0 %49
  %53 = vset.pattern.permute.xlu0 0
  %54 = vperm.xlu0 %53, %v30
  %v55 = vpop.permute.xlu0 %54
  %58 = vset.pattern.permute.xlu0 0
  %59 = vperm.xlu0 %58, %v31
  %v60 = vpop.permute.xlu0 %59
  %v62 = vld [vmem:[%s6] sm:$0xff]
  %v63 = vld [vmem:[%s6 + $0x8] sm:$0xff]
  %v64 = vld [vmem:[%s6 + $0x10] sm:$0xff]
  %v65 = vld [vmem:[%s6 + $0x18] sm:$0xff]
  %v66 = vld [vmem:[%s6 + $0x20] sm:$0xff]
  %v67 = vld [vmem:[%s6 + $0x28] sm:$0xff]
  %69 = vset.pattern.permute.xlu0 0
  %70 = vperm.xlu0 %69, %v62
  %v71 = vpop.permute.xlu0 %70
  %74 = vset.pattern.permute.xlu0 0
  %75 = vperm.xlu0 %74, %v63
  %v76 = vpop.permute.xlu0 %75
  %79 = vset.pattern.permute.xlu0 0
  %80 = vperm.xlu0 %79, %v64
  %v81 = vpop.permute.xlu0 %80
  %84 = vset.pattern.permute.xlu0 0
  %85 = vperm.xlu0 %84, %v65
  %v86 = vpop.permute.xlu0 %85
  %89 = vset.pattern.permute.xlu0 0
  %90 = vperm.xlu0 %89, %v66
  %v91 = vpop.permute.xlu0 %90
  %94 = vset.pattern.permute.xlu0 0
  %95 = vperm.xlu0 %94, %v67
  %v96 = vpop.permute.xlu0 %95
  loop: start=0, step=1, limit=6
  $region30: #{qencoders_forward.2} parent=0 // loop_pre_header
    _
  $region31: #{qencoders_forward.2} parent=0 // loop_header
    %s99 = sphi 0, %s103
    %p100 = scmp.ge.s32.totalorder %s99, 6
  $region32: #{qencoders_forward.2} parent=0 // loop_header_branch
    %102 = sbr.rel (%p100) target = $region36
  $region33: #{qencoders_forward.2} parent=0 // loop_body
    %s104 = smul.u32 %s99, 128
    %s105 = sshra.s32 %s104, 7
    %s106 = sand.u32 %s104, 127
    %s107 = smul.addr %s105, 4
    %s108 = scalar_lea.vmem %s0, %s107
    %v109 = vld [vmem:[%s108] sm:$0xf]
    %v110 = vld [vmem:[%s1] sm:$0xff]
    %v111 = vld [vmem:[%s1 + $0x8] sm:$0xff]
    %v112 = vld [vmem:[%s1 + $0x10] sm:$0xff]
    %v113 = vld [vmem:[%s1 + $0x18] sm:$0xff]
    %v114 = vld [vmem:[%s1 + $0x20] sm:$0xff]
    %v115 = vld [vmem:[%s1 + $0x28] sm:$0xff]
    %v116 = vld [vmem:[%s1 + $0x30] sm:$0xff]
    %v117 = vld [vmem:[%s1 + $0x38] sm:$0xff]
    %v118 = vld [vmem:[%s1 + $0x40] sm:$0xff]
    %v119 = vld [vmem:[%s1 + $0x48] sm:$0xff]
    %v120 = vld [vmem:[%s1 + $0x50] sm:$0xff]
    %v121 = vld [vmem:[%s1 + $0x58] sm:$0xff]
    %v122 = vld [vmem:[%s2] sm:$0xff]
    %v123 = vld [vmem:[%s2 + $0x8] sm:$0xff]
    %v124 = vld [vmem:[%s2 + $0x10] sm:$0xff]
    %v125 = vld [vmem:[%s2 + $0x18] sm:$0xff]
    %v126 = vld [vmem:[%s2 + $0x20] sm:$0xff]
    %v127 = vld [vmem:[%s2 + $0x28] sm:$0xff]
    %v128 = vld [vmem:[%s2 + $0x30] sm:$0xff]
    %v129 = vld [vmem:[%s2 + $0x38] sm:$0xff]
    %v130 = vld [vmem:[%s2 + $0x40] sm:$0xff]
    %v131 = vld [vmem:[%s2 + $0x48] sm:$0xff]
    %v132 = vld [vmem:[%s2 + $0x50] sm:$0xff]
    %v133 = vld [vmem:[%s2 + $0x58] sm:$0xff]
    %135 = vset.pattern.permute.xlu0 0
    %136 = vperm.xlu0 %135, %v122
    %v137 = vpop.permute.xlu0 %136
    %140 = vset.pattern.permute.xlu0 0
    %141 = vperm.xlu0 %140, %v123
    %v142 = vpop.permute.xlu0 %141
    %145 = vset.pattern.permute.xlu0 0
    %146 = vperm.xlu0 %145, %v124
    %v147 = vpop.permute.xlu0 %146
    %150 = vset.pattern.permute.xlu0 0
    %151 = vperm.xlu0 %150, %v125
    %v152 = vpop.permute.xlu0 %151
    %155 = vset.pattern.permute.xlu0 0
    %156 = vperm.xlu0 %155, %v126
    %v157 = vpop.permute.xlu0 %156
    %160 = vset.pattern.permute.xlu0 0
    %161 = vperm.xlu0 %160, %v127
    %v162 = vpop.permute.xlu0 %161
    %165 = vset.pattern.permute.xlu0 0
    %166 = vperm.xlu0 %165, %v128
    %v167 = vpop.permute.xlu0 %166
    %170 = vset.pattern.permute.xlu0 0
    %171 = vperm.xlu0 %170, %v129
    %v172 = vpop.permute.xlu0 %171
    %175 = vset.pattern.permute.xlu0 0
    %176 = vperm.xlu0 %175, %v130
    %v177 = vpop.permute.xlu0 %176
    %180 = vset.pattern.permute.xlu0 0
    %181 = vperm.xlu0 %180, %v131
    %v182 = vpop.permute.xlu0 %181
    %185 = vset.pattern.permute.xlu0 0
    %186 = vperm.xlu0 %185, %v132
    %v187 = vpop.permute.xlu0 %186
    %190 = vset.pattern.permute.xlu0 0
    %191 = vperm.xlu0 %190, %v133
    %v192 = vpop.permute.xlu0 %191
    %vm194 = vcmask 31744
    %v196 = vsel %vm194, %v110, 0
    %v199 = vsel %vm194, %v111, 0
    %v202 = vsel %vm194, %v112, 0
    %v205 = vsel %vm194, %v113, 0
    %v208 = vsel %vm194, %v114, 0
    %v211 = vsel %vm194, %v115, 0
    %v214 = vsel %vm194, %v116, 0
    %v217 = vsel %vm194, %v117, 0
    %v220 = vsel %vm194, %v118, 0
    %v223 = vsel %vm194, %v119, 0
    %v226 = vsel %vm194, %v120, 0
    %v229 = vsel %vm194, %v121, 0
    %vm231 = vcmask 1043456
    %v233 = vsel %vm231, %v109, 0
    %235 = vmatpush.msra.mxu0 0.0
    %236 = vmatpush.msra.mxu0 0.0
    %237 = vmatpush.msra.mxu0 0.0
    %238 = vmatpush.msra.mxu0 0.0
    %239 = vmatpush.msra.mxu0 0.0
    %240 = vmatpush.msra.mxu0 0.0
    %241 = vmatpush.msra.mxu0 0.0
    %242 = vmatpush.msra.mxu0 0.0
    %243 = vmatpush.msra.mxu0 0.0
    %244 = vmatpush.msra.mxu0 0.0
    %245 = vmatpush.msra.mxu0 0.0
    %246 = vmatpush.msra.mxu0 0.0
    %247 = vmatpush.msra.mxu0 0.0
    %248 = vmatpush.msra.mxu0 0.0
    %249 = vmatpush.msra.mxu0 0.0
    %250 = vmatpush.msra.mxu0 %v233
    %251 = vmatmul.f32.gmra.mxu0 %v196
    %v252 = vpop.f32.mrf.mxu0
    %v253 = vadd.f32 %v137, %v252
    %254 = vmatmul.f32.gmra.mxu0 %v199
    %v255 = vpop.f32.mrf.mxu0
    %v256 = vadd.f32 %v142, %v255
    %257 = vmatmul.f32.gmra.mxu0 %v202
    %v258 = vpop.f32.mrf.mxu0
    %v259 = vadd.f32 %v147, %v258
    %260 = vmatmul.f32.gmra.mxu0 %v205
    %v261 = vpop.f32.mrf.mxu0
    %v262 = vadd.f32 %v152, %v261
    %263 = vmatmul.f32.gmra.mxu0 %v208
    %v264 = vpop.f32.mrf.mxu0
    %v265 = vadd.f32 %v157, %v264
    %266 = vmatmul.f32.gmra.mxu0 %v211
    %v267 = vpop.f32.mrf.mxu0
    %v268 = vadd.f32 %v162, %v267
    %269 = vmatmul.f32.gmra.mxu0 %v214
    %v270 = vpop.f32.mrf.mxu0
    %v271 = vadd.f32 %v167, %v270
    %272 = vmatmul.f32.gmra.mxu0 %v217
    %v273 = vpop.f32.mrf.mxu0
    %v274 = vadd.f32 %v172, %v273
    %275 = vmatmul.f32.gmra.mxu0 %v220
    %v276 = vpop.f32.mrf.mxu0
    %v277 = vadd.f32 %v177, %v276
    %278 = vmatmul.f32.gmra.mxu0 %v223
    %v279 = vpop.f32.mrf.mxu0
    %v280 = vadd.f32 %v182, %v279
    %281 = vmatmul.f32.gmra.mxu0 %v226
    %v282 = vpop.f32.mrf.mxu0
    %v283 = vadd.f32 %v187, %v282
    %284 = vmatmul.f32.gmra.mxu0 %v229
    %v285 = vpop.f32.mrf.mxu0
    %v286 = vadd.f32 %v192, %v285
    %287 = vdwg.mxu0
    %v288 = vmul.f32 %v253, 0.5
    %v289 = vmul.f32 %v256, 0.5
    %v290 = vmul.f32 %v259, 0.5
    %v291 = vmul.f32 %v262, 0.5
    %v292 = vmul.f32 %v265, 0.5
    %v293 = vmul.f32 %v268, 0.5
    %v294 = vmul.f32 %v271, 0.5
    %v295 = vmul.f32 %v274, 0.5
    %v296 = vmul.f32 %v277, 0.5
    %v297 = vmul.f32 %v280, 0.5
    %v298 = vmul.f32 %v283, 0.5
    %v299 = vmul.f32 %v286, 0.5
    %v300 = vmul.f32 %v253, %v253
    %v301 = vmul.f32 %v256, %v256
    %v302 = vmul.f32 %v259, %v259
    %v303 = vmul.f32 %v262, %v262
    %v304 = vmul.f32 %v265, %v265
    %v305 = vmul.f32 %v268, %v268
    %v306 = vmul.f32 %v271, %v271
    %v307 = vmul.f32 %v274, %v274
    %v308 = vmul.f32 %v277, %v277
    %v309 = vmul.f32 %v280, %v280
    %v310 = vmul.f32 %v283, %v283
    %v311 = vmul.f32 %v286, %v286
    %v312 = vmul.f32 %v300, %v253
    %v313 = vmul.f32 %v301, %v256
    %v314 = vmul.f32 %v302, %v259
    %v315 = vmul.f32 %v303, %v262
    %v316 = vmul.f32 %v304, %v265
    %v317 = vmul.f32 %v305, %v268
    %v318 = vmul.f32 %v306, %v271
    %v319 = vmul.f32 %v307, %v274
    %v320 = vmul.f32 %v308, %v277
    %v321 = vmul.f32 %v309, %v280
    %v322 = vmul.f32 %v310, %v283
    %v323 = vmul.f32 %v311, %v286
    %v324 = vmul.f32 %v312, 0.044715
    %v325 = vmul.f32 %v313, 0.044715
    %v326 = vmul.f32 %v314, 0.044715
    %v327 = vmul.f32 %v315, 0.044715
    %v328 = vmul.f32 %v316, 0.044715
    %v329 = vmul.f32 %v317, 0.044715
    %v330 = vmul.f32 %v318, 0.044715
    %v331 = vmul.f32 %v319, 0.044715
    %v332 = vmul.f32 %v320, 0.044715
    %v333 = vmul.f32 %v321, 0.044715
    %v334 = vmul.f32 %v322, 0.044715
    %v335 = vmul.f32 %v323, 0.044715
    %v336 = vadd.f32 %v253, %v324
    %v337 = vadd.f32 %v256, %v325
    %v338 = vadd.f32 %v259, %v326
    %v339 = vadd.f32 %v262, %v327
    %v340 = vadd.f32 %v265, %v328
    %v341 = vadd.f32 %v268, %v329
    %v342 = vadd.f32 %v271, %v330
    %v343 = vadd.f32 %v274, %v331
    %v344 = vadd.f32 %v277, %v332
    %v345 = vadd.f32 %v280, %v333
    %v346 = vadd.f32 %v283, %v334
    %v347 = vadd.f32 %v286, %v335
    %v348 = vmul.f32 %v336, 0.7978846
    %v349 = vmul.f32 %v337, 0.7978846
    %v350 = vmul.f32 %v338, 0.7978846
    %v351 = vmul.f32 %v339, 0.7978846
    %v352 = vmul.f32 %v340, 0.7978846
    %v353 = vmul.f32 %v341, 0.7978846
    %v354 = vmul.f32 %v342, 0.7978846
    %v355 = vmul.f32 %v343, 0.7978846
    %v356 = vmul.f32 %v344, 0.7978846
    %v357 = vmul.f32 %v345, 0.7978846
    %v358 = vmul.f32 %v346, 0.7978846
    %v359 = vmul.f32 %v347, 0.7978846
    %v360 = vtanh.pop %v348
    %v361 = vtanh.pop %v349
    %v362 = vtanh.pop %v350
    %v363 = vtanh.pop %v351
    %v364 = vtanh.pop %v352
    %v365 = vtanh.pop %v353
    %v366 = vtanh.pop %v354
    %v367 = vtanh.pop %v355
    %v368 = vtanh.pop %v356
    %v369 = vtanh.pop %v357
    %v370 = vtanh.pop %v358
    %v371 = vtanh.pop %v359
    %v372 = vadd.f32 %v360, 1.0
    %v373 = vadd.f32 %v361, 1.0
    %v374 = vadd.f32 %v362, 1.0
    %v375 = vadd.f32 %v363, 1.0
    %v376 = vadd.f32 %v364, 1.0
    %v377 = vadd.f32 %v365, 1.0
    %v378 = vadd.f32 %v366, 1.0
    %v379 = vadd.f32 %v367, 1.0
    %v380 = vadd.f32 %v368, 1.0
    %v381 = vadd.f32 %v369, 1.0
    %v382 = vadd.f32 %v370, 1.0
    %v383 = vadd.f32 %v371, 1.0
    %v384 = vmul.f32 %v288, %v372
    %v385 = vmul.f32 %v289, %v373
    %v386 = vmul.f32 %v290, %v374
    %v387 = vmul.f32 %v291, %v375
    %v388 = vmul.f32 %v292, %v376
    %v389 = vmul.f32 %v293, %v377
    %v390 = vmul.f32 %v294, %v378
    %v391 = vmul.f32 %v295, %v379
    %v392 = vmul.f32 %v296, %v380
    %v393 = vmul.f32 %v297, %v381
    %v394 = vmul.f32 %v298, %v382
    %v395 = vmul.f32 %v299, %v383
    %v396 = vxor.u32 %v390, 2147483648
    %v397 = vxor.u32 %v391, 2147483648
    %v398 = vmul.f32 %v396, 1.442695
    %v399 = vpow.pop %v398
    %v400 = vmul.f32 %v397, 1.442695
    %v401 = vpow.pop %v400
    %v402 = vadd.f32 %v399, 1.0
    %v403 = vadd.f32 %v401, 1.0
    %v404 = vrcp.pop %v402
    %v405 = vmul.f32 %v402, %v404
    %v406 = vsub.f32 1.0, %v405
    %v407 = vmul.f32 %v404, %v406
    %v408 = vadd.f32 %v404, %v407
    %vm409 = vweird.f32 %v402
    %vm410 = vweird.f32 %v404
    %vm411 = vmor %vm409, %vm410
    %v412 = vsel %vm411, %v404, %v408
    %v413 = vand.u32 2147483647, %v402
    %vm414 = vcmp.eq.f32.partialorder %v413, 8.507059e+37
    %v415 = vand.u32 %v402, 2147483648
    %v416 = vor.u32 1.1754944e-38, %v415
    %v417 = vsel %vm414, %v416, %v412
    %v418 = vmul.f32 1.0, %v417
    %v419 = vrcp.pop %v403
    %v420 = vmul.f32 %v403, %v419
    %v421 = vsub.f32 1.0, %v420
    %v422 = vmul.f32 %v419, %v421
    %v423 = vadd.f32 %v419, %v422
    %vm424 = vweird.f32 %v403
    %vm425 = vweird.f32 %v419
    %vm426 = vmor %vm424, %vm425
    %v427 = vsel %vm426, %v419, %v423
    %v428 = vand.u32 2147483647, %v403
    %vm429 = vcmp.eq.f32.partialorder %v428, 8.507059e+37
    %v430 = vand.u32 %v403, 2147483648
    %v431 = vor.u32 1.1754944e-38, %v430
    %v432 = vsel %vm429, %v431, %v427
    %v433 = vmul.f32 1.0, %v432
    %v434 = vsub.f32 0.0, %v384
    %v435 = vsub.f32 0.0, %v385
    %v436 = vmul.f32 %v418, %v434
    %v437 = vmul.f32 %v433, %v435
    %v438 = vmax.f32 %v436, 0.0
    %v439 = vmax.f32 %v437, 0.0
    %v440 = vld [vmem:[%s3] sm:$0xff]
    %v441 = vld [vmem:[%s3 + $0x8] sm:$0xff]
    %v442 = vld [vmem:[%s3 + $0x10] sm:$0xff]
    %v443 = vld [vmem:[%s3 + $0x18] sm:$0xff]
    %v444 = vld [vmem:[%s3 + $0x20] sm:$0xff]
    %v445 = vld [vmem:[%s3 + $0x28] sm:$0xff]
    %vm446 = vcmask 130048
    %v448 = vsel %vm446, %v440, 0
    %v451 = vsel %vm446, %v441, 0
    %v454 = vsel %vm446, %v442, 0
    %v457 = vsel %vm446, %v443, 0
    %v460 = vsel %vm446, %v444, 0
    %v463 = vsel %vm446, %v445, 0
    %465 = vmatpush.msra.mxu0 0.0
    %466 = vmatpush.msra.mxu0 0.0
    %467 = vmatpush.msra.mxu0 0.0
    %468 = vmatpush.msra.mxu0 0.0
    %469 = vmatpush.msra.mxu0 0.0
    %470 = vmatpush.msra.mxu0 0.0
    %471 = vmatpush.msra.mxu0 0.0
    %472 = vmatpush.msra.mxu0 0.0
    %473 = vmatpush.msra.mxu0 0.0
    %474 = vmatpush.msra.mxu0 0.0
    %475 = vmatpush.msra.mxu0 0.0
    %476 = vmatpush.msra.mxu0 0.0
    %477 = vmatpush.msra.mxu0 0.0
    %478 = vmatpush.msra.mxu0 0.0
    %479 = vmatpush.msra.mxu0 %v439
    %480 = vmatpush.msra.mxu0 %v438
    %481 = vmatmul.f32.gmra.mxu0 %v448
    %v482 = vpop.f32.mrf.mxu0
    %v483 = vadd.f32 %v35, %v482
    %484 = vmatmul.f32.gmra.mxu0 %v451
    %v485 = vpop.f32.mrf.mxu0
    %v486 = vadd.f32 %v40, %v485
    %487 = vmatmul.f32.gmra.mxu0 %v454
    %v488 = vpop.f32.mrf.mxu0
    %v489 = vadd.f32 %v45, %v488
    %490 = vmatmul.f32.gmra.mxu0 %v457
    %v491 = vpop.f32.mrf.mxu0
    %v492 = vadd.f32 %v50, %v491
    %493 = vmatmul.f32.gmra.mxu0 %v460
    %v494 = vpop.f32.mrf.mxu0
    %v495 = vadd.f32 %v55, %v494
    %496 = vmatmul.f32.gmra.mxu0 %v463
    %v497 = vpop.f32.mrf.mxu0
    %v498 = vadd.f32 %v60, %v497
    %499 = vdwg.mxu0
    %v500 = vmul.f32 %v483, 0.5
    %v501 = vmul.f32 %v486, 0.5
    %v502 = vmul.f32 %v489, 0.5
    %v503 = vmul.f32 %v492, 0.5
    %v504 = vmul.f32 %v495, 0.5
    %v505 = vmul.f32 %v498, 0.5
    %v506 = vmul.f32 %v483, %v483
    %v507 = vmul.f32 %v486, %v486
    %v508 = vmul.f32 %v489, %v489
    %v509 = vmul.f32 %v492, %v492
    %v510 = vmul.f32 %v495, %v495
    %v511 = vmul.f32 %v498, %v498
    %v512 = vmul.f32 %v506, %v483
    %v513 = vmul.f32 %v507, %v486
    %v514 = vmul.f32 %v508, %v489
    %v515 = vmul.f32 %v509, %v492
    %v516 = vmul.f32 %v510, %v495
    %v517 = vmul.f32 %v511, %v498
    %v518 = vmul.f32 %v512, 0.044715
    %v519 = vmul.f32 %v513, 0.044715
    %v520 = vmul.f32 %v514, 0.044715
    %v521 = vmul.f32 %v515, 0.044715
    %v522 = vmul.f32 %v516, 0.044715
    %v523 = vmul.f32 %v517, 0.044715
    %v524 = vadd.f32 %v483, %v518
    %v525 = vadd.f32 %v486, %v519
    %v526 = vadd.f32 %v489, %v520
    %v527 = vadd.f32 %v492, %v521
    %v528 = vadd.f32 %v495, %v522
    %v529 = vadd.f32 %v498, %v523
    %v530 = vmul.f32 %v524, 0.7978846
    %v531 = vmul.f32 %v525, 0.7978846
    %v532 = vmul.f32 %v526, 0.7978846
    %v533 = vmul.f32 %v527, 0.7978846
    %v534 = vmul.f32 %v528, 0.7978846
    %v535 = vmul.f32 %v529, 0.7978846
    %v536 = vtanh.pop %v530
    %v537 = vtanh.pop %v531
    %v538 = vtanh.pop %v532
    %v539 = vtanh.pop %v533
    %v540 = vtanh.pop %v534
    %v541 = vtanh.pop %v535
    %v542 = vadd.f32 %v536, 1.0
    %v543 = vadd.f32 %v537, 1.0
    %v544 = vadd.f32 %v538, 1.0
    %v545 = vadd.f32 %v539, 1.0
    %v546 = vadd.f32 %v540, 1.0
    %v547 = vadd.f32 %v541, 1.0
    %v548 = vmul.f32 %v500, %v542
    %v549 = vmul.f32 %v501, %v543
    %v550 = vmul.f32 %v502, %v544
    %v551 = vmul.f32 %v503, %v545
    %v552 = vmul.f32 %v504, %v546
    %v553 = vmul.f32 %v505, %v547
    %v554 = vsub.f32 0.0, %v552
    %v555 = vsub.f32 0.0, %v553
    %v556 = vadd.f32 %v386, %v554
    %v557 = vadd.f32 %v387, %v555
    %v558 = vadd.f32 %v548, %v392
    %v559 = vadd.f32 %v549, %v393
    %v560 = vxor.u32 %v558, 2147483648
    %v561 = vxor.u32 %v559, 2147483648
    %v562 = vmul.f32 %v560, 1.442695
    %v563 = vpow.pop %v562
    %v564 = vmul.f32 %v561, 1.442695
    %v565 = vpow.pop %v564
    %v566 = vadd.f32 %v563, 1.0
    %v567 = vadd.f32 %v565, 1.0
    %v568 = vrcp.pop %v566
    %v569 = vmul.f32 %v566, %v568
    %v570 = vsub.f32 1.0, %v569
    %v571 = vmul.f32 %v568, %v570
    %v572 = vadd.f32 %v568, %v571
    %vm573 = vweird.f32 %v566
    %vm574 = vweird.f32 %v568
    %vm575 = vmor %vm573, %vm574
    %v576 = vsel %vm575, %v568, %v572
    %v577 = vand.u32 2147483647, %v566
    %vm578 = vcmp.eq.f32.partialorder %v577, 8.507059e+37
    %v579 = vand.u32 %v566, 2147483648
    %v580 = vor.u32 1.1754944e-38, %v579
    %v581 = vsel %vm578, %v580, %v576
    %v582 = vmul.f32 1.0, %v581
    %v583 = vrcp.pop %v567
    %v584 = vmul.f32 %v567, %v583
    %v585 = vsub.f32 1.0, %v584
    %v586 = vmul.f32 %v583, %v585
    %v587 = vadd.f32 %v583, %v586
    %vm588 = vweird.f32 %v567
    %vm589 = vweird.f32 %v583
    %vm590 = vmor %vm588, %vm589
    %v591 = vsel %vm590, %v583, %v587
    %v592 = vand.u32 2147483647, %v567
    %vm593 = vcmp.eq.f32.partialorder %v592, 8.507059e+37
    %v594 = vand.u32 %v567, 2147483648
    %v595 = vor.u32 1.1754944e-38, %v594
    %v596 = vsel %vm593, %v595, %v591
    %v597 = vmul.f32 1.0, %v596
    %v598 = vadd.f32 %v550, %v394
    %v599 = vadd.f32 %v551, %v395
    %v600 = vxor.u32 %v598, 2147483648
    %v601 = vxor.u32 %v599, 2147483648
    %v602 = vmul.f32 %v600, 1.442695
    %v603 = vpow.pop %v602
    %v604 = vmul.f32 %v601, 1.442695
    %v605 = vpow.pop %v604
    %v606 = vadd.f32 %v603, 1.0
    %v607 = vadd.f32 %v605, 1.0
    %v608 = vrcp.pop %v606
    %v609 = vmul.f32 %v606, %v608
    %v610 = vsub.f32 1.0, %v609
    %v611 = vmul.f32 %v608, %v610
    %v612 = vadd.f32 %v608, %v611
    %vm613 = vweird.f32 %v606
    %vm614 = vweird.f32 %v608
    %vm615 = vmor %vm613, %vm614
    %v616 = vsel %vm615, %v608, %v612
    %v617 = vand.u32 2147483647, %v606
    %vm618 = vcmp.eq.f32.partialorder %v617, 8.507059e+37
    %v619 = vand.u32 %v606, 2147483648
    %v620 = vor.u32 1.1754944e-38, %v619
    %v621 = vsel %vm618, %v620, %v616
    %v622 = vmul.f32 1.0, %v621
    %v623 = vrcp.pop %v607
    %v624 = vmul.f32 %v607, %v623
    %v625 = vsub.f32 1.0, %v624
    %v626 = vmul.f32 %v623, %v625
    %v627 = vadd.f32 %v623, %v626
    %vm628 = vweird.f32 %v607
    %vm629 = vweird.f32 %v623
    %vm630 = vmor %vm628, %vm629
    %v631 = vsel %vm630, %v623, %v627
    %v632 = vand.u32 2147483647, %v607
    %vm633 = vcmp.eq.f32.partialorder %v632, 8.507059e+37
    %v634 = vand.u32 %v607, 2147483648
    %v635 = vor.u32 1.1754944e-38, %v634
    %v636 = vsel %vm633, %v635, %v631
    %v637 = vmul.f32 1.0, %v636
    %v638 = vmul.f32 %v436, %v582
    %v639 = vmul.f32 %v437, %v597
    %v640 = vmul.f32 %v556, %v622
    %v641 = vmul.f32 %v557, %v637
    %v642 = vadd.f32 %v638, %v640
    %v643 = vadd.f32 %v639, %v641
    %v644 = vmax.f32 %v642, 0.0
    %v645 = vmax.f32 %v643, 0.0
    %v646 = vld [vmem:[%s5] sm:$0xff]
    %v647 = vld [vmem:[%s5 + $0x8] sm:$0xff]
    %v648 = vld [vmem:[%s5 + $0x10] sm:$0xff]
    %v649 = vld [vmem:[%s5 + $0x18] sm:$0xff]
    %v650 = vld [vmem:[%s5 + $0x20] sm:$0xff]
    %v651 = vld [vmem:[%s5 + $0x28] sm:$0xff]
    %v653 = vsel %vm446, %v646, 0
    %v656 = vsel %vm446, %v647, 0
    %v659 = vsel %vm446, %v648, 0
    %v662 = vsel %vm446, %v649, 0
    %v665 = vsel %vm446, %v650, 0
    %v668 = vsel %vm446, %v651, 0
    %670 = vmatpush.msra.mxu0 0.0
    %671 = vmatpush.msra.mxu0 0.0
    %672 = vmatpush.msra.mxu0 0.0
    %673 = vmatpush.msra.mxu0 0.0
    %674 = vmatpush.msra.mxu0 0.0
    %675 = vmatpush.msra.mxu0 0.0
    %676 = vmatpush.msra.mxu0 0.0
    %677 = vmatpush.msra.mxu0 0.0
    %678 = vmatpush.msra.mxu0 0.0
    %679 = vmatpush.msra.mxu0 0.0
    %680 = vmatpush.msra.mxu0 0.0
    %681 = vmatpush.msra.mxu0 0.0
    %682 = vmatpush.msra.mxu0 0.0
    %683 = vmatpush.msra.mxu0 0.0
    %684 = vmatpush.msra.mxu0 %v645
    %685 = vmatpush.msra.mxu0 %v644
    %686 = vmatmul.f32.gmra.mxu0 %v653
    %v687 = vpop.f32.mrf.mxu0
    %v688 = vadd.f32 %v71, %v687
    %689 = vmatmul.f32.gmra.mxu0 %v656
    %v690 = vpop.f32.mrf.mxu0
    %v691 = vadd.f32 %v76, %v690
    %692 = vmatmul.f32.gmra.mxu0 %v659
    %v693 = vpop.f32.mrf.mxu0
    %v694 = vadd.f32 %v81, %v693
    %695 = vmatmul.f32.gmra.mxu0 %v662
    %v696 = vpop.f32.mrf.mxu0
    %v697 = vadd.f32 %v86, %v696
    %698 = vmatmul.f32.gmra.mxu0 %v665
    %v699 = vpop.f32.mrf.mxu0
    %v700 = vadd.f32 %v91, %v699
    %701 = vmatmul.f32.gmra.mxu0 %v668
    %v702 = vpop.f32.mrf.mxu0
    %v703 = vadd.f32 %v96, %v702
    %704 = vdwg.mxu0
    %v705 = vmul.f32 %v688, 0.5
    %v706 = vmul.f32 %v691, 0.5
    %v707 = vmul.f32 %v694, 0.5
    %v708 = vmul.f32 %v697, 0.5
    %v709 = vmul.f32 %v700, 0.5
    %v710 = vmul.f32 %v703, 0.5
    %v711 = vmul.f32 %v688, %v688
    %v712 = vmul.f32 %v691, %v691
    %v713 = vmul.f32 %v694, %v694
    %v714 = vmul.f32 %v697, %v697
    %v715 = vmul.f32 %v700, %v700
    %v716 = vmul.f32 %v703, %v703
    %v717 = vmul.f32 %v711, %v688
    %v718 = vmul.f32 %v712, %v691
    %v719 = vmul.f32 %v713, %v694
    %v720 = vmul.f32 %v714, %v697
    %v721 = vmul.f32 %v715, %v700
    %v722 = vmul.f32 %v716, %v703
    %v723 = vmul.f32 %v717, 0.044715
    %v724 = vmul.f32 %v718, 0.044715
    %v725 = vmul.f32 %v719, 0.044715
    %v726 = vmul.f32 %v720, 0.044715
    %v727 = vmul.f32 %v721, 0.044715
    %v728 = vmul.f32 %v722, 0.044715
    %v729 = vadd.f32 %v688, %v723
    %v730 = vadd.f32 %v691, %v724
    %v731 = vadd.f32 %v694, %v725
    %v732 = vadd.f32 %v697, %v726
    %v733 = vadd.f32 %v700, %v727
    %v734 = vadd.f32 %v703, %v728
    %v735 = vmul.f32 %v729, 0.7978846
    %v736 = vmul.f32 %v730, 0.7978846
    %v737 = vmul.f32 %v731, 0.7978846
    %v738 = vmul.f32 %v732, 0.7978846
    %v739 = vmul.f32 %v733, 0.7978846
    %v740 = vmul.f32 %v734, 0.7978846
    %v741 = vtanh.pop %v735
    %v742 = vtanh.pop %v736
    %v743 = vtanh.pop %v737
    %v744 = vtanh.pop %v738
    %v745 = vtanh.pop %v739
    %v746 = vtanh.pop %v740
    %v747 = vadd.f32 %v741, 1.0
    %v748 = vadd.f32 %v742, 1.0
    %v749 = vadd.f32 %v743, 1.0
    %v750 = vadd.f32 %v744, 1.0
    %v751 = vadd.f32 %v745, 1.0
    %v752 = vadd.f32 %v746, 1.0
    %v753 = vmul.f32 %v705, %v747
    %v754 = vmul.f32 %v706, %v748
    %v755 = vmul.f32 %v707, %v749
    %v756 = vmul.f32 %v708, %v750
    %v757 = vmul.f32 %v709, %v751
    %v758 = vmul.f32 %v710, %v752
    %v759 = vadd.f32 %v384, %v644
    %v760 = vadd.f32 %v385, %v645
    %v761 = vsub.f32 %v759, %v757
    %v762 = vsub.f32 %v760, %v758
    %v763 = vadd.f32 %v753, %v388
    %v764 = vadd.f32 %v754, %v389
    %v765 = vxor.u32 %v763, 2147483648
    %v766 = vxor.u32 %v764, 2147483648
    %v767 = vmul.f32 %v765, 1.442695
    %v768 = vpow.pop %v767
    %v769 = vmul.f32 %v766, 1.442695
    %v770 = vpow.pop %v769
    %v771 = vadd.f32 %v768, 1.0
    %v772 = vadd.f32 %v770, 1.0
    %v773 = vrcp.pop %v771
    %v774 = vmul.f32 %v771, %v773
    %v775 = vsub.f32 1.0, %v774
    %v776 = vmul.f32 %v773, %v775
    %v777 = vadd.f32 %v773, %v776
    %vm778 = vweird.f32 %v771
    %vm779 = vweird.f32 %v773
    %vm780 = vmor %vm778, %vm779
    %v781 = vsel %vm780, %v773, %v777
    %v782 = vand.u32 2147483647, %v771
    %vm783 = vcmp.eq.f32.partialorder %v782, 8.507059e+37
    %v784 = vand.u32 %v771, 2147483648
    %v785 = vor.u32 1.1754944e-38, %v784
    %v786 = vsel %vm783, %v785, %v781
    %v787 = vmul.f32 1.0, %v786
    %v788 = vrcp.pop %v772
    %v789 = vmul.f32 %v772, %v788
    %v790 = vsub.f32 1.0, %v789
    %v791 = vmul.f32 %v788, %v790
    %v792 = vadd.f32 %v788, %v791
    %vm793 = vweird.f32 %v772
    %vm794 = vweird.f32 %v788
    %vm795 = vmor %vm793, %vm794
    %v796 = vsel %vm795, %v788, %v792
    %v797 = vand.u32 2147483647, %v772
    %vm798 = vcmp.eq.f32.partialorder %v797, 8.507059e+37
    %v799 = vand.u32 %v772, 2147483648
    %v800 = vor.u32 1.1754944e-38, %v799
    %v801 = vsel %vm798, %v800, %v796
    %v802 = vmul.f32 1.0, %v801
    %v803 = vadd.f32 %v755, %v390
    %v804 = vadd.f32 %v756, %v391
    %v805 = vxor.u32 %v803, 2147483648
    %v806 = vxor.u32 %v804, 2147483648
    %v807 = vmul.f32 %v805, 1.442695
    %v808 = vpow.pop %v807
    %v809 = vmul.f32 %v806, 1.442695
    %v810 = vpow.pop %v809
    %v811 = vadd.f32 %v808, 1.0
    %v812 = vadd.f32 %v810, 1.0
    %v813 = vrcp.pop %v811
    %v814 = vmul.f32 %v811, %v813
    %v815 = vsub.f32 1.0, %v814
    %v816 = vmul.f32 %v813, %v815
    %v817 = vadd.f32 %v813, %v816
    %vm818 = vweird.f32 %v811
    %vm819 = vweird.f32 %v813
    %vm820 = vmor %vm818, %vm819
    %v821 = vsel %vm820, %v813, %v817
    %v822 = vand.u32 2147483647, %v811
    %vm823 = vcmp.eq.f32.partialorder %v822, 8.507059e+37
    %v824 = vand.u32 %v811, 2147483648
    %v825 = vor.u32 1.1754944e-38, %v824
    %v826 = vsel %vm823, %v825, %v821
    %v827 = vmul.f32 1.0, %v826
    %v828 = vrcp.pop %v812
    %v829 = vmul.f32 %v812, %v828
    %v830 = vsub.f32 1.0, %v829
    %v831 = vmul.f32 %v828, %v830
    %v832 = vadd.f32 %v828, %v831
    %vm833 = vweird.f32 %v812
    %vm834 = vweird.f32 %v828
    %vm835 = vmor %vm833, %vm834
    %v836 = vsel %vm835, %v828, %v832
    %v837 = vand.u32 2147483647, %v812
    %vm838 = vcmp.eq.f32.partialorder %v837, 8.507059e+37
    %v839 = vand.u32 %v812, 2147483648
    %v840 = vor.u32 1.1754944e-38, %v839
    %v841 = vsel %vm838, %v840, %v836
    %v842 = vmul.f32 1.0, %v841
    %v843 = vmul.f32 %v642, %v787
    %v844 = vmul.f32 %v643, %v802
    %v845 = vmul.f32 %v761, %v827
    %v846 = vmul.f32 %v762, %v842
    %v847 = vadd.f32 %v843, %v845
    %v848 = vadd.f32 %v844, %v846
    %v849 = vmax.f32 %v847, 0.0
    %v850 = vmax.f32 %v848, 0.0
    %851 = vmatpush.msra.mxu0 0.0
    %852 = vmatpush.msra.mxu0 0.0
    %853 = vmatpush.msra.mxu0 0.0
    %854 = vmatpush.msra.mxu0 0.0
    %855 = vmatpush.msra.mxu0 0.0
    %856 = vmatpush.msra.mxu0 0.0
    %857 = vmatpush.msra.mxu0 0.0
    %858 = vmatpush.msra.mxu0 0.0
    %859 = vmatpush.msra.mxu0 0.0
    %860 = vmatpush.msra.mxu0 0.0
    %861 = vmatpush.msra.mxu0 0.0
    %862 = vmatpush.msra.mxu0 0.0
    %863 = vmatpush.msra.mxu0 0.0
    %864 = vmatpush.msra.mxu0 0.0
    %865 = vmatpush.msra.mxu0 %v850
    %866 = vmatpush.msra.mxu0 %v849
    %867 = vmatmul.f32.gmra.mxu0 %v448
    %v868 = vpop.f32.mrf.mxu0
    %v869 = vadd.f32 %v35, %v868
    %870 = vmatmul.f32.gmra.mxu0 %v451
    %v871 = vpop.f32.mrf.mxu0
    %v872 = vadd.f32 %v40, %v871
    %873 = vmatmul.f32.gmra.mxu0 %v454
    %v874 = vpop.f32.mrf.mxu0
    %v875 = vadd.f32 %v45, %v874
    %876 = vmatmul.f32.gmra.mxu0 %v457
    %v877 = vpop.f32.mrf.mxu0
    %v878 = vadd.f32 %v50, %v877
    %879 = vmatmul.f32.gmra.mxu0 %v460
    %v880 = vpop.f32.mrf.mxu0
    %v881 = vadd.f32 %v55, %v880
    %882 = vmatmul.f32.gmra.mxu0 %v463
    %v883 = vpop.f32.mrf.mxu0
    %v884 = vadd.f32 %v60, %v883
    %885 = vdwg.mxu0
    %v886 = vmul.f32 %v869, 0.5
    %v887 = vmul.f32 %v872, 0.5
    %v888 = vmul.f32 %v875, 0.5
    %v889 = vmul.f32 %v878, 0.5
    %v890 = vmul.f32 %v881, 0.5
    %v891 = vmul.f32 %v884, 0.5
    %v892 = vmul.f32 %v869, %v869
    %v893 = vmul.f32 %v872, %v872
    %v894 = vmul.f32 %v875, %v875
    %v895 = vmul.f32 %v878, %v878
    %v896 = vmul.f32 %v881, %v881
    %v897 = vmul.f32 %v884, %v884
    %v898 = vmul.f32 %v892, %v869
    %v899 = vmul.f32 %v893, %v872
    %v900 = vmul.f32 %v894, %v875
    %v901 = vmul.f32 %v895, %v878
    %v902 = vmul.f32 %v896, %v881
    %v903 = vmul.f32 %v897, %v884
    %v904 = vmul.f32 %v898, 0.044715
    %v905 = vmul.f32 %v899, 0.044715
    %v906 = vmul.f32 %v900, 0.044715
    %v907 = vmul.f32 %v901, 0.044715
    %v908 = vmul.f32 %v902, 0.044715
    %v909 = vmul.f32 %v903, 0.044715
    %v910 = vadd.f32 %v869, %v904
    %v911 = vadd.f32 %v872, %v905
    %v912 = vadd.f32 %v875, %v906
    %v913 = vadd.f32 %v878, %v907
    %v914 = vadd.f32 %v881, %v908
    %v915 = vadd.f32 %v884, %v909
    %v916 = vmul.f32 %v910, 0.7978846
    %v917 = vmul.f32 %v911, 0.7978846
    %v918 = vmul.f32 %v912, 0.7978846
    %v919 = vmul.f32 %v913, 0.7978846
    %v920 = vmul.f32 %v914, 0.7978846
    %v921 = vmul.f32 %v915, 0.7978846
    %v922 = vtanh.pop %v916
    %v923 = vtanh.pop %v917
    %v924 = vtanh.pop %v918
    %v925 = vtanh.pop %v919
    %v926 = vtanh.pop %v920
    %v927 = vtanh.pop %v921
    %v928 = vadd.f32 %v922, 1.0
    %v929 = vadd.f32 %v923, 1.0
    %v930 = vadd.f32 %v924, 1.0
    %v931 = vadd.f32 %v925, 1.0
    %v932 = vadd.f32 %v926, 1.0
    %v933 = vadd.f32 %v927, 1.0
    %v934 = vmul.f32 %v886, %v928
    %v935 = vmul.f32 %v887, %v929
    %v936 = vmul.f32 %v888, %v930
    %v937 = vmul.f32 %v889, %v931
    %v938 = vmul.f32 %v890, %v932
    %v939 = vmul.f32 %v891, %v933
    %v940 = vsub.f32 %v644, %v938
    %v941 = vsub.f32 %v645, %v939
    %v942 = vadd.f32 %v386, %v940
    %v943 = vadd.f32 %v387, %v941
    %v944 = vadd.f32 %v934, %v392
    %v945 = vadd.f32 %v935, %v393
    %v946 = vxor.u32 %v944, 2147483648
    %v947 = vxor.u32 %v945, 2147483648
    %v948 = vmul.f32 %v946, 1.442695
    %v949 = vpow.pop %v948
    %v950 = vmul.f32 %v947, 1.442695
    %v951 = vpow.pop %v950
    %v952 = vadd.f32 %v949, 1.0
    %v953 = vadd.f32 %v951, 1.0
    %v954 = vrcp.pop %v952
    %v955 = vmul.f32 %v952, %v954
    %v956 = vsub.f32 1.0, %v955
    %v957 = vmul.f32 %v954, %v956
    %v958 = vadd.f32 %v954, %v957
    %vm959 = vweird.f32 %v952
    %vm960 = vweird.f32 %v954
    %vm961 = vmor %vm959, %vm960
    %v962 = vsel %vm961, %v954, %v958
    %v963 = vand.u32 2147483647, %v952
    %vm964 = vcmp.eq.f32.partialorder %v963, 8.507059e+37
    %v965 = vand.u32 %v952, 2147483648
    %v966 = vor.u32 1.1754944e-38, %v965
    %v967 = vsel %vm964, %v966, %v962
    %v968 = vmul.f32 1.0, %v967
    %v969 = vrcp.pop %v953
    %v970 = vmul.f32 %v953, %v969
    %v971 = vsub.f32 1.0, %v970
    %v972 = vmul.f32 %v969, %v971
    %v973 = vadd.f32 %v969, %v972
    %vm974 = vweird.f32 %v953
    %vm975 = vweird.f32 %v969
    %vm976 = vmor %vm974, %vm975
    %v977 = vsel %vm976, %v969, %v973
    %v978 = vand.u32 2147483647, %v953
    %vm979 = vcmp.eq.f32.partialorder %v978, 8.507059e+37
    %v980 = vand.u32 %v953, 2147483648
    %v981 = vor.u32 1.1754944e-38, %v980
    %v982 = vsel %vm979, %v981, %v977
    %v983 = vmul.f32 1.0, %v982
    %v984 = vadd.f32 %v936, %v394
    %v985 = vadd.f32 %v937, %v395
    %v986 = vxor.u32 %v984, 2147483648
    %v987 = vxor.u32 %v985, 2147483648
    %v988 = vmul.f32 %v986, 1.442695
    %v989 = vpow.pop %v988
    %v990 = vmul.f32 %v987, 1.442695
    %v991 = vpow.pop %v990
    %v992 = vadd.f32 %v989, 1.0
    %v993 = vadd.f32 %v991, 1.0
    %v994 = vrcp.pop %v992
    %v995 = vmul.f32 %v992, %v994
    %v996 = vsub.f32 1.0, %v995
    %v997 = vmul.f32 %v994, %v996
    %v998 = vadd.f32 %v994, %v997
    %vm999 = vweird.f32 %v992
    %vm1000 = vweird.f32 %v994
    %vm1001 = vmor %vm999, %vm1000
    %v1002 = vsel %vm1001, %v994, %v998
    %v1003 = vand.u32 2147483647, %v992
    %vm1004 = vcmp.eq.f32.partialorder %v1003, 8.507059e+37
    %v1005 = vand.u32 %v992, 2147483648
    %v1006 = vor.u32 1.1754944e-38, %v1005
    %v1007 = vsel %vm1004, %v1006, %v1002
    %v1008 = vmul.f32 1.0, %v1007
    %v1009 = vrcp.pop %v993
    %v1010 = vmul.f32 %v993, %v1009
    %v1011 = vsub.f32 1.0, %v1010
    %v1012 = vmul.f32 %v1009, %v1011
    %v1013 = vadd.f32 %v1009, %v1012
    %vm1014 = vweird.f32 %v993
    %vm1015 = vweird.f32 %v1009
    %vm1016 = vmor %vm1014, %vm1015
    %v1017 = vsel %vm1016, %v1009, %v1013
    %v1018 = vand.u32 2147483647, %v993
    %vm1019 = vcmp.eq.f32.partialorder %v1018, 8.507059e+37
    %v1020 = vand.u32 %v993, 2147483648
    %v1021 = vor.u32 1.1754944e-38, %v1020
    %v1022 = vsel %vm1019, %v1021, %v1017
    %v1023 = vmul.f32 1.0, %v1022
    %v1024 = vmul.f32 %v847, %v968
    %v1025 = vmul.f32 %v848, %v983
    %v1026 = vmul.f32 %v942, %v1008
    %v1027 = vmul.f32 %v943, %v1023
    %v1028 = vadd.f32 %v1024, %v1026
    %v1029 = vadd.f32 %v1025, %v1027
    %v1030 = vmax.f32 %v1028, 0.0
    %v1031 = vmax.f32 %v1029, 0.0
    %1032 = vmatpush.msra.mxu0 0.0
    %1033 = vmatpush.msra.mxu0 0.0
    %1034 = vmatpush.msra.mxu0 0.0
    %1035 = vmatpush.msra.mxu0 0.0
    %1036 = vmatpush.msra.mxu0 0.0
    %1037 = vmatpush.msra.mxu0 0.0
    %1038 = vmatpush.msra.mxu0 0.0
    %1039 = vmatpush.msra.mxu0 0.0
    %1040 = vmatpush.msra.mxu0 0.0
    %1041 = vmatpush.msra.mxu0 0.0
    %1042 = vmatpush.msra.mxu0 0.0
    %1043 = vmatpush.msra.mxu0 0.0
    %1044 = vmatpush.msra.mxu0 0.0
    %1045 = vmatpush.msra.mxu0 0.0
    %1046 = vmatpush.msra.mxu0 %v1031
    %1047 = vmatpush.msra.mxu0 %v1030
    %1048 = vmatmul.f32.gmra.mxu0 %v653
    %v1049 = vpop.f32.mrf.mxu0
    %v1050 = vadd.f32 %v71, %v1049
    %1051 = vmatmul.f32.gmra.mxu0 %v656
    %v1052 = vpop.f32.mrf.mxu0
    %v1053 = vadd.f32 %v76, %v1052
    %1054 = vmatmul.f32.gmra.mxu0 %v659
    %v1055 = vpop.f32.mrf.mxu0
    %v1056 = vadd.f32 %v81, %v1055
    %1057 = vmatmul.f32.gmra.mxu0 %v662
    %v1058 = vpop.f32.mrf.mxu0
    %v1059 = vadd.f32 %v86, %v1058
    %1060 = vmatmul.f32.gmra.mxu0 %v665
    %v1061 = vpop.f32.mrf.mxu0
    %v1062 = vadd.f32 %v91, %v1061
    %1063 = vmatmul.f32.gmra.mxu0 %v668
    %v1064 = vpop.f32.mrf.mxu0
    %v1065 = vadd.f32 %v96, %v1064
    %1066 = vdwg.mxu0
    %v1067 = vmul.f32 %v1050, 0.5
    %v1068 = vmul.f32 %v1053, 0.5
    %v1069 = vmul.f32 %v1056, 0.5
    %v1070 = vmul.f32 %v1059, 0.5
    %v1071 = vmul.f32 %v1062, 0.5
    %v1072 = vmul.f32 %v1065, 0.5
    %v1073 = vmul.f32 %v1050, %v1050
    %v1074 = vmul.f32 %v1053, %v1053
    %v1075 = vmul.f32 %v1056, %v1056
    %v1076 = vmul.f32 %v1059, %v1059
    %v1077 = vmul.f32 %v1062, %v1062
    %v1078 = vmul.f32 %v1065, %v1065
    %v1079 = vmul.f32 %v1073, %v1050
    %v1080 = vmul.f32 %v1074, %v1053
    %v1081 = vmul.f32 %v1075, %v1056
    %v1082 = vmul.f32 %v1076, %v1059
    %v1083 = vmul.f32 %v1077, %v1062
    %v1084 = vmul.f32 %v1078, %v1065
    %v1085 = vmul.f32 %v1079, 0.044715
    %v1086 = vmul.f32 %v1080, 0.044715
    %v1087 = vmul.f32 %v1081, 0.044715
    %v1088 = vmul.f32 %v1082, 0.044715
    %v1089 = vmul.f32 %v1083, 0.044715
    %v1090 = vmul.f32 %v1084, 0.044715
    %v1091 = vadd.f32 %v1050, %v1085
    %v1092 = vadd.f32 %v1053, %v1086
    %v1093 = vadd.f32 %v1056, %v1087
    %v1094 = vadd.f32 %v1059, %v1088
    %v1095 = vadd.f32 %v1062, %v1089
    %v1096 = vadd.f32 %v1065, %v1090
    %v1097 = vmul.f32 %v1091, 0.7978846
    %v1098 = vmul.f32 %v1092, 0.7978846
    %v1099 = vmul.f32 %v1093, 0.7978846
    %v1100 = vmul.f32 %v1094, 0.7978846
    %v1101 = vmul.f32 %v1095, 0.7978846
    %v1102 = vmul.f32 %v1096, 0.7978846
    %v1103 = vtanh.pop %v1097
    %v1104 = vtanh.pop %v1098
    %v1105 = vtanh.pop %v1099
    %v1106 = vtanh.pop %v1100
    %v1107 = vtanh.pop %v1101
    %v1108 = vtanh.pop %v1102
    %v1109 = vadd.f32 %v1103, 1.0
    %v1110 = vadd.f32 %v1104, 1.0
    %v1111 = vadd.f32 %v1105, 1.0
    %v1112 = vadd.f32 %v1106, 1.0
    %v1113 = vadd.f32 %v1107, 1.0
    %v1114 = vadd.f32 %v1108, 1.0
    %v1115 = vmul.f32 %v1067, %v1109
    %v1116 = vmul.f32 %v1068, %v1110
    %v1117 = vmul.f32 %v1069, %v1111
    %v1118 = vmul.f32 %v1070, %v1112
    %v1119 = vmul.f32 %v1071, %v1113
    %v1120 = vmul.f32 %v1072, %v1114
    %v1121 = vadd.f32 %v384, %v1030
    %v1122 = vadd.f32 %v385, %v1031
    %v1123 = vsub.f32 %v1121, %v1119
    %v1124 = vsub.f32 %v1122, %v1120
    %v1125 = vadd.f32 %v1115, %v388
    %v1126 = vadd.f32 %v1116, %v389
    %v1127 = vxor.u32 %v1125, 2147483648
    %v1128 = vxor.u32 %v1126, 2147483648
    %v1129 = vmul.f32 %v1127, 1.442695
    %v1130 = vpow.pop %v1129
    %v1131 = vmul.f32 %v1128, 1.442695
    %v1132 = vpow.pop %v1131
    %v1133 = vadd.f32 %v1130, 1.0
    %v1134 = vadd.f32 %v1132, 1.0
    %v1135 = vrcp.pop %v1133
    %v1136 = vmul.f32 %v1133, %v1135
    %v1137 = vsub.f32 1.0, %v1136
    %v1138 = vmul.f32 %v1135, %v1137
    %v1139 = vadd.f32 %v1135, %v1138
    %vm1140 = vweird.f32 %v1133
    %vm1141 = vweird.f32 %v1135
    %vm1142 = vmor %vm1140, %vm1141
    %v1143 = vsel %vm1142, %v1135, %v1139
    %v1144 = vand.u32 2147483647, %v1133
    %vm1145 = vcmp.eq.f32.partialorder %v1144, 8.507059e+37
    %v1146 = vand.u32 %v1133, 2147483648
    %v1147 = vor.u32 1.1754944e-38, %v1146
    %v1148 = vsel %vm1145, %v1147, %v1143
    %v1149 = vmul.f32 1.0, %v1148
    %v1150 = vrcp.pop %v1134
    %v1151 = vmul.f32 %v1134, %v1150
    %v1152 = vsub.f32 1.0, %v1151
    %v1153 = vmul.f32 %v1150, %v1152
    %v1154 = vadd.f32 %v1150, %v1153
    %vm1155 = vweird.f32 %v1134
    %vm1156 = vweird.f32 %v1150
    %vm1157 = vmor %vm1155, %vm1156
    %v1158 = vsel %vm1157, %v1150, %v1154
    %v1159 = vand.u32 2147483647, %v1134
    %vm1160 = vcmp.eq.f32.partialorder %v1159, 8.507059e+37
    %v1161 = vand.u32 %v1134, 2147483648
    %v1162 = vor.u32 1.1754944e-38, %v1161
    %v1163 = vsel %vm1160, %v1162, %v1158
    %v1164 = vmul.f32 1.0, %v1163
    %v1165 = vadd.f32 %v1117, %v390
    %v1166 = vadd.f32 %v1118, %v391
    %v1167 = vxor.u32 %v1165, 2147483648
    %v1168 = vxor.u32 %v1166, 2147483648
    %v1169 = vmul.f32 %v1167, 1.442695
    %v1170 = vpow.pop %v1169
    %v1171 = vmul.f32 %v1168, 1.442695
    %v1172 = vpow.pop %v1171
    %v1173 = vadd.f32 %v1170, 1.0
    %v1174 = vadd.f32 %v1172, 1.0
    %v1175 = vrcp.pop %v1173
    %v1176 = vmul.f32 %v1173, %v1175
    %v1177 = vsub.f32 1.0, %v1176
    %v1178 = vmul.f32 %v1175, %v1177
    %v1179 = vadd.f32 %v1175, %v1178
    %vm1180 = vweird.f32 %v1173
    %vm1181 = vweird.f32 %v1175
    %vm1182 = vmor %vm1180, %vm1181
    %v1183 = vsel %vm1182, %v1175, %v1179
    %v1184 = vand.u32 2147483647, %v1173
    %vm1185 = vcmp.eq.f32.partialorder %v1184, 8.507059e+37
    %v1186 = vand.u32 %v1173, 2147483648
    %v1187 = vor.u32 1.1754944e-38, %v1186
    %v1188 = vsel %vm1185, %v1187, %v1183
    %v1189 = vmul.f32 1.0, %v1188
    %v1190 = vrcp.pop %v1174
    %v1191 = vmul.f32 %v1174, %v1190
    %v1192 = vsub.f32 1.0, %v1191
    %v1193 = vmul.f32 %v1190, %v1192
    %v1194 = vadd.f32 %v1190, %v1193
    %vm1195 = vweird.f32 %v1174
    %vm1196 = vweird.f32 %v1190
    %vm1197 = vmor %vm1195, %vm1196
    %v1198 = vsel %vm1197, %v1190, %v1194
    %v1199 = vand.u32 2147483647, %v1174
    %vm1200 = vcmp.eq.f32.partialorder %v1199, 8.507059e+37
    %v1201 = vand.u32 %v1174, 2147483648
    %v1202 = vor.u32 1.1754944e-38, %v1201
    %v1203 = vsel %vm1200, %v1202, %v1198
    %v1204 = vmul.f32 1.0, %v1203
    %v1205 = vmul.f32 %v1028, %v1149
    %v1206 = vmul.f32 %v1029, %v1164
    %v1207 = vmul.f32 %v1123, %v1189
    %v1208 = vmul.f32 %v1124, %v1204
    %v1209 = vadd.f32 %v1205, %v1207
    %v1210 = vadd.f32 %v1206, %v1208
    %v1211 = vmax.f32 %v1209, 0.0
    %v1212 = vmax.f32 %v1210, 0.0
    %1213 = vmatpush.msra.mxu0 0.0
    %1214 = vmatpush.msra.mxu0 0.0
    %1215 = vmatpush.msra.mxu0 0.0
    %1216 = vmatpush.msra.mxu0 0.0
    %1217 = vmatpush.msra.mxu0 0.0
    %1218 = vmatpush.msra.mxu0 0.0
    %1219 = vmatpush.msra.mxu0 0.0
    %1220 = vmatpush.msra.mxu0 0.0
    %1221 = vmatpush.msra.mxu0 0.0
    %1222 = vmatpush.msra.mxu0 0.0
    %1223 = vmatpush.msra.mxu0 0.0
    %1224 = vmatpush.msra.mxu0 0.0
    %1225 = vmatpush.msra.mxu0 0.0
    %1226 = vmatpush.msra.mxu0 0.0
    %1227 = vmatpush.msra.mxu0 %v1212
    %1228 = vmatpush.msra.mxu0 %v1211
    %1229 = vmatmul.f32.gmra.mxu0 %v448
    %v1230 = vpop.f32.mrf.mxu0
    %v1231 = vadd.f32 %v35, %v1230
    %1232 = vmatmul.f32.gmra.mxu0 %v451
    %v1233 = vpop.f32.mrf.mxu0
    %v1234 = vadd.f32 %v40, %v1233
    %1235 = vmatmul.f32.gmra.mxu0 %v454
    %v1236 = vpop.f32.mrf.mxu0
    %v1237 = vadd.f32 %v45, %v1236
    %1238 = vmatmul.f32.gmra.mxu0 %v457
    %v1239 = vpop.f32.mrf.mxu0
    %v1240 = vadd.f32 %v50, %v1239
    %1241 = vmatmul.f32.gmra.mxu0 %v460
    %v1242 = vpop.f32.mrf.mxu0
    %v1243 = vadd.f32 %v55, %v1242
    %1244 = vmatmul.f32.gmra.mxu0 %v463
    %v1245 = vpop.f32.mrf.mxu0
    %v1246 = vadd.f32 %v60, %v1245
    %1247 = vdwg.mxu0
    %v1248 = vmul.f32 %v1231, 0.5
    %v1249 = vmul.f32 %v1234, 0.5
    %v1250 = vmul.f32 %v1237, 0.5
    %v1251 = vmul.f32 %v1240, 0.5
    %v1252 = vmul.f32 %v1243, 0.5
    %v1253 = vmul.f32 %v1246, 0.5
    %v1254 = vmul.f32 %v1231, %v1231
    %v1255 = vmul.f32 %v1234, %v1234
    %v1256 = vmul.f32 %v1237, %v1237
    %v1257 = vmul.f32 %v1240, %v1240
    %v1258 = vmul.f32 %v1243, %v1243
    %v1259 = vmul.f32 %v1246, %v1246
    %v1260 = vmul.f32 %v1254, %v1231
    %v1261 = vmul.f32 %v1255, %v1234
    %v1262 = vmul.f32 %v1256, %v1237
    %v1263 = vmul.f32 %v1257, %v1240
    %v1264 = vmul.f32 %v1258, %v1243
    %v1265 = vmul.f32 %v1259, %v1246
    %v1266 = vmul.f32 %v1260, 0.044715
    %v1267 = vmul.f32 %v1261, 0.044715
    %v1268 = vmul.f32 %v1262, 0.044715
    %v1269 = vmul.f32 %v1263, 0.044715
    %v1270 = vmul.f32 %v1264, 0.044715
    %v1271 = vmul.f32 %v1265, 0.044715
    %v1272 = vadd.f32 %v1231, %v1266
    %v1273 = vadd.f32 %v1234, %v1267
    %v1274 = vadd.f32 %v1237, %v1268
    %v1275 = vadd.f32 %v1240, %v1269
    %v1276 = vadd.f32 %v1243, %v1270
    %v1277 = vadd.f32 %v1246, %v1271
    %v1278 = vmul.f32 %v1272, 0.7978846
    %v1279 = vmul.f32 %v1273, 0.7978846
    %v1280 = vmul.f32 %v1274, 0.7978846
    %v1281 = vmul.f32 %v1275, 0.7978846
    %v1282 = vmul.f32 %v1276, 0.7978846
    %v1283 = vmul.f32 %v1277, 0.7978846
    %v1284 = vtanh.pop %v1278
    %v1285 = vtanh.pop %v1279
    %v1286 = vtanh.pop %v1280
    %v1287 = vtanh.pop %v1281
    %v1288 = vtanh.pop %v1282
    %v1289 = vtanh.pop %v1283
    %v1290 = vadd.f32 %v1284, 1.0
    %v1291 = vadd.f32 %v1285, 1.0
    %v1292 = vadd.f32 %v1286, 1.0
    %v1293 = vadd.f32 %v1287, 1.0
    %v1294 = vadd.f32 %v1288, 1.0
    %v1295 = vadd.f32 %v1289, 1.0
    %v1296 = vmul.f32 %v1248, %v1290
    %v1297 = vmul.f32 %v1249, %v1291
    %v1298 = vmul.f32 %v1250, %v1292
    %v1299 = vmul.f32 %v1251, %v1293
    %v1300 = vmul.f32 %v1252, %v1294
    %v1301 = vmul.f32 %v1253, %v1295
    %v1302 = vsub.f32 %v1030, %v1300
    %v1303 = vsub.f32 %v1031, %v1301
    %v1304 = vadd.f32 %v386, %v1302
    %v1305 = vadd.f32 %v387, %v1303
    %v1306 = vadd.f32 %v1296, %v392
    %v1307 = vadd.f32 %v1297, %v393
    %v1308 = vxor.u32 %v1306, 2147483648
    %v1309 = vxor.u32 %v1307, 2147483648
    %v1310 = vmul.f32 %v1308, 1.442695
    %v1311 = vpow.pop %v1310
    %v1312 = vmul.f32 %v1309, 1.442695
    %v1313 = vpow.pop %v1312
    %v1314 = vadd.f32 %v1311, 1.0
    %v1315 = vadd.f32 %v1313, 1.0
    %v1316 = vrcp.pop %v1314
    %v1317 = vmul.f32 %v1314, %v1316
    %v1318 = vsub.f32 1.0, %v1317
    %v1319 = vmul.f32 %v1316, %v1318
    %v1320 = vadd.f32 %v1316, %v1319
    %vm1321 = vweird.f32 %v1314
    %vm1322 = vweird.f32 %v1316
    %vm1323 = vmor %vm1321, %vm1322
    %v1324 = vsel %vm1323, %v1316, %v1320
    %v1325 = vand.u32 2147483647, %v1314
    %vm1326 = vcmp.eq.f32.partialorder %v1325, 8.507059e+37
    %v1327 = vand.u32 %v1314, 2147483648
    %v1328 = vor.u32 1.1754944e-38, %v1327
    %v1329 = vsel %vm1326, %v1328, %v1324
    %v1330 = vmul.f32 1.0, %v1329
    %v1331 = vrcp.pop %v1315
    %v1332 = vmul.f32 %v1315, %v1331
    %v1333 = vsub.f32 1.0, %v1332
    %v1334 = vmul.f32 %v1331, %v1333
    %v1335 = vadd.f32 %v1331, %v1334
    %vm1336 = vweird.f32 %v1315
    %vm1337 = vweird.f32 %v1331
    %vm1338 = vmor %vm1336, %vm1337
    %v1339 = vsel %vm1338, %v1331, %v1335
    %v1340 = vand.u32 2147483647, %v1315
    %vm1341 = vcmp.eq.f32.partialorder %v1340, 8.507059e+37
    %v1342 = vand.u32 %v1315, 2147483648
    %v1343 = vor.u32 1.1754944e-38, %v1342
    %v1344 = vsel %vm1341, %v1343, %v1339
    %v1345 = vmul.f32 1.0, %v1344
    %v1346 = vadd.f32 %v1298, %v394
    %v1347 = vadd.f32 %v1299, %v395
    %v1348 = vxor.u32 %v1346, 2147483648
    %v1349 = vxor.u32 %v1347, 2147483648
    %v1350 = vmul.f32 %v1348, 1.442695
    %v1351 = vpow.pop %v1350
    %v1352 = vmul.f32 %v1349, 1.442695
    %v1353 = vpow.pop %v1352
    %v1354 = vadd.f32 %v1351, 1.0
    %v1355 = vadd.f32 %v1353, 1.0
    %v1356 = vrcp.pop %v1354
    %v1357 = vmul.f32 %v1354, %v1356
    %v1358 = vsub.f32 1.0, %v1357
    %v1359 = vmul.f32 %v1356, %v1358
    %v1360 = vadd.f32 %v1356, %v1359
    %vm1361 = vweird.f32 %v1354
    %vm1362 = vweird.f32 %v1356
    %vm1363 = vmor %vm1361, %vm1362
    %v1364 = vsel %vm1363, %v1356, %v1360
    %v1365 = vand.u32 2147483647, %v1354
    %vm1366 = vcmp.eq.f32.partialorder %v1365, 8.507059e+37
    %v1367 = vand.u32 %v1354, 2147483648
    %v1368 = vor.u32 1.1754944e-38, %v1367
    %v1369 = vsel %vm1366, %v1368, %v1364
    %v1370 = vmul.f32 1.0, %v1369
    %v1371 = vrcp.pop %v1355
    %v1372 = vmul.f32 %v1355, %v1371
    %v1373 = vsub.f32 1.0, %v1372
    %v1374 = vmul.f32 %v1371, %v1373
    %v1375 = vadd.f32 %v1371, %v1374
    %vm1376 = vweird.f32 %v1355
    %vm1377 = vweird.f32 %v1371
    %vm1378 = vmor %vm1376, %vm1377
    %v1379 = vsel %vm1378, %v1371, %v1375
    %v1380 = vand.u32 2147483647, %v1355
    %vm1381 = vcmp.eq.f32.partialorder %v1380, 8.507059e+37
    %v1382 = vand.u32 %v1355, 2147483648
    %v1383 = vor.u32 1.1754944e-38, %v1382
    %v1384 = vsel %vm1381, %v1383, %v1379
    %v1385 = vmul.f32 1.0, %v1384
    %v1386 = vmul.f32 %v1209, %v1330
    %v1387 = vmul.f32 %v1210, %v1345
    %v1388 = vmul.f32 %v1304, %v1370
    %v1389 = vmul.f32 %v1305, %v1385
    %v1390 = vadd.f32 %v1386, %v1388
    %v1391 = vadd.f32 %v1387, %v1389
    %v1392 = vmax.f32 %v1390, 0.0
    %v1393 = vmax.f32 %v1391, 0.0
    %1394 = vmatpush.msra.mxu0 0.0
    %1395 = vmatpush.msra.mxu0 0.0
    %1396 = vmatpush.msra.mxu0 0.0
    %1397 = vmatpush.msra.mxu0 0.0
    %1398 = vmatpush.msra.mxu0 0.0
    %1399 = vmatpush.msra.mxu0 0.0
    %1400 = vmatpush.msra.mxu0 0.0
    %1401 = vmatpush.msra.mxu0 0.0
    %1402 = vmatpush.msra.mxu0 0.0
    %1403 = vmatpush.msra.mxu0 0.0
    %1404 = vmatpush.msra.mxu0 0.0
    %1405 = vmatpush.msra.mxu0 0.0
    %1406 = vmatpush.msra.mxu0 0.0
    %1407 = vmatpush.msra.mxu0 0.0
    %1408 = vmatpush.msra.mxu0 %v1393
    %1409 = vmatpush.msra.mxu0 %v1392
    %1410 = vmatmul.f32.gmra.mxu0 %v653
    %v1411 = vpop.f32.mrf.mxu0
    %v1412 = vadd.f32 %v71, %v1411
    %1413 = vmatmul.f32.gmra.mxu0 %v656
    %v1414 = vpop.f32.mrf.mxu0
    %v1415 = vadd.f32 %v76, %v1414
    %1416 = vmatmul.f32.gmra.mxu0 %v659
    %v1417 = vpop.f32.mrf.mxu0
    %v1418 = vadd.f32 %v81, %v1417
    %1419 = vmatmul.f32.gmra.mxu0 %v662
    %v1420 = vpop.f32.mrf.mxu0
    %v1421 = vadd.f32 %v86, %v1420
    %1422 = vmatmul.f32.gmra.mxu0 %v665
    %v1423 = vpop.f32.mrf.mxu0
    %v1424 = vadd.f32 %v91, %v1423
    %1425 = vmatmul.f32.gmra.mxu0 %v668
    %v1426 = vpop.f32.mrf.mxu0
    %v1427 = vadd.f32 %v96, %v1426
    %1428 = vdwg.mxu0
    %v1429 = vmul.f32 %v1412, 0.5
    %v1430 = vmul.f32 %v1415, 0.5
    %v1431 = vmul.f32 %v1418, 0.5
    %v1432 = vmul.f32 %v1421, 0.5
    %v1433 = vmul.f32 %v1424, 0.5
    %v1434 = vmul.f32 %v1427, 0.5
    %v1435 = vmul.f32 %v1412, %v1412
    %v1436 = vmul.f32 %v1415, %v1415
    %v1437 = vmul.f32 %v1418, %v1418
    %v1438 = vmul.f32 %v1421, %v1421
    %v1439 = vmul.f32 %v1424, %v1424
    %v1440 = vmul.f32 %v1427, %v1427
    %v1441 = vmul.f32 %v1435, %v1412
    %v1442 = vmul.f32 %v1436, %v1415
    %v1443 = vmul.f32 %v1437, %v1418
    %v1444 = vmul.f32 %v1438, %v1421
    %v1445 = vmul.f32 %v1439, %v1424
    %v1446 = vmul.f32 %v1440, %v1427
    %v1447 = vmul.f32 %v1441, 0.044715
    %v1448 = vmul.f32 %v1442, 0.044715
    %v1449 = vmul.f32 %v1443, 0.044715
    %v1450 = vmul.f32 %v1444, 0.044715
    %v1451 = vmul.f32 %v1445, 0.044715
    %v1452 = vmul.f32 %v1446, 0.044715
    %v1453 = vadd.f32 %v1412, %v1447
    %v1454 = vadd.f32 %v1415, %v1448
    %v1455 = vadd.f32 %v1418, %v1449
    %v1456 = vadd.f32 %v1421, %v1450
    %v1457 = vadd.f32 %v1424, %v1451
    %v1458 = vadd.f32 %v1427, %v1452
    %v1459 = vmul.f32 %v1453, 0.7978846
    %v1460 = vmul.f32 %v1454, 0.7978846
    %v1461 = vmul.f32 %v1455, 0.7978846
    %v1462 = vmul.f32 %v1456, 0.7978846
    %v1463 = vmul.f32 %v1457, 0.7978846
    %v1464 = vmul.f32 %v1458, 0.7978846
    %v1465 = vtanh.pop %v1459
    %v1466 = vtanh.pop %v1460
    %v1467 = vtanh.pop %v1461
    %v1468 = vtanh.pop %v1462
    %v1469 = vtanh.pop %v1463
    %v1470 = vtanh.pop %v1464
    %v1471 = vadd.f32 %v1465, 1.0
    %v1472 = vadd.f32 %v1466, 1.0
    %v1473 = vadd.f32 %v1467, 1.0
    %v1474 = vadd.f32 %v1468, 1.0
    %v1475 = vadd.f32 %v1469, 1.0
    %v1476 = vadd.f32 %v1470, 1.0
    %v1477 = vmul.f32 %v1429, %v1471
    %v1478 = vmul.f32 %v1430, %v1472
    %v1479 = vmul.f32 %v1431, %v1473
    %v1480 = vmul.f32 %v1432, %v1474
    %v1481 = vmul.f32 %v1433, %v1475
    %v1482 = vmul.f32 %v1434, %v1476
    %v1483 = vadd.f32 %v384, %v1392
    %v1484 = vadd.f32 %v385, %v1393
    %v1485 = vsub.f32 %v1483, %v1481
    %v1486 = vsub.f32 %v1484, %v1482
    %v1487 = vadd.f32 %v1477, %v388
    %v1488 = vadd.f32 %v1478, %v389
    %v1489 = vxor.u32 %v1487, 2147483648
    %v1490 = vxor.u32 %v1488, 2147483648
    %v1491 = vmul.f32 %v1489, 1.442695
    %v1492 = vpow.pop %v1491
    %v1493 = vmul.f32 %v1490, 1.442695
    %v1494 = vpow.pop %v1493
    %v1495 = vadd.f32 %v1492, 1.0
    %v1496 = vadd.f32 %v1494, 1.0
    %v1497 = vrcp.pop %v1495
    %v1498 = vmul.f32 %v1495, %v1497
    %v1499 = vsub.f32 1.0, %v1498
    %v1500 = vmul.f32 %v1497, %v1499
    %v1501 = vadd.f32 %v1497, %v1500
    %vm1502 = vweird.f32 %v1495
    %vm1503 = vweird.f32 %v1497
    %vm1504 = vmor %vm1502, %vm1503
    %v1505 = vsel %vm1504, %v1497, %v1501
    %v1506 = vand.u32 2147483647, %v1495
    %vm1507 = vcmp.eq.f32.partialorder %v1506, 8.507059e+37
    %v1508 = vand.u32 %v1495, 2147483648
    %v1509 = vor.u32 1.1754944e-38, %v1508
    %v1510 = vsel %vm1507, %v1509, %v1505
    %v1511 = vmul.f32 1.0, %v1510
    %v1512 = vrcp.pop %v1496
    %v1513 = vmul.f32 %v1496, %v1512
    %v1514 = vsub.f32 1.0, %v1513
    %v1515 = vmul.f32 %v1512, %v1514
    %v1516 = vadd.f32 %v1512, %v1515
    %vm1517 = vweird.f32 %v1496
    %vm1518 = vweird.f32 %v1512
    %vm1519 = vmor %vm1517, %vm1518
    %v1520 = vsel %vm1519, %v1512, %v1516
    %v1521 = vand.u32 2147483647, %v1496
    %vm1522 = vcmp.eq.f32.partialorder %v1521, 8.507059e+37
    %v1523 = vand.u32 %v1496, 2147483648
    %v1524 = vor.u32 1.1754944e-38, %v1523
    %v1525 = vsel %vm1522, %v1524, %v1520
    %v1526 = vmul.f32 1.0, %v1525
    %v1527 = vadd.f32 %v1479, %v390
    %v1528 = vadd.f32 %v1480, %v391
    %v1529 = vxor.u32 %v1527, 2147483648
    %v1530 = vxor.u32 %v1528, 2147483648
    %v1531 = vmul.f32 %v1529, 1.442695
    %v1532 = vpow.pop %v1531
    %v1533 = vmul.f32 %v1530, 1.442695
    %v1534 = vpow.pop %v1533
    %v1535 = vadd.f32 %v1532, 1.0
    %v1536 = vadd.f32 %v1534, 1.0
    %v1537 = vrcp.pop %v1535
    %v1538 = vmul.f32 %v1535, %v1537
    %v1539 = vsub.f32 1.0, %v1538
    %v1540 = vmul.f32 %v1537, %v1539
    %v1541 = vadd.f32 %v1537, %v1540
    %vm1542 = vweird.f32 %v1535
    %vm1543 = vweird.f32 %v1537
    %vm1544 = vmor %vm1542, %vm1543
    %v1545 = vsel %vm1544, %v1537, %v1541
    %v1546 = vand.u32 2147483647, %v1535
    %vm1547 = vcmp.eq.f32.partialorder %v1546, 8.507059e+37
    %v1548 = vand.u32 %v1535, 2147483648
    %v1549 = vor.u32 1.1754944e-38, %v1548
    %v1550 = vsel %vm1547, %v1549, %v1545
    %v1551 = vmul.f32 1.0, %v1550
    %v1552 = vrcp.pop %v1536
    %v1553 = vmul.f32 %v1536, %v1552
    %v1554 = vsub.f32 1.0, %v1553
    %v1555 = vmul.f32 %v1552, %v1554
    %v1556 = vadd.f32 %v1552, %v1555
    %vm1557 = vweird.f32 %v1536
    %vm1558 = vweird.f32 %v1552
    %vm1559 = vmor %vm1557, %vm1558
    %v1560 = vsel %vm1559, %v1552, %v1556
    %v1561 = vand.u32 2147483647, %v1536
    %vm1562 = vcmp.eq.f32.partialorder %v1561, 8.507059e+37
    %v1563 = vand.u32 %v1536, 2147483648
    %v1564 = vor.u32 1.1754944e-38, %v1563
    %v1565 = vsel %vm1562, %v1564, %v1560
    %v1566 = vmul.f32 1.0, %v1565
    %v1567 = vmul.f32 %v1390, %v1511
    %v1568 = vmul.f32 %v1391, %v1526
    %v1569 = vmul.f32 %v1485, %v1551
    %v1570 = vmul.f32 %v1486, %v1566
    %v1571 = vadd.f32 %v1567, %v1569
    %v1572 = vadd.f32 %v1568, %v1570
    %v1573 = vmax.f32 %v1571, 0.0
    %v1574 = vmax.f32 %v1572, 0.0
    %1575 = vmatpush.msra.mxu0 0.0
    %1576 = vmatpush.msra.mxu0 0.0
    %1577 = vmatpush.msra.mxu0 0.0
    %1578 = vmatpush.msra.mxu0 0.0
    %1579 = vmatpush.msra.mxu0 0.0
    %1580 = vmatpush.msra.mxu0 0.0
    %1581 = vmatpush.msra.mxu0 0.0
    %1582 = vmatpush.msra.mxu0 0.0
    %1583 = vmatpush.msra.mxu0 0.0
    %1584 = vmatpush.msra.mxu0 0.0
    %1585 = vmatpush.msra.mxu0 0.0
    %1586 = vmatpush.msra.mxu0 0.0
    %1587 = vmatpush.msra.mxu0 0.0
    %1588 = vmatpush.msra.mxu0 0.0
    %1589 = vmatpush.msra.mxu0 %v1574
    %1590 = vmatpush.msra.mxu0 %v1573
    %1591 = vmatmul.f32.gmra.mxu0 %v448
    %v1592 = vpop.f32.mrf.mxu0
    %v1593 = vadd.f32 %v35, %v1592
    %1594 = vmatmul.f32.gmra.mxu0 %v451
    %v1595 = vpop.f32.mrf.mxu0
    %v1596 = vadd.f32 %v40, %v1595
    %1597 = vmatmul.f32.gmra.mxu0 %v454
    %v1598 = vpop.f32.mrf.mxu0
    %v1599 = vadd.f32 %v45, %v1598
    %1600 = vmatmul.f32.gmra.mxu0 %v457
    %v1601 = vpop.f32.mrf.mxu0
    %v1602 = vadd.f32 %v50, %v1601
    %1603 = vmatmul.f32.gmra.mxu0 %v460
    %v1604 = vpop.f32.mrf.mxu0
    %v1605 = vadd.f32 %v55, %v1604
    %1606 = vmatmul.f32.gmra.mxu0 %v463
    %v1607 = vpop.f32.mrf.mxu0
    %v1608 = vadd.f32 %v60, %v1607
    %1609 = vdwg.mxu0
    %v1610 = vmul.f32 %v1593, 0.5
    %v1611 = vmul.f32 %v1596, 0.5
    %v1612 = vmul.f32 %v1599, 0.5
    %v1613 = vmul.f32 %v1602, 0.5
    %v1614 = vmul.f32 %v1605, 0.5
    %v1615 = vmul.f32 %v1608, 0.5
    %v1616 = vmul.f32 %v1593, %v1593
    %v1617 = vmul.f32 %v1596, %v1596
    %v1618 = vmul.f32 %v1599, %v1599
    %v1619 = vmul.f32 %v1602, %v1602
    %v1620 = vmul.f32 %v1605, %v1605
    %v1621 = vmul.f32 %v1608, %v1608
    %v1622 = vmul.f32 %v1616, %v1593
    %v1623 = vmul.f32 %v1617, %v1596
    %v1624 = vmul.f32 %v1618, %v1599
    %v1625 = vmul.f32 %v1619, %v1602
    %v1626 = vmul.f32 %v1620, %v1605
    %v1627 = vmul.f32 %v1621, %v1608
    %v1628 = vmul.f32 %v1622, 0.044715
    %v1629 = vmul.f32 %v1623, 0.044715
    %v1630 = vmul.f32 %v1624, 0.044715
    %v1631 = vmul.f32 %v1625, 0.044715
    %v1632 = vmul.f32 %v1626, 0.044715
    %v1633 = vmul.f32 %v1627, 0.044715
    %v1634 = vadd.f32 %v1593, %v1628
    %v1635 = vadd.f32 %v1596, %v1629
    %v1636 = vadd.f32 %v1599, %v1630
    %v1637 = vadd.f32 %v1602, %v1631
    %v1638 = vadd.f32 %v1605, %v1632
    %v1639 = vadd.f32 %v1608, %v1633
    %v1640 = vmul.f32 %v1634, 0.7978846
    %v1641 = vmul.f32 %v1635, 0.7978846
    %v1642 = vmul.f32 %v1636, 0.7978846
    %v1643 = vmul.f32 %v1637, 0.7978846
    %v1644 = vmul.f32 %v1638, 0.7978846
    %v1645 = vmul.f32 %v1639, 0.7978846
    %v1646 = vtanh.pop %v1640
    %v1647 = vtanh.pop %v1641
    %v1648 = vtanh.pop %v1642
    %v1649 = vtanh.pop %v1643
    %v1650 = vtanh.pop %v1644
    %v1651 = vtanh.pop %v1645
    %v1652 = vadd.f32 %v1646, 1.0
    %v1653 = vadd.f32 %v1647, 1.0
    %v1654 = vadd.f32 %v1648, 1.0
    %v1655 = vadd.f32 %v1649, 1.0
    %v1656 = vadd.f32 %v1650, 1.0
    %v1657 = vadd.f32 %v1651, 1.0
    %v1658 = vmul.f32 %v1610, %v1652
    %v1659 = vmul.f32 %v1611, %v1653
    %v1660 = vmul.f32 %v1612, %v1654
    %v1661 = vmul.f32 %v1613, %v1655
    %v1662 = vmul.f32 %v1614, %v1656
    %v1663 = vmul.f32 %v1615, %v1657
    %v1664 = vsub.f32 %v1392, %v1662
    %v1665 = vsub.f32 %v1393, %v1663
    %v1666 = vadd.f32 %v386, %v1664
    %v1667 = vadd.f32 %v387, %v1665
    %v1668 = vadd.f32 %v1658, %v392
    %v1669 = vadd.f32 %v1659, %v393
    %v1670 = vxor.u32 %v1668, 2147483648
    %v1671 = vxor.u32 %v1669, 2147483648
    %v1672 = vmul.f32 %v1670, 1.442695
    %v1673 = vpow.pop %v1672
    %v1674 = vmul.f32 %v1671, 1.442695
    %v1675 = vpow.pop %v1674
    %v1676 = vadd.f32 %v1673, 1.0
    %v1677 = vadd.f32 %v1675, 1.0
    %v1678 = vrcp.pop %v1676
    %v1679 = vmul.f32 %v1676, %v1678
    %v1680 = vsub.f32 1.0, %v1679
    %v1681 = vmul.f32 %v1678, %v1680
    %v1682 = vadd.f32 %v1678, %v1681
    %vm1683 = vweird.f32 %v1676
    %vm1684 = vweird.f32 %v1678
    %vm1685 = vmor %vm1683, %vm1684
    %v1686 = vsel %vm1685, %v1678, %v1682
    %v1687 = vand.u32 2147483647, %v1676
    %vm1688 = vcmp.eq.f32.partialorder %v1687, 8.507059e+37
    %v1689 = vand.u32 %v1676, 2147483648
    %v1690 = vor.u32 1.1754944e-38, %v1689
    %v1691 = vsel %vm1688, %v1690, %v1686
    %v1692 = vmul.f32 1.0, %v1691
    %v1693 = vrcp.pop %v1677
    %v1694 = vmul.f32 %v1677, %v1693
    %v1695 = vsub.f32 1.0, %v1694
    %v1696 = vmul.f32 %v1693, %v1695
    %v1697 = vadd.f32 %v1693, %v1696
    %vm1698 = vweird.f32 %v1677
    %vm1699 = vweird.f32 %v1693
    %vm1700 = vmor %vm1698, %vm1699
    %v1701 = vsel %vm1700, %v1693, %v1697
    %v1702 = vand.u32 2147483647, %v1677
    %vm1703 = vcmp.eq.f32.partialorder %v1702, 8.507059e+37
    %v1704 = vand.u32 %v1677, 2147483648
    %v1705 = vor.u32 1.1754944e-38, %v1704
    %v1706 = vsel %vm1703, %v1705, %v1701
    %v1707 = vmul.f32 1.0, %v1706
    %v1708 = vadd.f32 %v1660, %v394
    %v1709 = vadd.f32 %v1661, %v395
    %v1710 = vxor.u32 %v1708, 2147483648
    %v1711 = vxor.u32 %v1709, 2147483648
    %v1712 = vmul.f32 %v1710, 1.442695
    %v1713 = vpow.pop %v1712
    %v1714 = vmul.f32 %v1711, 1.442695
    %v1715 = vpow.pop %v1714
    %v1716 = vadd.f32 %v1713, 1.0
    %v1717 = vadd.f32 %v1715, 1.0
    %v1718 = vrcp.pop %v1716
    %v1719 = vmul.f32 %v1716, %v1718
    %v1720 = vsub.f32 1.0, %v1719
    %v1721 = vmul.f32 %v1718, %v1720
    %v1722 = vadd.f32 %v1718, %v1721
    %vm1723 = vweird.f32 %v1716
    %vm1724 = vweird.f32 %v1718
    %vm1725 = vmor %vm1723, %vm1724
    %v1726 = vsel %vm1725, %v1718, %v1722
    %v1727 = vand.u32 2147483647, %v1716
    %vm1728 = vcmp.eq.f32.partialorder %v1727, 8.507059e+37
    %v1729 = vand.u32 %v1716, 2147483648
    %v1730 = vor.u32 1.1754944e-38, %v1729
    %v1731 = vsel %vm1728, %v1730, %v1726
    %v1732 = vmul.f32 1.0, %v1731
    %v1733 = vrcp.pop %v1717
    %v1734 = vmul.f32 %v1717, %v1733
    %v1735 = vsub.f32 1.0, %v1734
    %v1736 = vmul.f32 %v1733, %v1735
    %v1737 = vadd.f32 %v1733, %v1736
    %vm1738 = vweird.f32 %v1717
    %vm1739 = vweird.f32 %v1733
    %vm1740 = vmor %vm1738, %vm1739
    %v1741 = vsel %vm1740, %v1733, %v1737
    %v1742 = vand.u32 2147483647, %v1717
    %vm1743 = vcmp.eq.f32.partialorder %v1742, 8.507059e+37
    %v1744 = vand.u32 %v1717, 2147483648
    %v1745 = vor.u32 1.1754944e-38, %v1744
    %v1746 = vsel %vm1743, %v1745, %v1741
    %v1747 = vmul.f32 1.0, %v1746
    %v1748 = vmul.f32 %v1571, %v1692
    %v1749 = vmul.f32 %v1572, %v1707
    %v1750 = vmul.f32 %v1666, %v1732
    %v1751 = vmul.f32 %v1667, %v1747
    %v1752 = vadd.f32 %v1748, %v1750
    %v1753 = vadd.f32 %v1749, %v1751
    %v1754 = vmax.f32 %v1752, 0.0
    %v1755 = vmax.f32 %v1753, 0.0
    %s1756 = smul.addr %s105, 8
    %s1757 = scalar_lea.vmem %s7, %s1756
    %1758 = vst [vmem:[%s1757] sm:$0xff] %v1754
    %1759 = vst [vmem:[%s1757 + $0x30] sm:$0xff] %v1755
  $region34: #{qencoders_forward.2} parent=0 // loop_footer
    %s103 = sadd.s32 1, %s99
  $region35: #{qencoders_forward.2} parent=0 // loop_footer_branch
    %98 = sbr.rel target = $region31
  $region36: #{qencoders_forward.2} parent=0 // loop_exit
    _
  // Predicated region
  $region37: #{qencoders_forward.2} parent=0 // pred_check
    _
  $region38: #{qencoders_forward.2} parent=0 // pred_check_branch
    %1761 = sbr.rel (0) target = $region40
  $region39: #{qencoders_forward.2} parent=0 // pred_region
    _
  $region40: #{qencoders_forward.2} parent=0 // pred_fallthru
    _
  // Predicated region
  $region41: #{qencoders_forward.2} parent=0 // pred_check
    _
  $region42: #{qencoders_forward.2} parent=0 // pred_check_branch
    %1763 = sbr.rel (0) target = $region44
  $region43: #{qencoders_forward.2} parent=0 // pred_region
    _
  $region44: #{qencoders_forward.2} parent=0 // pred_fallthru
    _

// kernel: qencoders_forward.3
$region0: #{qencoders_forward.3}
  #allocation0 [shape = 'u32[]', space=smem, size = 0x4, offset = 0x4, fixed_abs, tag = 'smem constant byte address 0x4 - core index']
  #allocation1 [shape = 'u32[72,128]{1,0:T(1,128)}', space=vmem, size = 0x9000, scoped, tag = 'internal scratch']
  %s0 = inlined_call_operand.vmem [shape: f32[2,8,2,384], index: 0, kind: input, shape index: {}]
  %s1 = inlined_call_operand.vmem [shape: f32[2,16,72], index: 1, kind: input, shape index: {}]
  %s2 = inlined_call_operand.vmem [shape: f32[2,16,1], index: 2, kind: input, shape index: {}]
  %s3 = inlined_call_operand.vmem [shape: f32[2,16,16], index: 3, kind: input, shape index: {}]
  %s4 = inlined_call_operand.vmem [shape: f32[2,16,1], index: 4, kind: input, shape index: {}]
  %s5 = inlined_call_operand.vmem [shape: f32[2,1,16], index: 5, kind: input, shape index: {}]
  %s6 = inlined_call_operand.vmem [shape: f32[2,1,1], index: 6, kind: input, shape index: {}]
  %s7 = inlined_call_operand.vmem [shape: f32[2,1,448], index: 7, kind: output, shape index: {}]
  %s8 = sld [smem:[#allocation0]]
  $region61: #{qencoders_forward.3} parent=0
    _
  %s10 = ssub.s32 1, %s8
  %s11 = scalar_select 0, %s10, %s8
  loop: start=0, step=1, limit=4
  $region2: #{qencoders_forward.3} parent=0 // loop_pre_header
    _
  $region3: #{qencoders_forward.3} parent=0 // loop_header
    %s13 = sphi 0, %s17
    %p14 = scmp.ge.s32.totalorder %s13, 4
    %s23 = sphi 0, %s25
    %s26 = sphi 0, %s23
    %s27 = sphi 0, %s26
    %s43 = sphi 0, %s27
    %s49 = sphi 0, %s51
    %s52 = sphi 0, %s49
    %s53 = sphi 0, %s52
    %s69 = sphi 0, %s53
    %s75 = sphi 0, %s77
    %s78 = sphi 0, %s75
    %s79 = sphi 0, %s78
    %s95 = sphi 0, %s79
    %s101 = sphi 0, %s103
    %s104 = sphi 0, %s101
    %s105 = sphi 0, %s104
    %s121 = sphi 0, %s105
    %s127 = sphi 0, %s129
    %s130 = sphi 0, %s127
    %s131 = sphi 0, %s130
    %s147 = sphi 0, %s131
    %s153 = sphi 0, %s155
    %s156 = sphi 0, %s153
    %s157 = sphi 0, %s156
    %s173 = sphi 0, %s157
    %s179 = sphi 0, %s181
    %s182 = sphi 0, %s179
    %s183 = sphi 0, %s182
    %s199 = sphi 0, %s183
    %s205 = sphi 0, %s207
    %s208 = sphi 0, %s205
    %s209 = sphi 0, %s208
    %s225 = sphi 0, %s209
  $region4: #{qencoders_forward.3} parent=0 // loop_header_branch
    %16 = sbr.rel (%p14) target = $region8
  $region5: #{qencoders_forward.3} parent=0 // loop_body
    %s18 = ssub.s32 %s13, 1
    %s19 = ssub.s32 %s13, 2
    %s20 = sadd.s32 %s13, 1
    %s21 = ssub.s32 %s13, %s20
    %p22 = scmp.eq.s32.totalorder %s21, 0
    %s24 = sadd.s32 %s23, 1
    %s25 = scalar_select %p22, %s23, %s24
    %p28 = pneg %p22
    %p29 = scmp.eq.s32.totalorder %s13, 1
    %p30 = por %p28, %p29
    %p31 = scmp.ne.s32.totalorder %s23, %s26
    %p32 = scmp.eq.s32.totalorder %s13, 0
    %p33 = por %p31, %p32
    %p34 = scmp.ne.s32.totalorder %s23, %s26
    %p35 = scmp.eq.s32.totalorder %s18, 1
    %p36 = por %p34, %p35
    %p37 = scmp.ne.s32.totalorder %s26, %s27
    %p38 = scmp.eq.s32.totalorder %s18, 0
    %p39 = por %p37, %p38
    %p40 = scmp.ne.s32.totalorder %s26, %s27
    %p41 = scmp.eq.s32.totalorder %s19, 1
    %p42 = por %p40, %p41
    %p44 = scmp.ne.s32.totalorder %s27, %s43
    %p45 = scmp.eq.s32.totalorder %s19, 0
    %p46 = por %p44, %p45
    %s47 = ssub.s32 %s13, %s20
    %p48 = scmp.eq.s32.totalorder %s47, 0
    %s50 = sadd.s32 %s49, 1
    %s51 = scalar_select %p48, %s49, %s50
    %p54 = pneg %p48
    %p55 = scmp.eq.s32.totalorder %s13, 1
    %p56 = por %p54, %p55
    %p57 = scmp.ne.s32.totalorder %s49, %s52
    %p58 = scmp.eq.s32.totalorder %s13, 0
    %p59 = por %p57, %p58
    %p60 = scmp.ne.s32.totalorder %s49, %s52
    %p61 = scmp.eq.s32.totalorder %s18, 1
    %p62 = por %p60, %p61
    %p63 = scmp.ne.s32.totalorder %s52, %s53
    %p64 = scmp.eq.s32.totalorder %s18, 0
    %p65 = por %p63, %p64
    %p66 = scmp.ne.s32.totalorder %s52, %s53
    %p67 = scmp.eq.s32.totalorder %s19, 1
    %p68 = por %p66, %p67
    %p70 = scmp.ne.s32.totalorder %s53, %s69
    %p71 = scmp.eq.s32.totalorder %s19, 0
    %p72 = por %p70, %p71
    %s73 = ssub.s32 %s13, %s20
    %p74 = scmp.eq.s32.totalorder %s73, 0
    %s76 = sadd.s32 %s75, 1
    %s77 = scalar_select %p74, %s75, %s76
    %p80 = pneg %p74
    %p81 = scmp.eq.s32.totalorder %s13, 1
    %p82 = por %p80, %p81
    %p83 = scmp.ne.s32.totalorder %s75, %s78
    %p84 = scmp.eq.s32.totalorder %s13, 0
    %p85 = por %p83, %p84
    %p86 = scmp.ne.s32.totalorder %s75, %s78
    %p87 = scmp.eq.s32.totalorder %s18, 1
    %p88 = por %p86, %p87
    %p89 = scmp.ne.s32.totalorder %s78, %s79
    %p90 = scmp.eq.s32.totalorder %s18, 0
    %p91 = por %p89, %p90
    %p92 = scmp.ne.s32.totalorder %s78, %s79
    %p93 = scmp.eq.s32.totalorder %s19, 1
    %p94 = por %p92, %p93
    %p96 = scmp.ne.s32.totalorder %s79, %s95
    %p97 = scmp.eq.s32.totalorder %s19, 0
    %p98 = por %p96, %p97
    %s99 = ssub.s32 %s13, %s20
    %p100 = scmp.eq.s32.totalorder %s99, 0
    %s102 = sadd.s32 %s101, 1
    %s103 = scalar_select %p100, %s101, %s102
    %p106 = pneg %p100
    %p107 = scmp.eq.s32.totalorder %s13, 1
    %p108 = por %p106, %p107
    %p109 = scmp.ne.s32.totalorder %s101, %s104
    %p110 = scmp.eq.s32.totalorder %s13, 0
    %p111 = por %p109, %p110
    %p112 = scmp.ne.s32.totalorder %s101, %s104
    %p113 = scmp.eq.s32.totalorder %s18, 1
    %p114 = por %p112, %p113
    %p115 = scmp.ne.s32.totalorder %s104, %s105
    %p116 = scmp.eq.s32.totalorder %s18, 0
    %p117 = por %p115, %p116
    %p118 = scmp.ne.s32.totalorder %s104, %s105
    %p119 = scmp.eq.s32.totalorder %s19, 1
    %p120 = por %p118, %p119
    %p122 = scmp.ne.s32.totalorder %s105, %s121
    %p123 = scmp.eq.s32.totalorder %s19, 0
    %p124 = por %p122, %p123
    %s125 = ssub.s32 %s13, %s20
    %p126 = scmp.eq.s32.totalorder %s125, 0
    %s128 = sadd.s32 %s127, 1
    %s129 = scalar_select %p126, %s127, %s128
    %p132 = pneg %p126
    %p133 = scmp.eq.s32.totalorder %s13, 1
    %p134 = por %p132, %p133
    %p135 = scmp.ne.s32.totalorder %s127, %s130
    %p136 = scmp.eq.s32.totalorder %s13, 0
    %p137 = por %p135, %p136
    %p138 = scmp.ne.s32.totalorder %s127, %s130
    %p139 = scmp.eq.s32.totalorder %s18, 1
    %p140 = por %p138, %p139
    %p141 = scmp.ne.s32.totalorder %s130, %s131
    %p142 = scmp.eq.s32.totalorder %s18, 0
    %p143 = por %p141, %p142
    %p144 = scmp.ne.s32.totalorder %s130, %s131
    %p145 = scmp.eq.s32.totalorder %s19, 1
    %p146 = por %p144, %p145
    %p148 = scmp.ne.s32.totalorder %s131, %s147
    %p149 = scmp.eq.s32.totalorder %s19, 0
    %p150 = por %p148, %p149
    %s151 = ssub.s32 %s13, %s20
    %p152 = scmp.eq.s32.totalorder %s151, 0
    %s154 = sadd.s32 %s153, 1
    %s155 = scalar_select %p152, %s153, %s154
    %p158 = pneg %p152
    %p159 = scmp.eq.s32.totalorder %s13, 1
    %p160 = por %p158, %p159
    %p161 = scmp.ne.s32.totalorder %s153, %s156
    %p162 = scmp.eq.s32.totalorder %s13, 0
    %p163 = por %p161, %p162
    %p164 = scmp.ne.s32.totalorder %s153, %s156
    %p165 = scmp.eq.s32.totalorder %s18, 1
    %p166 = por %p164, %p165
    %p167 = scmp.ne.s32.totalorder %s156, %s157
    %p168 = scmp.eq.s32.totalorder %s18, 0
    %p169 = por %p167, %p168
    %p170 = scmp.ne.s32.totalorder %s156, %s157
    %p171 = scmp.eq.s32.totalorder %s19, 1
    %p172 = por %p170, %p171
    %p174 = scmp.ne.s32.totalorder %s157, %s173
    %p175 = scmp.eq.s32.totalorder %s19, 0
    %p176 = por %p174, %p175
    %s177 = ssub.s32 %s13, %s20
    %p178 = scmp.eq.s32.totalorder %s177, 0
    %s180 = sadd.s32 %s179, 1
    %s181 = scalar_select %p178, %s179, %s180
    %p184 = pneg %p178
    %p185 = scmp.eq.s32.totalorder %s13, 1
    %p186 = por %p184, %p185
    %p187 = scmp.ne.s32.totalorder %s179, %s182
    %p188 = scmp.eq.s32.totalorder %s13, 0
    %p189 = por %p187, %p188
    %p190 = scmp.ne.s32.totalorder %s179, %s182
    %p191 = scmp.eq.s32.totalorder %s18, 1
    %p192 = por %p190, %p191
    %p193 = scmp.ne.s32.totalorder %s182, %s183
    %p194 = scmp.eq.s32.totalorder %s18, 0
    %p195 = por %p193, %p194
    %p196 = scmp.ne.s32.totalorder %s182, %s183
    %p197 = scmp.eq.s32.totalorder %s19, 1
    %p198 = por %p196, %p197
    %p200 = scmp.ne.s32.totalorder %s183, %s199
    %p201 = scmp.eq.s32.totalorder %s19, 0
    %p202 = por %p200, %p201
    %s203 = ssub.s32 %s13, %s20
    %p204 = scmp.eq.s32.totalorder %s203, 0
    %s206 = sadd.s32 %s205, 1
    %s207 = scalar_select %p204, %s205, %s206
    %p210 = pneg %p204
    %p211 = scmp.eq.s32.totalorder %s13, 1
    %p212 = por %p210, %p211
    %p213 = scmp.ne.s32.totalorder %s205, %s208
    %p214 = scmp.eq.s32.totalorder %s13, 0
    %p215 = por %p213, %p214
    %p216 = scmp.ne.s32.totalorder %s205, %s208
    %p217 = scmp.eq.s32.totalorder %s18, 1
    %p218 = por %p216, %p217
    %p219 = scmp.ne.s32.totalorder %s208, %s209
    %p220 = scmp.eq.s32.totalorder %s18, 0
    %p221 = por %p219, %p220
    %p222 = scmp.ne.s32.totalorder %s208, %s209
    %p223 = scmp.eq.s32.totalorder %s19, 1
    %p224 = por %p222, %p223
    %p226 = scmp.ne.s32.totalorder %s209, %s225
    %p227 = scmp.eq.s32.totalorder %s19, 0
    %p228 = por %p226, %p227
    %p229 = scmp.le.s32.totalorder 1, %s13
    %p230 = scmp.lt.s32.totalorder %s13, 3
    %p231 = pnand %p229, %p230
    %p232 = pneg %p231
    // Predicated region
    $region9: #{qencoders_forward.3} parent=5 // pred_check
      _
    $region10: #{qencoders_forward.3} parent=5 // pred_check_branch
      %234 = sbr.rel (%p231) target = $region12
    $region11: #{qencoders_forward.3} parent=5 // pred_region
      %s235 = ssub.s32 %s13, 1
    $region12: #{qencoders_forward.3} parent=5 // pred_fallthru
      _
    %p236 = scmp.lt.s32.totalorder %s13, 2
    // Predicated region
    $region13: #{qencoders_forward.3} parent=5 // pred_check
      %p237 = pneg %p236
    $region14: #{qencoders_forward.3} parent=5 // pred_check_branch
      %239 = sbr.rel (%p237) target = $region16
    $region15: #{qencoders_forward.3} parent=5 // pred_region
      // Predicated region
      $region17: #{qencoders_forward.3} parent=15 // pred_check
        %p240 = pneg %p33
      $region18: #{qencoders_forward.3} parent=15 // pred_check_branch
        %242 = sbr.rel (%p240) target = $region20
      $region19: #{qencoders_forward.3} parent=15 // pred_region
        %p243 = scmp.lt.s32.totalorder %s13, 1
        %s244 = scalar_select %p243, %s13, 1
        %s245 = smul.addr %s244, 24
        %s246 = smul.addr %s245, 2
        %s247 = scalar_lea.vmem %s0, %s246
      $region20: #{qencoders_forward.3} parent=15 // pred_fallthru
        _
      // Predicated region
      $region21: #{qencoders_forward.3} parent=15 // pred_check
        %p248 = pneg %p59
      $region22: #{qencoders_forward.3} parent=15 // pred_check_branch
        %250 = sbr.rel (%p248) target = $region24
      $region23: #{qencoders_forward.3} parent=15 // pred_region
        %p251 = scmp.lt.s32.totalorder %s13, 1
        %s252 = scalar_select %p251, %s13, 1
        %s253 = smul.addr %s252, 2
        %s254 = smul.addr %s253, 8
        %s255 = scalar_lea.vmem %s1, %s254
      $region24: #{qencoders_forward.3} parent=15 // pred_fallthru
        _
      // Predicated region
      $region25: #{qencoders_forward.3} parent=15 // pred_check
        %p256 = pneg %p85
      $region26: #{qencoders_forward.3} parent=15 // pred_check_branch
        %258 = sbr.rel (%p256) target = $region28
      $region27: #{qencoders_forward.3} parent=15 // pred_region
        %p259 = scmp.lt.s32.totalorder %s13, 1
        %s260 = scalar_select %p259, %s13, 1
        %s261 = smul.addr %s260, 2
        %s262 = smul.addr %s261, 8
        %s263 = scalar_lea.vmem %s2, %s262
      $region28: #{qencoders_forward.3} parent=15 // pred_fallthru
        _
      // Predicated region
      $region29: #{qencoders_forward.3} parent=15 // pred_check
        %p264 = pneg %p111
      $region30: #{qencoders_forward.3} parent=15 // pred_check_branch
        %266 = sbr.rel (%p264) target = $region32
      $region31: #{qencoders_forward.3} parent=15 // pred_region
        %p267 = scmp.lt.s32.totalorder %s13, 1
        %s268 = scalar_select %p267, %s13, 1
        %s269 = smul.addr %s268, 2
        %s270 = smul.addr %s269, 8
        %s271 = scalar_lea.vmem %s3, %s270
      $region32: #{qencoders_forward.3} parent=15 // pred_fallthru
        _
      // Predicated region
      $region33: #{qencoders_forward.3} parent=15 // pred_check
        %p272 = pneg %p137
      $region34: #{qencoders_forward.3} parent=15 // pred_check_branch
        %274 = sbr.rel (%p272) target = $region36
      $region35: #{qencoders_forward.3} parent=15 // pred_region
        %p275 = scmp.lt.s32.totalorder %s13, 1
        %s276 = scalar_select %p275, %s13, 1
        %s277 = smul.addr %s276, 2
        %s278 = smul.addr %s277, 8
        %s279 = scalar_lea.vmem %s4, %s278
      $region36: #{qencoders_forward.3} parent=15 // pred_fallthru
        _
      // Predicated region
      $region37: #{qencoders_forward.3} parent=15 // pred_check
        %p280 = pneg %p163
      $region38: #{qencoders_forward.3} parent=15 // pred_check_branch
        %282 = sbr.rel (%p280) target = $region40
      $region39: #{qencoders_forward.3} parent=15 // pred_region
        %p283 = scmp.lt.s32.totalorder %s13, 1
        %s284 = scalar_select %p283, %s13, 1
        %s285 = scalar_lea.vmem %s5, %s284
      $region40: #{qencoders_forward.3} parent=15 // pred_fallthru
        _
      // Predicated region
      $region41: #{qencoders_forward.3} parent=15 // pred_check
        %p286 = pneg %p189
      $region42: #{qencoders_forward.3} parent=15 // pred_check_branch
        %288 = sbr.rel (%p286) target = $region44
      $region43: #{qencoders_forward.3} parent=15 // pred_region
        %p289 = scmp.lt.s32.totalorder %s13, 1
        %s290 = scalar_select %p289, %s13, 1
        %s291 = scalar_lea.vmem %s6, %s290
      $region44: #{qencoders_forward.3} parent=15 // pred_fallthru
        _
    $region16: #{qencoders_forward.3} parent=5 // pred_fallthru
      _
    %p292 = scmp.le.s32.totalorder 1, %s13
    %p293 = scmp.lt.s32.totalorder %s13, 3
    %p294 = pnand %p292, %p293
    %p295 = pneg %p294
    // Predicated region
    $region45: #{qencoders_forward.3} parent=5 // pred_check
      _
    $region46: #{qencoders_forward.3} parent=5 // pred_check_branch
      %297 = sbr.rel (%p294) target = $region48
    $region47: #{qencoders_forward.3} parent=5 // pred_region
      %s298 = ssub.s32 %s13, 1
      %p299 = scmp.lt.s32.totalorder %s18, 1
      %s300 = scalar_select %p299, %s18, 1
      %s301 = smul.addr %s300, 24
      %s302 = smul.addr %s301, 2
      %s303 = scalar_lea.vmem %s0, %s302
      %p304 = pneg %p39
      %p305 = pneg %p36
      %p306 = scmp.lt.s32.totalorder %s18, 1
      %s307 = scalar_select %p306, %s18, 1
      %s308 = smul.addr %s307, 2
      %s309 = smul.addr %s308, 8
      %s310 = scalar_lea.vmem %s1, %s309
      %p311 = pneg %p65
      %p312 = pneg %p62
      %p313 = scmp.lt.s32.totalorder %s18, 1
      %s314 = scalar_select %p313, %s18, 1
      %s315 = smul.addr %s314, 2
      %s316 = smul.addr %s315, 8
      %s317 = scalar_lea.vmem %s2, %s316
      %p318 = pneg %p91
      %p319 = pneg %p88
      %p320 = scmp.lt.s32.totalorder %s18, 1
      %s321 = scalar_select %p320, %s18, 1
      %s322 = smul.addr %s321, 2
      %s323 = smul.addr %s322, 8
      %s324 = scalar_lea.vmem %s3, %s323
      %p325 = pneg %p117
      %p326 = pneg %p114
      %p327 = scmp.lt.s32.totalorder %s18, 1
      %s328 = scalar_select %p327, %s18, 1
      %s329 = smul.addr %s328, 2
      %s330 = smul.addr %s329, 8
      %s331 = scalar_lea.vmem %s4, %s330
      %p332 = pneg %p143
      %p333 = pneg %p140
      %p334 = scmp.lt.s32.totalorder %s18, 1
      %s335 = scalar_select %p334, %s18, 1
      %s336 = scalar_lea.vmem %s5, %s335
      %p337 = pneg %p169
      %p338 = pneg %p166
      %p339 = scmp.lt.s32.totalorder %s18, 1
      %s340 = scalar_select %p339, %s18, 1
      %s341 = scalar_lea.vmem %s6, %s340
      %p342 = pneg %p195
      %p343 = pneg %p192
      %p344 = pneg %p221
      %p345 = pneg %p218
      %p346 = scmp.lt.s32.totalorder %s18, 1
      %s347 = scalar_select %p346, %s18, 1
      %s348 = smul.addr %s347, 4
      %s349 = scalar_lea.vmem %s7, %s348
      %p350 = scmp.lt.s32.totalorder %s18, 1
      %s351 = scalar_select %p350, %s18, 1
      %s352 = smul.addr %s351, 24
      %s353 = smul.addr %s352, 2
      %s354 = scalar_lea.vmem %s0, %s353
      %p355 = scmp.lt.s32.totalorder %s18, 1
      %s356 = scalar_select %p355, %s18, 1
      %s357 = smul.addr %s356, 2
      %s358 = smul.addr %s357, 8
      %s359 = scalar_lea.vmem %s1, %s358
      %p360 = scmp.lt.s32.totalorder %s18, 1
      %s361 = scalar_select %p360, %s18, 1
      %s362 = smul.addr %s361, 2
      %s363 = smul.addr %s362, 8
      %s364 = scalar_lea.vmem %s2, %s363
      %p365 = scmp.lt.s32.totalorder %s18, 1
      %s366 = scalar_select %p365, %s18, 1
      %s367 = smul.addr %s366, 2
      %s368 = smul.addr %s367, 8
      %s369 = scalar_lea.vmem %s3, %s368
      %p370 = scmp.lt.s32.totalorder %s18, 1
      %s371 = scalar_select %p370, %s18, 1
      %s372 = smul.addr %s371, 2
      %s373 = smul.addr %s372, 8
      %s374 = scalar_lea.vmem %s4, %s373
      %p375 = scmp.lt.s32.totalorder %s18, 1
      %s376 = scalar_select %p375, %s18, 1
      %s377 = scalar_lea.vmem %s5, %s376
      %p378 = scmp.lt.s32.totalorder %s18, 1
      %s379 = scalar_select %p378, %s18, 1
      %s380 = scalar_lea.vmem %s6, %s379
      %p381 = scmp.lt.s32.totalorder %s18, 1
      %s382 = scalar_select %p381, %s18, 1
      %s383 = smul.addr %s382, 4
      %s384 = scalar_lea.vmem %s7, %s383
      %v385 = vld [vmem:[%s354] sm:$0x3f]
      %v386 = vld [vmem:[%s354 + $0x6] sm:$0x3f]
      %v387 = vld [vmem:[%s354 + $0xc] sm:$0x3f]
      %v388 = vld [vmem:[%s354 + $0x12] sm:$0x3f]
      %v389 = vld [vmem:[%s354 + $0x18] sm:$0x3f]
      %v390 = vld [vmem:[%s354 + $0x1e] sm:$0x3f]
      %v391 = vld [vmem:[%s354 + $0x24] sm:$0x3f]
      %v392 = vld [vmem:[%s354 + $0x2a] sm:$0x3f]
      %v401 = vperm.slane %v385, 0
      %v402 = vperm.slane %v385, 2
      %v403 = vperm.slane %v386, 0
      %v404 = vperm.slane %v386, 2
      %v405 = vperm.slane %v387, 0
      %v406 = vperm.slane %v387, 2
      %v407 = vperm.slane %v388, 0
      %v408 = vperm.slane %v388, 2
      %v409 = vperm.slane %v389, 0
      %v410 = vperm.slane %v389, 2
      %v411 = vperm.slane %v390, 0
      %v412 = vperm.slane %v390, 2
      %v413 = vperm.slane %v391, 0
      %v414 = vperm.slane %v391, 2
      %v415 = vperm.slane %v392, 0
      %v416 = vperm.slane %v392, 2
      %vm417 = vcmask 1041409
      %v418 = vsel %vm417, %v403, %v401
      %vm419 = vcmask 1042434
      %v420 = vsel %vm419, %v405, %v418
      %vm421 = vcmask 1043459
      %v422 = vsel %vm421, %v407, %v420
      %vm423 = vcmask 1044484
      %v424 = vsel %vm423, %v409, %v422
      %vm425 = vcmask 1045509
      %v426 = vsel %vm425, %v411, %v424
      %vm427 = vcmask 1046534
      %v428 = vsel %vm427, %v413, %v426
      %vm429 = vcmask 1047559
      %v430 = vsel %vm429, %v415, %v428
      %v431 = vsel %vm417, %v404, %v402
      %v432 = vsel %vm419, %v406, %v431
      %v433 = vsel %vm421, %v408, %v432
      %v434 = vsel %vm423, %v410, %v433
      %v435 = vsel %vm425, %v412, %v434
      %v436 = vsel %vm427, %v414, %v435
      %v437 = vsel %vm429, %v416, %v436
      %440 = vrot.lane.b32.xlu0 %v430, 127
      %v441 = vpop.permute.xlu0 %440
      %442 = vrot.lane.b32.xlu0 %v437, 127
      %v443 = vpop.permute.xlu0 %442
      %vm444 = vcmask 1039360
      %v445 = vsel %vm444, %v441, %v443
      %448 = vrot.lane.b32.xlu0 %v430, 126
      %v449 = vpop.permute.xlu0 %448
      %450 = vrot.lane.b32.xlu0 %v437, 126
      %v451 = vpop.permute.xlu0 %450
      %vm452 = vcmask 1031168
      %v453 = vsel %vm452, %v449, %v451
      %456 = vrot.lane.b32.xlu0 %v430, 112
      %v457 = vpop.permute.xlu0 %456
      %458 = vrot.lane.b32.xlu0 %v437, 112
      %v459 = vpop.permute.xlu0 %458
      %vm460 = vcmask 916480
      %v461 = vsel %vm460, %v457, %v459
      %464 = vrot.lane.b32.xlu0 %v430, 111
      %v465 = vpop.permute.xlu0 %464
      %466 = vrot.lane.b32.xlu0 %v437, 111
      %v467 = vpop.permute.xlu0 %466
      %vm468 = vcmask 908288
      %v469 = vsel %vm468, %v465, %v467
      %472 = vrot.lane.b32.xlu0 %v430, 110
      %v473 = vpop.permute.xlu0 %472
      %474 = vrot.lane.b32.xlu0 %v437, 110
      %v475 = vpop.permute.xlu0 %474
      %vm476 = vcmask 900096
      %v477 = vsel %vm476, %v473, %v475
      %480 = vrot.lane.b32.xlu0 %v430, 96
      %v481 = vpop.permute.xlu0 %480
      %482 = vrot.lane.b32.xlu0 %v437, 96
      %v483 = vpop.permute.xlu0 %482
      %vm484 = vcmask 785408
      %v485 = vsel %vm484, %v481, %v483
      %v488 = vperm.slane %v385, 4
      %v489 = vperm.slane %v386, 4
      %v490 = vperm.slane %v387, 4
      %v491 = vperm.slane %v388, 4
      %v492 = vperm.slane %v389, 4
      %v493 = vperm.slane %v390, 4
      %v494 = vperm.slane %v391, 4
      %v495 = vperm.slane %v392, 4
      %v496 = vsel %vm417, %v489, %v488
      %v497 = vsel %vm419, %v490, %v496
      %v498 = vsel %vm421, %v491, %v497
      %v499 = vsel %vm423, %v492, %v498
      %v500 = vsel %vm425, %v493, %v499
      %v501 = vsel %vm427, %v494, %v500
      %v502 = vsel %vm429, %v495, %v501
      %503 = vrot.lane.b32.xlu0 %v430, 95
      %v504 = vpop.permute.xlu0 %503
      %505 = vrot.lane.b32.xlu0 %v437, 95
      %v506 = vpop.permute.xlu0 %505
      %507 = vrot.lane.b32.xlu0 %v502, 95
      %v508 = vpop.permute.xlu0 %507
      %vm509 = vcmask 777216
      %v510 = vsel %vm509, %v504, %v506
      %v511 = vsel %vm509, %v506, %v508
      %514 = vrot.lane.b32.xlu0 %v430, 94
      %v515 = vpop.permute.xlu0 %514
      %516 = vrot.lane.b32.xlu0 %v437, 94
      %v517 = vpop.permute.xlu0 %516
      %518 = vrot.lane.b32.xlu0 %v502, 94
      %v519 = vpop.permute.xlu0 %518
      %vm520 = vcmask 769024
      %v521 = vsel %vm520, %v515, %v517
      %v522 = vsel %vm520, %v517, %v519
      %v525 = vperm.slane %v385, 1
      %v526 = vperm.slane %v385, 3
      %v527 = vperm.slane %v386, 1
      %v528 = vperm.slane %v386, 3
      %v529 = vperm.slane %v387, 1
      %v530 = vperm.slane %v387, 3
      %v531 = vperm.slane %v388, 1
      %v532 = vperm.slane %v388, 3
      %v533 = vperm.slane %v389, 1
      %v534 = vperm.slane %v389, 3
      %v535 = vperm.slane %v390, 1
      %v536 = vperm.slane %v390, 3
      %v537 = vperm.slane %v391, 1
      %v538 = vperm.slane %v391, 3
      %v539 = vperm.slane %v392, 1
      %v540 = vperm.slane %v392, 3
      %v541 = vsel %vm417, %v527, %v525
      %v542 = vsel %vm419, %v529, %v541
      %v543 = vsel %vm421, %v531, %v542
      %v544 = vsel %vm423, %v533, %v543
      %v545 = vsel %vm425, %v535, %v544
      %v546 = vsel %vm427, %v537, %v545
      %v547 = vsel %vm429, %v539, %v546
      %v548 = vsel %vm417, %v528, %v526
      %v549 = vsel %vm419, %v530, %v548
      %v550 = vsel %vm421, %v532, %v549
      %v551 = vsel %vm423, %v534, %v550
      %v552 = vsel %vm425, %v536, %v551
      %v553 = vsel %vm427, %v538, %v552
      %v554 = vsel %vm429, %v540, %v553
      %555 = vrot.lane.b32.xlu0 %v547, 127
      %v556 = vpop.permute.xlu0 %555
      %557 = vrot.lane.b32.xlu0 %v554, 127
      %v558 = vpop.permute.xlu0 %557
      %v559 = vsel %vm444, %v556, %v558
      %560 = vrot.lane.b32.xlu0 %v547, 126
      %v561 = vpop.permute.xlu0 %560
      %562 = vrot.lane.b32.xlu0 %v554, 126
      %v563 = vpop.permute.xlu0 %562
      %v564 = vsel %vm452, %v561, %v563
      %565 = vrot.lane.b32.xlu0 %v547, 112
      %v566 = vpop.permute.xlu0 %565
      %567 = vrot.lane.b32.xlu0 %v554, 112
      %v568 = vpop.permute.xlu0 %567
      %v569 = vsel %vm460, %v566, %v568
      %570 = vrot.lane.b32.xlu0 %v547, 111
      %v571 = vpop.permute.xlu0 %570
      %572 = vrot.lane.b32.xlu0 %v554, 111
      %v573 = vpop.permute.xlu0 %572
      %v574 = vsel %vm468, %v571, %v573
      %575 = vrot.lane.b32.xlu0 %v547, 110
      %v576 = vpop.permute.xlu0 %575
      %577 = vrot.lane.b32.xlu0 %v554, 110
      %v578 = vpop.permute.xlu0 %577
      %v579 = vsel %vm476, %v576, %v578
      %580 = vrot.lane.b32.xlu0 %v547, 96
      %v581 = vpop.permute.xlu0 %580
      %582 = vrot.lane.b32.xlu0 %v554, 96
      %v583 = vpop.permute.xlu0 %582
      %v584 = vsel %vm484, %v581, %v583
      %v585 = vperm.slane %v385, 5
      %v586 = vperm.slane %v386, 5
      %v587 = vperm.slane %v387, 5
      %v588 = vperm.slane %v388, 5
      %v589 = vperm.slane %v389, 5
      %v590 = vperm.slane %v390, 5
      %v591 = vperm.slane %v391, 5
      %v592 = vperm.slane %v392, 5
      %v593 = vsel %vm417, %v586, %v585
      %v594 = vsel %vm419, %v587, %v593
      %v595 = vsel %vm421, %v588, %v594
      %v596 = vsel %vm423, %v589, %v595
      %v597 = vsel %vm425, %v590, %v596
      %v598 = vsel %vm427, %v591, %v597
      %v599 = vsel %vm429, %v592, %v598
      %600 = vrot.lane.b32.xlu0 %v547, 95
      %v601 = vpop.permute.xlu0 %600
      %602 = vrot.lane.b32.xlu0 %v554, 95
      %v603 = vpop.permute.xlu0 %602
      %604 = vrot.lane.b32.xlu0 %v599, 95
      %v605 = vpop.permute.xlu0 %604
      %v606 = vsel %vm509, %v601, %v603
      %v607 = vsel %vm509, %v603, %v605
      %608 = vrot.lane.b32.xlu0 %v547, 94
      %v609 = vpop.permute.xlu0 %608
      %610 = vrot.lane.b32.xlu0 %v554, 94
      %v611 = vpop.permute.xlu0 %610
      %612 = vrot.lane.b32.xlu0 %v599, 94
      %v613 = vpop.permute.xlu0 %612
      %v614 = vsel %vm520, %v609, %v611
      %v615 = vsel %vm520, %v611, %v613
      %616 = vrot.lane.b32.xlu0 %v559, 96
      %v617 = vpop.permute.xlu0 %616
      %618 = vrot.lane.b32.xlu0 %v558, 96
      %v619 = vpop.permute.xlu0 %618
      %620 = vrot.lane.b32.xlu0 %v564, 96
      %v621 = vpop.permute.xlu0 %620
      %622 = vrot.lane.b32.xlu0 %v563, 96
      %v623 = vpop.permute.xlu0 %622
      %624 = vrot.lane.b32.xlu0 %v569, 96
      %v625 = vpop.permute.xlu0 %624
      %626 = vrot.lane.b32.xlu0 %v568, 96
      %v627 = vpop.permute.xlu0 %626
      %628 = vrot.lane.b32.xlu0 %v574, 96
      %v629 = vpop.permute.xlu0 %628
      %630 = vrot.lane.b32.xlu0 %v573, 96
      %v631 = vpop.permute.xlu0 %630
      %632 = vrot.lane.b32.xlu0 %v579, 96
      %v633 = vpop.permute.xlu0 %632
      %634 = vrot.lane.b32.xlu0 %v578, 96
      %v635 = vpop.permute.xlu0 %634
      %636 = vrot.lane.b32.xlu0 %v584, 96
      %v637 = vpop.permute.xlu0 %636
      %638 = vrot.lane.b32.xlu0 %v583, 96
      %v639 = vpop.permute.xlu0 %638
      %640 = vrot.lane.b32.xlu0 %v606, 96
      %v641 = vpop.permute.xlu0 %640
      %642 = vrot.lane.b32.xlu0 %v607, 96
      %v643 = vpop.permute.xlu0 %642
      %644 = vrot.lane.b32.xlu0 %v614, 96
      %v645 = vpop.permute.xlu0 %644
      %646 = vrot.lane.b32.xlu0 %v615, 96
      %v647 = vpop.permute.xlu0 %646
      %v648 = vsel %vm484, %v617, %v619
      %v649 = vsel %vm484, %v621, %v623
      %v650 = vsel %vm484, %v625, %v627
      %v651 = vsel %vm484, %v629, %v631
      %v652 = vsel %vm484, %v633, %v635
      %v653 = vsel %vm484, %v637, %v639
      %v654 = vsel %vm484, %v641, %v643
      %v655 = vsel %vm484, %v645, %v647
      %v683 = vsel %vm484, %v437, %v581
      %v684 = vsel %vm484, %v443, %v617
      %v685 = vsel %vm484, %v451, %v621
      %v686 = vsel %vm484, %v459, %v625
      %v687 = vsel %vm484, %v467, %v629
      %v688 = vsel %vm484, %v475, %v633
      %v689 = vsel %vm484, %v483, %v637
      %v690 = vsel %vm484, %v511, %v641
      %v691 = vsel %vm484, %v522, %v645
      %v692 = vld [vmem:[%s359] sm:$0xff]
      %v693 = vld [vmem:[%s359 + $0x8] sm:$0xff]
      %v694 = vld [vmem:[%s364] sm:$0xff]
      %v695 = vld [vmem:[%s364 + $0x8] sm:$0xff]
      %697 = vset.pattern.permute.xlu0 0
      %698 = vperm.xlu0 %697, %v694
      %v699 = vpop.permute.xlu0 %698
      %702 = vset.pattern.permute.xlu0 0
      %703 = vperm.xlu0 %702, %v695
      %v704 = vpop.permute.xlu0 %703
      %vm706 = vcmask 588800
      %v708 = vsel %vm706, %v692, 0
      %v711 = vsel %vm706, %v693, 0
      %713 = vmatpush.msra.mxu0 0.0
      %714 = vmatpush.msra.mxu0 0.0
      %715 = vmatpush.msra.mxu0 0.0
      %716 = vmatpush.msra.mxu0 0.0
      %717 = vmatpush.msra.mxu0 0.0
      %718 = vmatpush.msra.mxu0 0.0
      %719 = vmatpush.msra.mxu0 0.0
      %720 = vmatpush.msra.mxu0 %v521
      %721 = vmatpush.msra.mxu0 %v510
      %722 = vmatpush.msra.mxu0 %v485
      %723 = vmatpush.msra.mxu0 %v477
      %724 = vmatpush.msra.mxu0 %v469
      %725 = vmatpush.msra.mxu0 %v461
      %726 = vmatpush.msra.mxu0 %v453
      %727 = vmatpush.msra.mxu0 %v445
      %728 = vmatpush.msra.mxu0 %v430
      %729 = vmatmul.f32.gmra.mxu0 %v708
      %v730 = vpop.f32.mrf.mxu0
      %v731 = vadd.f32 %v699, %v730
      %732 = vmatmul.f32.gmra.mxu0 %v711
      %v733 = vpop.f32.mrf.mxu0
      %v734 = vadd.f32 %v704, %v733
      %735 = vdwg.mxu0
      %736 = vmatpush.msra.mxu0 0.0
      %737 = vmatpush.msra.mxu0 0.0
      %738 = vmatpush.msra.mxu0 0.0
      %739 = vmatpush.msra.mxu0 0.0
      %740 = vmatpush.msra.mxu0 0.0
      %741 = vmatpush.msra.mxu0 0.0
      %742 = vmatpush.msra.mxu0 0.0
      %743 = vmatpush.msra.mxu0 %v691
      %744 = vmatpush.msra.mxu0 %v690
      %745 = vmatpush.msra.mxu0 %v689
      %746 = vmatpush.msra.mxu0 %v688
      %747 = vmatpush.msra.mxu0 %v687
      %748 = vmatpush.msra.mxu0 %v686
      %749 = vmatpush.msra.mxu0 %v685
      %750 = vmatpush.msra.mxu0 %v684
      %751 = vmatpush.msra.mxu0 %v683
      %752 = vmatmul.f32.gmra.mxu0 %v708
      %v753 = vpop.f32.mrf.mxu0
      %v754 = vadd.f32 %v699, %v753
      %755 = vmatmul.f32.gmra.mxu0 %v711
      %v756 = vpop.f32.mrf.mxu0
      %v757 = vadd.f32 %v704, %v756
      %758 = vdwg.mxu0
      %759 = vmatpush.msra.mxu0 0.0
      %760 = vmatpush.msra.mxu0 0.0
      %761 = vmatpush.msra.mxu0 0.0
      %762 = vmatpush.msra.mxu0 0.0
      %763 = vmatpush.msra.mxu0 0.0
      %764 = vmatpush.msra.mxu0 0.0
      %765 = vmatpush.msra.mxu0 0.0
      %766 = vmatpush.msra.mxu0 %v655
      %767 = vmatpush.msra.mxu0 %v654
      %768 = vmatpush.msra.mxu0 %v653
      %769 = vmatpush.msra.mxu0 %v652
      %770 = vmatpush.msra.mxu0 %v651
      %771 = vmatpush.msra.mxu0 %v650
      %772 = vmatpush.msra.mxu0 %v649
      %773 = vmatpush.msra.mxu0 %v648
      %774 = vmatpush.msra.mxu0 %v584
      %775 = vmatmul.f32.gmra.mxu0 %v708
      %v776 = vpop.f32.mrf.mxu0
      %v777 = vadd.f32 %v699, %v776
      %778 = vmatmul.f32.gmra.mxu0 %v711
      %v779 = vpop.f32.mrf.mxu0
      %v780 = vadd.f32 %v704, %v779
      %781 = vdwg.mxu0
      %782 = vmatpush.msra.mxu0 0.0
      %783 = vmatpush.msra.mxu0 0.0
      %784 = vmatpush.msra.mxu0 0.0
      %785 = vmatpush.msra.mxu0 0.0
      %786 = vmatpush.msra.mxu0 0.0
      %787 = vmatpush.msra.mxu0 0.0
      %788 = vmatpush.msra.mxu0 0.0
      %789 = vmatpush.msra.mxu0 %v647
      %790 = vmatpush.msra.mxu0 %v643
      %791 = vmatpush.msra.mxu0 %v639
      %792 = vmatpush.msra.mxu0 %v635
      %793 = vmatpush.msra.mxu0 %v631
      %794 = vmatpush.msra.mxu0 %v627
      %795 = vmatpush.msra.mxu0 %v623
      %796 = vmatpush.msra.mxu0 %v619
      %797 = vmatpush.msra.mxu0 %v583
      %798 = vmatmul.f32.gmra.mxu0 %v708
      %v799 = vpop.f32.mrf.mxu0
      %v800 = vadd.f32 %v699, %v799
      %801 = vmatmul.f32.gmra.mxu0 %v711
      %v802 = vpop.f32.mrf.mxu0
      %v803 = vadd.f32 %v704, %v802
      %804 = vdwg.mxu0
      %v805 = vmul.f32 %v731, 0.5
      %v806 = vmul.f32 %v754, 0.5
      %v807 = vmul.f32 %v777, 0.5
      %v808 = vmul.f32 %v800, 0.5
      %v809 = vmul.f32 %v734, 0.5
      %v810 = vmul.f32 %v757, 0.5
      %v811 = vmul.f32 %v780, 0.5
      %v812 = vmul.f32 %v803, 0.5
      %v813 = vmul.f32 %v731, %v731
      %v814 = vmul.f32 %v754, %v754
      %v815 = vmul.f32 %v777, %v777
      %v816 = vmul.f32 %v800, %v800
      %v817 = vmul.f32 %v734, %v734
      %v818 = vmul.f32 %v757, %v757
      %v819 = vmul.f32 %v780, %v780
      %v820 = vmul.f32 %v803, %v803
      %v821 = vmul.f32 %v813, %v731
      %v822 = vmul.f32 %v814, %v754
      %v823 = vmul.f32 %v815, %v777
      %v824 = vmul.f32 %v816, %v800
      %v825 = vmul.f32 %v817, %v734
      %v826 = vmul.f32 %v818, %v757
      %v827 = vmul.f32 %v819, %v780
      %v828 = vmul.f32 %v820, %v803
      %v829 = vmul.f32 %v821, 0.044715
      %v830 = vmul.f32 %v822, 0.044715
      %v831 = vmul.f32 %v823, 0.044715
      %v832 = vmul.f32 %v824, 0.044715
      %v833 = vmul.f32 %v825, 0.044715
      %v834 = vmul.f32 %v826, 0.044715
      %v835 = vmul.f32 %v827, 0.044715
      %v836 = vmul.f32 %v828, 0.044715
      %v837 = vadd.f32 %v731, %v829
      %v838 = vadd.f32 %v754, %v830
      %v839 = vadd.f32 %v777, %v831
      %v840 = vadd.f32 %v800, %v832
      %v841 = vadd.f32 %v734, %v833
      %v842 = vadd.f32 %v757, %v834
      %v843 = vadd.f32 %v780, %v835
      %v844 = vadd.f32 %v803, %v836
      %v845 = vmul.f32 %v837, 0.7978846
      %v846 = vmul.f32 %v838, 0.7978846
      %v847 = vmul.f32 %v839, 0.7978846
      %v848 = vmul.f32 %v840, 0.7978846
      %v849 = vmul.f32 %v841, 0.7978846
      %v850 = vmul.f32 %v842, 0.7978846
      %v851 = vmul.f32 %v843, 0.7978846
      %v852 = vmul.f32 %v844, 0.7978846
      %v853 = vtanh.pop %v845
      %v854 = vtanh.pop %v846
      %v855 = vtanh.pop %v847
      %v856 = vtanh.pop %v848
      %v857 = vtanh.pop %v849
      %v858 = vtanh.pop %v850
      %v859 = vtanh.pop %v851
      %v860 = vtanh.pop %v852
      %v861 = vadd.f32 %v853, 1.0
      %v862 = vadd.f32 %v854, 1.0
      %v863 = vadd.f32 %v855, 1.0
      %v864 = vadd.f32 %v856, 1.0
      %v865 = vadd.f32 %v857, 1.0
      %v866 = vadd.f32 %v858, 1.0
      %v867 = vadd.f32 %v859, 1.0
      %v868 = vadd.f32 %v860, 1.0
      %v869 = vmul.f32 %v805, %v861
      %v870 = vmul.f32 %v806, %v862
      %v871 = vmul.f32 %v807, %v863
      %v872 = vmul.f32 %v808, %v864
      %v873 = vmul.f32 %v809, %v865
      %v874 = vmul.f32 %v810, %v866
      %v875 = vmul.f32 %v811, %v867
      %v876 = vmul.f32 %v812, %v868
      %v877 = vld [vmem:[%s369] sm:$0xff]
      %v878 = vld [vmem:[%s369 + $0x8] sm:$0xff]
      %v879 = vld [vmem:[%s374] sm:$0xff]
      %v880 = vld [vmem:[%s374 + $0x8] sm:$0xff]
      %882 = vset.pattern.permute.xlu0 0
      %883 = vperm.xlu0 %882, %v879
      %v884 = vpop.permute.xlu0 %883
      %887 = vset.pattern.permute.xlu0 0
      %888 = vperm.xlu0 %887, %v880
      %v889 = vpop.permute.xlu0 %888
      %vm891 = vcmask 130048
      %v893 = vsel %vm891, %v877, 0
      %v896 = vsel %vm891, %v878, 0
      %898 = vmatpush.msra.mxu0 0.0
      %899 = vmatpush.msra.mxu0 0.0
      %900 = vmatpush.msra.mxu0 0.0
      %901 = vmatpush.msra.mxu0 0.0
      %902 = vmatpush.msra.mxu0 0.0
      %903 = vmatpush.msra.mxu0 0.0
      %904 = vmatpush.msra.mxu0 0.0
      %905 = vmatpush.msra.mxu0 0.0
      %906 = vmatpush.msra.mxu0 0.0
      %907 = vmatpush.msra.mxu0 0.0
      %908 = vmatpush.msra.mxu0 0.0
      %909 = vmatpush.msra.mxu0 0.0
      %910 = vmatpush.msra.mxu0 0.0
      %911 = vmatpush.msra.mxu0 0.0
      %912 = vmatpush.msra.mxu0 %v873
      %913 = vmatpush.msra.mxu0 %v869
      %914 = vmatmul.f32.gmra.mxu0 %v893
      %v915 = vpop.f32.mrf.mxu0
      %v916 = vadd.f32 %v884, %v915
      %917 = vmatmul.f32.gmra.mxu0 %v896
      %v918 = vpop.f32.mrf.mxu0
      %v919 = vadd.f32 %v889, %v918
      %920 = vdwg.mxu0
      %921 = vmatpush.msra.mxu0 0.0
      %922 = vmatpush.msra.mxu0 0.0
      %923 = vmatpush.msra.mxu0 0.0
      %924 = vmatpush.msra.mxu0 0.0
      %925 = vmatpush.msra.mxu0 0.0
      %926 = vmatpush.msra.mxu0 0.0
      %927 = vmatpush.msra.mxu0 0.0
      %928 = vmatpush.msra.mxu0 0.0
      %929 = vmatpush.msra.mxu0 0.0
      %930 = vmatpush.msra.mxu0 0.0
      %931 = vmatpush.msra.mxu0 0.0
      %932 = vmatpush.msra.mxu0 0.0
      %933 = vmatpush.msra.mxu0 0.0
      %934 = vmatpush.msra.mxu0 0.0
      %935 = vmatpush.msra.mxu0 %v874
      %936 = vmatpush.msra.mxu0 %v870
      %937 = vmatmul.f32.gmra.mxu0 %v893
      %v938 = vpop.f32.mrf.mxu0
      %v939 = vadd.f32 %v884, %v938
      %940 = vmatmul.f32.gmra.mxu0 %v896
      %v941 = vpop.f32.mrf.mxu0
      %v942 = vadd.f32 %v889, %v941
      %943 = vdwg.mxu0
      %944 = vmatpush.msra.mxu0 0.0
      %945 = vmatpush.msra.mxu0 0.0
      %946 = vmatpush.msra.mxu0 0.0
      %947 = vmatpush.msra.mxu0 0.0
      %948 = vmatpush.msra.mxu0 0.0
      %949 = vmatpush.msra.mxu0 0.0
      %950 = vmatpush.msra.mxu0 0.0
      %951 = vmatpush.msra.mxu0 0.0
      %952 = vmatpush.msra.mxu0 0.0
      %953 = vmatpush.msra.mxu0 0.0
      %954 = vmatpush.msra.mxu0 0.0
      %955 = vmatpush.msra.mxu0 0.0
      %956 = vmatpush.msra.mxu0 0.0
      %957 = vmatpush.msra.mxu0 0.0
      %958 = vmatpush.msra.mxu0 %v875
      %959 = vmatpush.msra.mxu0 %v871
      %960 = vmatmul.f32.gmra.mxu0 %v893
      %v961 = vpop.f32.mrf.mxu0
      %v962 = vadd.f32 %v884, %v961
      %963 = vmatmul.f32.gmra.mxu0 %v896
      %v964 = vpop.f32.mrf.mxu0
      %v965 = vadd.f32 %v889, %v964
      %966 = vdwg.mxu0
      %967 = vmatpush.msra.mxu0 0.0
      %968 = vmatpush.msra.mxu0 0.0
      %969 = vmatpush.msra.mxu0 0.0
      %970 = vmatpush.msra.mxu0 0.0
      %971 = vmatpush.msra.mxu0 0.0
      %972 = vmatpush.msra.mxu0 0.0
      %973 = vmatpush.msra.mxu0 0.0
      %974 = vmatpush.msra.mxu0 0.0
      %975 = vmatpush.msra.mxu0 0.0
      %976 = vmatpush.msra.mxu0 0.0
      %977 = vmatpush.msra.mxu0 0.0
      %978 = vmatpush.msra.mxu0 0.0
      %979 = vmatpush.msra.mxu0 0.0
      %980 = vmatpush.msra.mxu0 0.0
      %981 = vmatpush.msra.mxu0 %v876
      %982 = vmatpush.msra.mxu0 %v872
      %983 = vmatmul.f32.gmra.mxu0 %v893
      %v984 = vpop.f32.mrf.mxu0
      %v985 = vadd.f32 %v884, %v984
      %986 = vmatmul.f32.gmra.mxu0 %v896
      %v987 = vpop.f32.mrf.mxu0
      %v988 = vadd.f32 %v889, %v987
      %989 = vdwg.mxu0
      %v990 = vmul.f32 %v916, 0.5
      %v991 = vmul.f32 %v939, 0.5
      %v992 = vmul.f32 %v962, 0.5
      %v993 = vmul.f32 %v985, 0.5
      %v994 = vmul.f32 %v919, 0.5
      %v995 = vmul.f32 %v942, 0.5
      %v996 = vmul.f32 %v965, 0.5
      %v997 = vmul.f32 %v988, 0.5
      %v998 = vmul.f32 %v916, %v916
      %v999 = vmul.f32 %v939, %v939
      %v1000 = vmul.f32 %v962, %v962
      %v1001 = vmul.f32 %v985, %v985
      %v1002 = vmul.f32 %v919, %v919
      %v1003 = vmul.f32 %v942, %v942
      %v1004 = vmul.f32 %v965, %v965
      %v1005 = vmul.f32 %v988, %v988
      %v1006 = vmul.f32 %v998, %v916
      %v1007 = vmul.f32 %v999, %v939
      %v1008 = vmul.f32 %v1000, %v962
      %v1009 = vmul.f32 %v1001, %v985
      %v1010 = vmul.f32 %v1002, %v919
      %v1011 = vmul.f32 %v1003, %v942
      %v1012 = vmul.f32 %v1004, %v965
      %v1013 = vmul.f32 %v1005, %v988
      %v1014 = vmul.f32 %v1006, 0.044715
      %v1015 = vmul.f32 %v1007, 0.044715
      %v1016 = vmul.f32 %v1008, 0.044715
      %v1017 = vmul.f32 %v1009, 0.044715
      %v1018 = vmul.f32 %v1010, 0.044715
      %v1019 = vmul.f32 %v1011, 0.044715
      %v1020 = vmul.f32 %v1012, 0.044715
      %v1021 = vmul.f32 %v1013, 0.044715
      %v1022 = vadd.f32 %v916, %v1014
      %v1023 = vadd.f32 %v939, %v1015
      %v1024 = vadd.f32 %v962, %v1016
      %v1025 = vadd.f32 %v985, %v1017
      %v1026 = vadd.f32 %v919, %v1018
      %v1027 = vadd.f32 %v942, %v1019
      %v1028 = vadd.f32 %v965, %v1020
      %v1029 = vadd.f32 %v988, %v1021
      %v1030 = vmul.f32 %v1022, 0.7978846
      %v1031 = vmul.f32 %v1023, 0.7978846
      %v1032 = vmul.f32 %v1024, 0.7978846
      %v1033 = vmul.f32 %v1025, 0.7978846
      %v1034 = vmul.f32 %v1026, 0.7978846
      %v1035 = vmul.f32 %v1027, 0.7978846
      %v1036 = vmul.f32 %v1028, 0.7978846
      %v1037 = vmul.f32 %v1029, 0.7978846
      %v1038 = vtanh.pop %v1030
      %v1039 = vtanh.pop %v1031
      %v1040 = vtanh.pop %v1032
      %v1041 = vtanh.pop %v1033
      %v1042 = vtanh.pop %v1034
      %v1043 = vtanh.pop %v1035
      %v1044 = vtanh.pop %v1036
      %v1045 = vtanh.pop %v1037
      %v1046 = vadd.f32 %v1038, 1.0
      %v1047 = vadd.f32 %v1039, 1.0
      %v1048 = vadd.f32 %v1040, 1.0
      %v1049 = vadd.f32 %v1041, 1.0
      %v1050 = vadd.f32 %v1042, 1.0
      %v1051 = vadd.f32 %v1043, 1.0
      %v1052 = vadd.f32 %v1044, 1.0
      %v1053 = vadd.f32 %v1045, 1.0
      %v1054 = vmul.f32 %v990, %v1046
      %v1055 = vmul.f32 %v991, %v1047
      %v1056 = vmul.f32 %v992, %v1048
      %v1057 = vmul.f32 %v993, %v1049
      %v1058 = vmul.f32 %v994, %v1050
      %v1059 = vmul.f32 %v995, %v1051
      %v1060 = vmul.f32 %v996, %v1052
      %v1061 = vmul.f32 %v997, %v1053
      %v1062 = vld [vmem:[%s377] sm:$0x1]
      %v1063 = vld [vmem:[%s380] sm:$0x1]
      %1065 = vset.pattern.permute.xlu0 0
      %1066 = vperm.xlu0 %1065, %v1063
      %v1067 = vpop.permute.xlu0 %1066
      %v1069 = vperm.slane %v1067, 0
      %v1071 = vsel %vm891, %v1062, 0
      %1073 = vmatpush.msra.mxu0 0.0
      %1074 = vmatpush.msra.mxu0 0.0
      %1075 = vmatpush.msra.mxu0 0.0
      %1076 = vmatpush.msra.mxu0 0.0
      %1077 = vmatpush.msra.mxu0 0.0
      %1078 = vmatpush.msra.mxu0 0.0
      %1079 = vmatpush.msra.mxu0 0.0
      %1080 = vmatpush.msra.mxu0 0.0
      %1081 = vmatpush.msra.mxu0 0.0
      %1082 = vmatpush.msra.mxu0 0.0
      %1083 = vmatpush.msra.mxu0 0.0
      %1084 = vmatpush.msra.mxu0 0.0
      %1085 = vmatpush.msra.mxu0 0.0
      %1086 = vmatpush.msra.mxu0 0.0
      %1087 = vmatpush.msra.mxu0 %v1058
      %1088 = vmatpush.msra.mxu0 %v1054
      %1089 = vmatmul.f32.gmra.mxu0 %v1071
      %v1090 = vpop.f32.mrf.mxu0
      %v1091 = vadd.f32 %v1069, %v1090
      %1092 = vdwg.mxu0
      %1093 = vmatpush.msra.mxu0 0.0
      %1094 = vmatpush.msra.mxu0 0.0
      %1095 = vmatpush.msra.mxu0 0.0
      %1096 = vmatpush.msra.mxu0 0.0
      %1097 = vmatpush.msra.mxu0 0.0
      %1098 = vmatpush.msra.mxu0 0.0
      %1099 = vmatpush.msra.mxu0 0.0
      %1100 = vmatpush.msra.mxu0 0.0
      %1101 = vmatpush.msra.mxu0 0.0
      %1102 = vmatpush.msra.mxu0 0.0
      %1103 = vmatpush.msra.mxu0 0.0
      %1104 = vmatpush.msra.mxu0 0.0
      %1105 = vmatpush.msra.mxu0 0.0
      %1106 = vmatpush.msra.mxu0 0.0
      %1107 = vmatpush.msra.mxu0 %v1059
      %1108 = vmatpush.msra.mxu0 %v1055
      %1109 = vmatmul.f32.gmra.mxu0 %v1071
      %v1110 = vpop.f32.mrf.mxu0
      %v1111 = vadd.f32 %v1069, %v1110
      %1112 = vdwg.mxu0
      %1113 = vmatpush.msra.mxu0 0.0
      %1114 = vmatpush.msra.mxu0 0.0
      %1115 = vmatpush.msra.mxu0 0.0
      %1116 = vmatpush.msra.mxu0 0.0
      %1117 = vmatpush.msra.mxu0 0.0
      %1118 = vmatpush.msra.mxu0 0.0
      %1119 = vmatpush.msra.mxu0 0.0
      %1120 = vmatpush.msra.mxu0 0.0
      %1121 = vmatpush.msra.mxu0 0.0
      %1122 = vmatpush.msra.mxu0 0.0
      %1123 = vmatpush.msra.mxu0 0.0
      %1124 = vmatpush.msra.mxu0 0.0
      %1125 = vmatpush.msra.mxu0 0.0
      %1126 = vmatpush.msra.mxu0 0.0
      %1127 = vmatpush.msra.mxu0 %v1060
      %1128 = vmatpush.msra.mxu0 %v1056
      %1129 = vmatmul.f32.gmra.mxu0 %v1071
      %v1130 = vpop.f32.mrf.mxu0
      %v1131 = vadd.f32 %v1069, %v1130
      %1132 = vdwg.mxu0
      %1133 = vmatpush.msra.mxu0 0.0
      %1134 = vmatpush.msra.mxu0 0.0
      %1135 = vmatpush.msra.mxu0 0.0
      %1136 = vmatpush.msra.mxu0 0.0
      %1137 = vmatpush.msra.mxu0 0.0
      %1138 = vmatpush.msra.mxu0 0.0
      %1139 = vmatpush.msra.mxu0 0.0
      %1140 = vmatpush.msra.mxu0 0.0
      %1141 = vmatpush.msra.mxu0 0.0
      %1142 = vmatpush.msra.mxu0 0.0
      %1143 = vmatpush.msra.mxu0 0.0
      %1144 = vmatpush.msra.mxu0 0.0
      %1145 = vmatpush.msra.mxu0 0.0
      %1146 = vmatpush.msra.mxu0 0.0
      %1147 = vmatpush.msra.mxu0 %v1061
      %1148 = vmatpush.msra.mxu0 %v1057
      %1149 = vmatmul.f32.gmra.mxu0 %v1071
      %v1150 = vpop.f32.mrf.mxu0
      %v1151 = vadd.f32 %v1069, %v1150
      %1152 = vdwg.mxu0
      %v1157 = vrot.slane %v1111, 7
      %v1158 = vrot.slane %v1131, 6
      %v1159 = vrot.slane %v1151, 5
      %vm1160 = vcmask 1040384
      %v1161 = vsel %vm1160, %v1091, %v1157
      %v1162 = vsel %vm419, %v1158, %v1159
      %vm1163 = vcmask 1041408
      %v1164 = vsel %vm1163, %v1161, %v1162
      %v1166 = vlaneseq
      %vm1167 = vcmp.ge.s32.totalorder %v1166, 0
      %vm1168 = vcmp.lt.s32.totalorder %v1166, 448
      %vm1169 = vmand %vm1167, %vm1168
      %1170 = vst.msk [vmem:[%s384] sm:$0xf] %vm1169, %v1164
      %p1171 = scmp.lt.s32.totalorder %s18, 1
      %s1172 = scalar_select %p1171, %s18, 1
      %s1173 = smul.addr %s1172, 4
      %s1174 = scalar_lea.vmem %s7, %s1173
      // Predicated region
      $region49: #{qencoders_forward.3} parent=47 // pred_check
        %p1175 = pneg %p218
      $region50: #{qencoders_forward.3} parent=47 // pred_check_branch
        %1177 = sbr.rel (%p1175) target = $region52
      $region51: #{qencoders_forward.3} parent=47 // pred_region
        _
      $region52: #{qencoders_forward.3} parent=47 // pred_fallthru
        _
    $region48: #{qencoders_forward.3} parent=5 // pred_fallthru
      _
    %p1178 = scmp.le.s32.totalorder 2, %s13
    // Predicated region
    $region53: #{qencoders_forward.3} parent=5 // pred_check
      %p1179 = pneg %p1178
    $region54: #{qencoders_forward.3} parent=5 // pred_check_branch
      %1181 = sbr.rel (%p1179) target = $region56
    $region55: #{qencoders_forward.3} parent=5 // pred_region
      %s1182 = ssub.s32 %s13, 2
      // Predicated region
      $region57: #{qencoders_forward.3} parent=55 // pred_check
        %p1183 = pneg %p224
      $region58: #{qencoders_forward.3} parent=55 // pred_check_branch
        %1185 = sbr.rel (%p1183) target = $region60
      $region59: #{qencoders_forward.3} parent=55 // pred_region
        %p1186 = scmp.lt.s32.totalorder %s19, 1
        %s1187 = scalar_select %p1186, %s19, 1
        %s1188 = smul.addr %s1187, 4
        %s1189 = scalar_lea.vmem %s7, %s1188
      $region60: #{qencoders_forward.3} parent=55 // pred_fallthru
        _
    $region56: #{qencoders_forward.3} parent=5 // pred_fallthru
      _
  $region6: #{qencoders_forward.3} parent=0 // loop_footer
    %s17 = sadd.s32 1, %s13
  $region7: #{qencoders_forward.3} parent=0 // loop_footer_branch
    %12 = sbr.rel target = $region3
  $region8: #{qencoders_forward.3} parent=0 // loop_exit
    _

</llo_original>
